<compile_context>
chip_gen: v5e
topology: v5e:2x2
jax: 0.10.0
libtpu: 0.0.40
codegen_flags: <defaults>
</compile_context>

<pallas_src>
import functools

import jax
import jax.numpy as jnp
import numpy as np
from jax.experimental import pallas as pl
from jax.experimental.pallas import tpu as pltpu

# ---------------------------------------------------------------------------
# Model sizes (small, consistent with the module's forward)
# ---------------------------------------------------------------------------
NUM_EEG_CHANNELS = 16     # N  (graph nodes)
NUM_EEG_TIMESTEPS = 32    # T  (node feature dim)
LATENT_FEATURES = 32      # L
HIDDEN = 512              # hardcoded hidden_channels=512 in the module


# ---------------------------------------------------------------------------
# Pallas kernel: one grid step = one chunk of `chunk` graphs stacked to M rows
# ---------------------------------------------------------------------------
def _dem_loc_kernel(a_ref, x_ref,
                    w0a_ref, w0b_ref, w1a_ref, w1b_ref,
                    v0a_ref, v0b_ref, v1a_ref,
                    biases_ref, wd_ref, g_ref,
                    out_ref):
    bf16 = jnp.bfloat16
    chunk = g_ref.shape[0]
    L = wd_ref.shape[1]

    def mm(a, b):
        return jnp.dot(a, b, preferred_element_type=jnp.float32)   # f32 accumulation

    def bf(v):
        return v.astype(bf16)                                       # cast once, reuse

    def relu(v):
        return jnp.maximum(v, 0.0)

    def col_to_row(col):
        # (R, 1) f32 -> (1, R) f32 using only broadcast / compare / reduce
        # (avoids relying on in-kernel reshape/transpose lowering).
        r = col.shape[0]
        ri = jax.lax.broadcasted_iota(jnp.int32, (r, r), 0)
        ci = jax.lax.broadcasted_iota(jnp.int32, (r, r), 1)
        eye = (ri == ci).astype(col.dtype)
        return jnp.sum(eye * col, axis=0, keepdims=True)

    A = a_ref[...]                       # (M, M) bf16 block-diagonal (A + I)
    x = x_ref[...]                       # (M, T) bf16

    # packed biases / scalars (f32): rows 0..5 = b0a, b0b, c0a, c0b, b1a, b1b
    b0a = biases_ref[0:1, :]
    b0b = biases_ref[1:2, :]
    c0a = biases_ref[2:3, :]
    c0b = biases_ref[3:4, :]
    b1a = biases_ref[4:5, :L]
    b1b = biases_ref[5:6, :L]
    c1a = biases_ref[6:7, 0:1]           # true scalars live in row 6, lanes 0..3
    v1b = biases_ref[6:7, 1:2]
    c1b = biases_ref[6:7, 2:3]
    bd = biases_ref[6:7, 3:4]

    # ---- struct_featurizer: GIN(T, 512, L, num_layers=2) ----
    h = bf(mm(A, x))                                   # GIN aggregation (eps=0, +I folded in)
    h = bf(relu(mm(h, w0a_ref[...]) + b0a))            # MLP Lin1 + ReLU
    h = bf(relu(mm(h, w0b_ref[...]) + b0b))            # MLP Lin2, then inter-layer ReLU
    g1 = bf(mm(A, h))
    g1 = bf(relu(mm(g1, w1a_ref[...]) + b1a))
    feat = mm(g1, w1b_ref[...]) + b1b                  # (M, L) f32 neurodeg_feature_pred

    # ---- gin_scorer: GIN(L, 512, 1, num_layers=2) ----
    s0 = bf(mm(A, bf(feat)))
    s0 = bf(relu(mm(s0, v0a_ref[...]) + c0a))
    s0 = bf(relu(mm(s0, v0b_ref[...]) + c0b))
    s1 = bf(mm(A, s0))
    s1 = relu(mm(s1, v1a_ref[...]) + c1a)              # (M, 1) f32
    scores = jax.nn.sigmoid(s1 * v1b + c1b)            # last Linear(1,1) folded as scale+shift

    # ---- dementia head: per-graph sum(feat * wd) + bd, sigmoid (kept fully f32) ----
    prod = feat * wd_ref[...]                          # (M, L) f32
    rowsum = jnp.sum(prod, axis=-1, keepdims=True)     # (M, 1) f32
    rowsum_row = col_to_row(rowsum)                    # (1, M) f32
    d = jnp.sum(g_ref[...] * rowsum_row, axis=-1, keepdims=True) + bd   # (chunk, 1)
    dem = jax.nn.sigmoid(d)

    # ---- lane-dense packed output slab ----
    out_ref[...] = jnp.zeros_like(out_ref)
    out_ref[0:1, :] = col_to_row(scores)               # row 0: region scores (all M nodes)
    out_ref[1:2, 0:chunk] = col_to_row(dem)            # row 1 lanes [0:chunk]: dementia preds


# ---------------------------------------------------------------------------
# Batched implementation (serving path) + thin public wrappers
# ---------------------------------------------------------------------------
def _dem_localization_batched_impl(eeg_nodes_b, adj_b, params, chunk_size):
    """eeg_nodes_b: (B, N, T) f32 node features; adj_b: (B, N, N) f32 adjacency
    (dst x src, NO self loops).  Returns (dem (B,1), scores (B,N,1))."""
    B, N, T = eeg_nodes_b.shape
    H = params["w0b"].shape[0]
    L = params["w1b"].shape[0]

    chunk = max(1, min(chunk_size, B))          # chunk*N rows per grid step
    n_chunks = pl.cdiv(B, chunk)
    B_pad = n_chunks * chunk
    if B_pad != B:                              # pad with dummy graphs, sliced off below
        pad = B_pad - B
        eeg_nodes_b = jnp.concatenate(
            [eeg_nodes_b, jnp.zeros((pad, N, T), eeg_nodes_b.dtype)], axis=0)
        adj_b = jnp.concatenate(
            [adj_b, jnp.zeros((pad, N, N), adj_b.dtype)], axis=0)
    M = chunk * N

    # (A + I) per graph, assembled into one block-diagonal (M, M) matrix per chunk so
    # every GIN aggregation is a single MXU matmul over all `chunk` graphs at once.
    a_plus = adj_b.astype(jnp.float32) + jnp.eye(N, dtype=jnp.float32)[None]
    a_plus = a_plus.reshape(n_chunks, chunk, N, N)
    eye_c = jnp.eye(chunk, dtype=jnp.float32)
    a_bd = jnp.einsum("cgij,gh->cgihj", a_plus, eye_c)
    a_bd = a_bd.reshape(n_chunks, M, M).astype(jnp.bfloat16)
    # TODO(synk): build A+I in-kernel from eeg_idx via PrefetchScalarGridSpec to drop
    # this wrapper-side scatter/einsum dispatch on the single-graph latency path.

    x = eeg_nodes_b.reshape(n_chunks, M, T).astype(jnp.bfloat16)

    # All bias vectors AND the four true scalars packed into ONE (8, H) f32 slab.
    biases = jnp.zeros((8, H), jnp.float32)
    biases = biases.at[0, :].set(params["b0a"][0])
    biases = biases.at[1, :].set(params["b0b"][0])
    biases = biases.at[2, :].set(params["c0a"][0])
    biases = biases.at[3, :].set(params["c0b"][0])
    biases = biases.at[4, :L].set(params["b1a"][0])
    biases = biases.at[5, :L].set(params["b1b"][0])
    biases = biases.at[6, 0].set(params["c1a"][0, 0])
    biases = biases.at[6, 1].set(params["v1b"][0, 0])
    biases = biases.at[6, 2].set(params["c1b"][0, 0])
    biases = biases.at[6, 3].set(params["bd"][0, 0])

    wd_tile = jnp.tile(params["wd"].astype(jnp.float32), (chunk, 1))     # (M, L)
    grp = jnp.repeat(jnp.eye(chunk, dtype=jnp.float32), N, axis=1)       # (chunk, M)

    def bfw(k):
        return params[k].astype(jnp.bfloat16)

    inputs = [a_bd, x,
              bfw("w0a"), bfw("w0b"), bfw("w1a"), bfw("w1b"),
              bfw("v0a"), bfw("v0b"), bfw("v1a"),
              biases, wd_tile, grp]

    def chunk_spec(shape):                       # per-chunk blocks, batch dim squeezed
        nd = len(shape)
        return pl.BlockSpec((None,) + tuple(shape[1:]),
                            lambda i, _nd=nd: (i,) + (0,) * (_nd - 1))

    def resident_spec(arr):                      # constant block index -> fetched once
        nd = arr.ndim
        return pl.BlockSpec(tuple(arr.shape), lambda i, _nd=nd: (0,) * _nd)

    in_specs = ([chunk_spec(a_bd.shape), chunk_spec(x.shape)]
                + [resident_spec(a) for a in inputs[2:]])
    out_spec = pl.BlockSpec((None, 8, M), lambda i: (i, 0, 0))

    # Advisory cost estimate so XLA schedules the surrounding glue correctly.
    mm_k_n = (M * T + T * H + H * H + M * H + H * L + L * L +
              M * L + L * H + H * H + M * H + H)
    flops = int(2 * B_pad * N * mm_k_n)
    transcendentals = int(B_pad * N + B_pad)
    weight_bytes = 2 * (T * H + 2 * H * H + H * L + L * L + L * H + H) + 4 * 8 * H
    io_bytes = int(weight_bytes + 2 * n_chunks * (M * M + M * T)
                   + 4 * n_chunks * 8 * M + 4 * M * L + 4 * chunk * M)

    out = pl.pallas_call(
        _dem_loc_kernel,
        out_shape=jax.ShapeDtypeStruct((n_chunks, 8, M), jnp.float32),
        grid=(n_chunks,),
        in_specs=in_specs,
        out_specs=out_spec,
        compiler_params=pltpu.CompilerParams(
            dimension_semantics=("parallel",)),            # shard chunks over v7x's 2 TCs
        cost_estimate=pl.CostEstimate(flops=flops,
                                      transcendentals=transcendentals,
                                      bytes_accessed=io_bytes),
    )(*inputs)

    scores = out[:, 0, :].reshape(B_pad, N)[:B].reshape(B, N, 1)
    dem = out[:, 1, :chunk].reshape(B_pad)[:B].reshape(B, 1)
    return dem, scores


@functools.partial(jax.jit, static_argnames=("chunk_size",))
def dem_localization_forward_batched(eeg_nodes_b, adj_b, params, chunk_size=8):
    """Serving path: chunk_size=8 -> M=128 (fills v5e MXU); use 16 on v6e/v7x."""
    return _dem_localization_batched_impl(eeg_nodes_b, adj_b, params, chunk_size)


@jax.jit
def dem_localization_forward(eeg_nodes, eeg_idx, eeg_attr, params):
    """Single-graph forward matching the PyTorch module's signature/semantics."""
    del eeg_attr  # torch_geometric's GIN model does not support edge_weight -> ignored
    N = eeg_nodes.shape[0]
    src = eeg_idx[0]
    dst = eeg_idx[1]
    adj = jnp.zeros((N, N), jnp.float32).at[dst, src].add(1.0)
    dem, scores = _dem_localization_batched_impl(eeg_nodes[None], adj[None], params,
                                                 chunk_size=1)
    # TODO(synk): for the true single-graph latency path, add a cross-pallas_call weight
    # prefetch (P10) so the ~1.1 MiB weight DMA overlaps the adjacency build/dispatch.
    return dem.reshape(1, 1), scores.reshape(N, 1)


# ---------------------------------------------------------------------------
# Deterministic parameter init (synthetic; mirrors shapes from __init__)
# ---------------------------------------------------------------------------
def init_params(key, N=NUM_EEG_CHANNELS, T=NUM_EEG_TIMESTEPS,
                L=LATENT_FEATURES, H=HIDDEN):
    keys = iter(jax.random.split(key, 32))

    def lin(fi, fo):
        s = 1.0 / np.sqrt(fi)
        w = jax.random.uniform(next(keys), (fi, fo), jnp.float32, -s, s)
        b = jax.random.uniform(next(keys), (1, fo), jnp.float32, -s, s)
        return w, b

    p = {}
    p["w0a"], p["b0a"] = lin(T, H)
    p["w0b"], p["b0b"] = lin(H, H)
    p["w1a"], p["b1a"] = lin(H, L)
    p["w1b"], p["b1b"] = lin(L, L)
    p["v0a"], p["c0a"] = lin(L, H)
    p["v0b"], p["c0b"] = lin(H, H)
    p["v1a"], p["c1a"] = lin(H, 1)
    p["v1b"], p["c1b"] = lin(1, 1)
    wd_flat, p["bd"] = lin(N * L, 1)            # PyTorch-style Linear(N*L, 1) weight
    p["wd"] = wd_flat.reshape(N, L)             # row-major reshape matches feat.reshape(1, N*L)
    return p


# ---------------------------------------------------------------------------
# Pure-JAX references
# ---------------------------------------------------------------------------
def reference_bf16(eeg_nodes, eeg_idx, params, N=NUM_EEG_CHANNELS):
    """Mirrors the kernel math (bf16 MXU operands, f32 accumulation)."""
    bf16 = jnp.bfloat16
    A = jnp.zeros((N, N), jnp.float32).at[eeg_idx[1], eeg_idx[0]].add(1.0)
    A = (A + jnp.eye(N, dtype=jnp.float32)).astype(bf16)
    relu = lambda v: jnp.maximum(v, 0.0)
    mm = lambda a, b: jnp.dot(a.astype(bf16), b.astype(bf16),
                              preferred_element_type=jnp.float32)
    x = eeg_nodes
    h = mm(A, x)
    h = relu(mm(h, params["w0a"]) + params["b0a"])
    h = relu(mm(h, params["w0b"]) + params["b0b"])
    g1 = mm(A, h)
    g1 = relu(mm(g1, params["w1a"]) + params["b1a"])
    feat = mm(g1, params["w1b"]) + params["b1b"]
    s0 = mm(A, feat)
    s0 = relu(mm(s0, params["v0a"]) + params["c0a"])
    s0 = relu(mm(s0, params["v0b"]) + params["c0b"])
    s1 = mm(A, s0)
    s1 = relu(mm(s1, params["v1a"]) + params["c1a"][0, 0])
    scores = jax.nn.sigmoid(s1 * params["v1b"][0, 0] + params["c1b"][0, 0])
    dem = jax.nn.sigmoid(jnp.sum(feat * params["wd"]) + params["bd"][0, 0]).reshape(1, 1)
    return dem, scores


def reference_f32(eeg_nodes, eeg_idx, params, N=NUM_EEG_CHANNELS):
    """Original-module f32 semantics."""
    A = jnp.zeros((N, N), jnp.float32).at[eeg_idx[1], eeg_idx[0]].add(1.0)
    relu = lambda v: jnp.maximum(v, 0.0)
    x = eeg_nodes
    h = A @ x + x
    h = relu(relu(h @ params["w0a"] + params["b0a"]) @ params["w0b"] + params["b0b"])
    h2 = A @ h + h
    feat = relu(h2 @ params["w1a"] + params["b1a"]) @ params["w1b"] + params["b1b"]
    g = A @ feat + feat
    g = relu(relu(g @ params["v0a"] + params["c0a"]) @ params["v0b"] + params["c0b"])
    g2 = A @ g + g
    g2 = relu(g2 @ params["v1a"] + params["c1a"])
    scores = jax.nn.sigmoid(g2 * params["v1b"][0, 0] + params["c1b"][0, 0])
    dem = jax.nn.sigmoid(jnp.sum(feat * params["wd"]) + params["bd"][0, 0]).reshape(1, 1)
    return dem, scores


if __name__ == "__main__":
    key = jax.random.PRNGKey(0)
    k_x, k_p, k_b = jax.random.split(key, 3)

    N, T = NUM_EEG_CHANNELS, NUM_EEG_TIMESTEPS

    # Deterministic inputs: node features + a bidirectional ring graph.
    eeg_nodes = jax.random.normal(k_x, (N, T), jnp.float32)
    src = jnp.arange(N, dtype=jnp.int32)
    dst = (src + 1) % N
    eeg_idx = jnp.stack([jnp.concatenate([src, dst]),
                         jnp.concatenate([dst, src])], axis=0)   # (2, 2N)
    eeg_attr = jnp.ones((2 * N,), jnp.float32)                   # unused by GIN (no edge_weight)

    params = init_params(k_p)

    # --- single-graph path (matches the PyTorch module's forward) ---
    dem_pred, region_scores = dem_localization_forward(eeg_nodes, eeg_idx, eeg_attr, params)
    jax.block_until_ready((dem_pred, region_scores))

    dem_bf, sc_bf = reference_bf16(eeg_nodes, eeg_idx, params)
    np.testing.assert_allclose(np.asarray(dem_pred), np.asarray(dem_bf), atol=1e-2)
    np.testing.assert_allclose(np.asarray(region_scores), np.asarray(sc_bf), atol=1e-2)

    dem_f32, sc_f32 = reference_f32(eeg_nodes, eeg_idx, params)
    np.testing.assert_allclose(np.asarray(dem_pred), np.asarray(dem_f32), atol=5e-2)
    np.testing.assert_allclose(np.asarray(region_scores), np.asarray(sc_f32), atol=5e-2)

    assert dem_pred.shape == (1, 1) and region_scores.shape == (N, 1)

    # --- batched serving path: 8 graphs -> one (128,128) block-diagonal aggregation ---
    B = 8
    nodes_b = jax.random.normal(k_b, (B, N, T), jnp.float32)
    adj = jnp.zeros((N, N), jnp.float32).at[eeg_idx[1], eeg_idx[0]].add(1.0)
    adj_b = jnp.broadcast_to(adj, (B, N, N))
    dem_b, scores_b = dem_localization_forward_batched(nodes_b, adj_b, params)
    jax.block_until_ready((dem_b, scores_b))
    assert dem_b.shape == (B, 1) and scores_b.shape == (B, N, 1)

    # spot-check one batch element against the single-graph reference
    dem_ref3, sc_ref3 = reference_bf16(nodes_b[3], eeg_idx, params)
    np.testing.assert_allclose(np.asarray(dem_b[3]).reshape(1, 1),
                               np.asarray(dem_ref3), atol=1e-2)
    np.testing.assert_allclose(np.asarray(scores_b[3]), np.asarray(sc_ref3), atol=1e-2)

    print("KERNEL_OK")
</pallas_src>

<mosaic_0001>
module attributes {stable_mosaic.version = 11 : i64} {
  func.func @_dem_loc_kernel(%arg0: i32, %arg1: memref<1x16x16xbf16, #tpu.memory_space<vmem>>, %arg2: memref<1x16x32xbf16, #tpu.memory_space<vmem>>, %arg3: memref<32x512xbf16, #tpu.memory_space<vmem>>, %arg4: memref<512x512xbf16, #tpu.memory_space<vmem>>, %arg5: memref<512x32xbf16, #tpu.memory_space<vmem>>, %arg6: memref<32x32xbf16, #tpu.memory_space<vmem>>, %arg7: memref<32x512xbf16, #tpu.memory_space<vmem>>, %arg8: memref<512x512xbf16, #tpu.memory_space<vmem>>, %arg9: memref<512x1xbf16, #tpu.memory_space<vmem>>, %arg10: memref<8x512xf32, #tpu.memory_space<vmem>>, %arg11: memref<16x32xf32, #tpu.memory_space<vmem>>, %arg12: memref<1x16xf32, #tpu.memory_space<vmem>>, %arg13: memref<1x8x16xf32, #tpu.memory_space<vmem>>) attributes {dimension_semantics = [#tpu.dimension_semantics<parallel>], iteration_bounds = array<i64: 1>, scalar_prefetch = 0 : i64, scratch_operands = 0 : i64, tpu.core_type = #tpu.core_type<tc>, window_params = [{transform_indices = @transform_0, window_bounds = array<i64: 1, 16, 16>}, {transform_indices = @transform_1, window_bounds = array<i64: 1, 16, 32>}, {pipeline_mode = #tpu.pipeline_mode<synchronous>, transform_indices = @transform_2, window_bounds = array<i64: 32, 512>}, {pipeline_mode = #tpu.pipeline_mode<synchronous>, transform_indices = @transform_3, window_bounds = array<i64: 512, 512>}, {pipeline_mode = #tpu.pipeline_mode<synchronous>, transform_indices = @transform_4, window_bounds = array<i64: 512, 32>}, {pipeline_mode = #tpu.pipeline_mode<synchronous>, transform_indices = @transform_5, window_bounds = array<i64: 32, 32>}, {pipeline_mode = #tpu.pipeline_mode<synchronous>, transform_indices = @transform_6, window_bounds = array<i64: 32, 512>}, {pipeline_mode = #tpu.pipeline_mode<synchronous>, transform_indices = @transform_7, window_bounds = array<i64: 512, 512>}, {pipeline_mode = #tpu.pipeline_mode<synchronous>, transform_indices = @transform_8, window_bounds = array<i64: 512, 1>}, {pipeline_mode = #tpu.pipeline_mode<synchronous>, transform_indices = @transform_9, window_bounds = array<i64: 8, 512>}, {pipeline_mode = #tpu.pipeline_mode<synchronous>, transform_indices = @transform_10, window_bounds = array<i64: 16, 32>}, {pipeline_mode = #tpu.pipeline_mode<synchronous>, transform_indices = @transform_11, window_bounds = array<i64: 1, 16>}, {transform_indices = @transform_12, window_bounds = array<i64: 1, 8, 16>}]} {
    %c0 = arith.constant 0 : index
    %c0_0 = arith.constant 0 : index
    %c0_1 = arith.constant 0 : index
    %0 = vector.load %arg1[%c0, %c0_0, %c0_1] : memref<1x16x16xbf16, #tpu.memory_space<vmem>>, vector<1x16x16xbf16>
    %1 = vector.shape_cast %0 : vector<1x16x16xbf16> to vector<16x16xbf16>
    %c0_2 = arith.constant 0 : index
    %c0_3 = arith.constant 0 : index
    %c0_4 = arith.constant 0 : index
    %2 = vector.load %arg2[%c0_2, %c0_3, %c0_4] : memref<1x16x32xbf16, #tpu.memory_space<vmem>>, vector<1x16x32xbf16>
    %3 = vector.shape_cast %2 : vector<1x16x32xbf16> to vector<16x32xbf16>
    %c0_5 = arith.constant 0 : index
    %c0_6 = arith.constant 0 : index
    %4 = vector.load %arg10[%c0_5, %c0_6] : memref<8x512xf32, #tpu.memory_space<vmem>>, vector<1x512xf32>
    %c1 = arith.constant 1 : index
    %c0_7 = arith.constant 0 : index
    %5 = vector.load %arg10[%c1, %c0_7] : memref<8x512xf32, #tpu.memory_space<vmem>>, vector<1x512xf32>
    %c2 = arith.constant 2 : index
    %c0_8 = arith.constant 0 : index
    %6 = vector.load %arg10[%c2, %c0_8] : memref<8x512xf32, #tpu.memory_space<vmem>>, vector<1x512xf32>
    %c3 = arith.constant 3 : index
    %c0_9 = arith.constant 0 : index
    %7 = vector.load %arg10[%c3, %c0_9] : memref<8x512xf32, #tpu.memory_space<vmem>>, vector<1x512xf32>
    %c4 = arith.constant 4 : index
    %c0_10 = arith.constant 0 : index
    %8 = vector.load %arg10[%c4, %c0_10] : memref<8x512xf32, #tpu.memory_space<vmem>>, vector<1x32xf32>
    %c5 = arith.constant 5 : index
    %c0_11 = arith.constant 0 : index
    %9 = vector.load %arg10[%c5, %c0_11] : memref<8x512xf32, #tpu.memory_space<vmem>>, vector<1x32xf32>
    %c6 = arith.constant 6 : index
    %c0_12 = arith.constant 0 : index
    %10 = vector.load %arg10[%c6, %c0_12] : memref<8x512xf32, #tpu.memory_space<vmem>>, vector<1x1xf32>
    %c6_13 = arith.constant 6 : index
    %c1_14 = arith.constant 1 : index
    %11 = vector.load %arg10[%c6_13, %c1_14] : memref<8x512xf32, #tpu.memory_space<vmem>>, vector<1x1xf32>
    %c6_15 = arith.constant 6 : index
    %c2_16 = arith.constant 2 : index
    %12 = vector.load %arg10[%c6_15, %c2_16] : memref<8x512xf32, #tpu.memory_space<vmem>>, vector<1x1xf32>
    %c6_17 = arith.constant 6 : index
    %c3_18 = arith.constant 3 : index
    %13 = vector.load %arg10[%c6_17, %c3_18] : memref<8x512xf32, #tpu.memory_space<vmem>>, vector<1x1xf32>
    %cst = arith.constant dense<0.000000e+00> : vector<16x32xf32>
    %14 = tpu.matmul %1, %3, %cst {dimension_numbers = #tpu.dot_dimension_numbers<[1], [0], [0], [1], [0, 0, 1, 1], [], []>} : vector<16x16xbf16>, vector<16x32xbf16>, vector<16x32xf32> -> vector<16x32xf32>
    %15 = arith.truncf %14 : vector<16x32xf32> to vector<16x32xbf16>
    %c0_19 = arith.constant 0 : index
    %c0_20 = arith.constant 0 : index
    %16 = vector.load %arg3[%c0_19, %c0_20] : memref<32x512xbf16, #tpu.memory_space<vmem>>, vector<32x512xbf16>
    %cst_21 = arith.constant dense<0.000000e+00> : vector<16x512xf32>
    %17 = tpu.matmul %15, %16, %cst_21 {dimension_numbers = #tpu.dot_dimension_numbers<[1], [0], [0], [1], [0, 0, 1, 1], [], []>} : vector<16x32xbf16>, vector<32x512xbf16>, vector<16x512xf32> -> vector<16x512xf32>
    %18 = vector.broadcast %4 : vector<1x512xf32> to vector<16x512xf32>
    %19 = arith.addf %17, %18 : vector<16x512xf32>
    %cst_22 = arith.constant 0.000000e+00 : f32
    %20 = vector.broadcast %cst_22 : f32 to vector<16x512xf32>
    %21 = arith.maximumf %19, %20 : vector<16x512xf32>
    %22 = arith.truncf %21 : vector<16x512xf32> to vector<16x512xbf16>
    %c0_23 = arith.constant 0 : index
    %c0_24 = arith.constant 0 : index
    %23 = vector.load %arg4[%c0_23, %c0_24] : memref<512x512xbf16, #tpu.memory_space<vmem>>, vector<512x512xbf16>
    %cst_25 = arith.constant dense<0.000000e+00> : vector<16x512xf32>
    %24 = tpu.matmul %22, %23, %cst_25 {dimension_numbers = #tpu.dot_dimension_numbers<[1], [0], [0], [1], [0, 0, 1, 1], [], []>} : vector<16x512xbf16>, vector<512x512xbf16>, vector<16x512xf32> -> vector<16x512xf32>
    %25 = vector.broadcast %5 : vector<1x512xf32> to vector<16x512xf32>
    %26 = arith.addf %24, %25 : vector<16x512xf32>
    %cst_26 = arith.constant 0.000000e+00 : f32
    %27 = vector.broadcast %cst_26 : f32 to vector<16x512xf32>
    %28 = arith.maximumf %26, %27 : vector<16x512xf32>
    %29 = arith.truncf %28 : vector<16x512xf32> to vector<16x512xbf16>
    %cst_27 = arith.constant dense<0.000000e+00> : vector<16x512xf32>
    %30 = tpu.matmul %1, %29, %cst_27 {dimension_numbers = #tpu.dot_dimension_numbers<[1], [0], [0], [1], [0, 0, 1, 1], [], []>} : vector<16x16xbf16>, vector<16x512xbf16>, vector<16x512xf32> -> vector<16x512xf32>
    %31 = arith.truncf %30 : vector<16x512xf32> to vector<16x512xbf16>
    %c0_28 = arith.constant 0 : index
    %c0_29 = arith.constant 0 : index
    %32 = vector.load %arg5[%c0_28, %c0_29] : memref<512x32xbf16, #tpu.memory_space<vmem>>, vector<512x32xbf16>
    %cst_30 = arith.constant dense<0.000000e+00> : vector<16x32xf32>
    %33 = tpu.matmul %31, %32, %cst_30 {dimension_numbers = #tpu.dot_dimension_numbers<[1], [0], [0], [1], [0, 0, 1, 1], [], []>} : vector<16x512xbf16>, vector<512x32xbf16>, vector<16x32xf32> -> vector<16x32xf32>
    %34 = vector.broadcast %8 : vector<1x32xf32> to vector<16x32xf32>
    %35 = arith.addf %33, %34 : vector<16x32xf32>
    %cst_31 = arith.constant 0.000000e+00 : f32
    %36 = vector.broadcast %cst_31 : f32 to vector<16x32xf32>
    %37 = arith.maximumf %35, %36 : vector<16x32xf32>
    %38 = arith.truncf %37 : vector<16x32xf32> to vector<16x32xbf16>
    %c0_32 = arith.constant 0 : index
    %c0_33 = arith.constant 0 : index
    %39 = vector.load %arg6[%c0_32, %c0_33] : memref<32x32xbf16, #tpu.memory_space<vmem>>, vector<32x32xbf16>
    %cst_34 = arith.constant dense<0.000000e+00> : vector<16x32xf32>
    %40 = tpu.matmul %38, %39, %cst_34 {dimension_numbers = #tpu.dot_dimension_numbers<[1], [0], [0], [1], [0, 0, 1, 1], [], []>} : vector<16x32xbf16>, vector<32x32xbf16>, vector<16x32xf32> -> vector<16x32xf32>
    %41 = vector.broadcast %9 : vector<1x32xf32> to vector<16x32xf32>
    %42 = arith.addf %40, %41 : vector<16x32xf32>
    %43 = arith.truncf %42 : vector<16x32xf32> to vector<16x32xbf16>
    %cst_35 = arith.constant dense<0.000000e+00> : vector<16x32xf32>
    %44 = tpu.matmul %1, %43, %cst_35 {dimension_numbers = #tpu.dot_dimension_numbers<[1], [0], [0], [1], [0, 0, 1, 1], [], []>} : vector<16x16xbf16>, vector<16x32xbf16>, vector<16x32xf32> -> vector<16x32xf32>
    %45 = arith.truncf %44 : vector<16x32xf32> to vector<16x32xbf16>
    %c0_36 = arith.constant 0 : index
    %c0_37 = arith.constant 0 : index
    %46 = vector.load %arg7[%c0_36, %c0_37] : memref<32x512xbf16, #tpu.memory_space<vmem>>, vector<32x512xbf16>
    %cst_38 = arith.constant dense<0.000000e+00> : vector<16x512xf32>
    %47 = tpu.matmul %45, %46, %cst_38 {dimension_numbers = #tpu.dot_dimension_numbers<[1], [0], [0], [1], [0, 0, 1, 1], [], []>} : vector<16x32xbf16>, vector<32x512xbf16>, vector<16x512xf32> -> vector<16x512xf32>
    %48 = vector.broadcast %6 : vector<1x512xf32> to vector<16x512xf32>
    %49 = arith.addf %47, %48 : vector<16x512xf32>
    %cst_39 = arith.constant 0.000000e+00 : f32
    %50 = vector.broadcast %cst_39 : f32 to vector<16x512xf32>
    %51 = arith.maximumf %49, %50 : vector<16x512xf32>
    %52 = arith.truncf %51 : vector<16x512xf32> to vector<16x512xbf16>
    %c0_40 = arith.constant 0 : index
    %c0_41 = arith.constant 0 : index
    %53 = vector.load %arg8[%c0_40, %c0_41] : memref<512x512xbf16, #tpu.memory_space<vmem>>, vector<512x512xbf16>
    %cst_42 = arith.constant dense<0.000000e+00> : vector<16x512xf32>
    %54 = tpu.matmul %52, %53, %cst_42 {dimension_numbers = #tpu.dot_dimension_numbers<[1], [0], [0], [1], [0, 0, 1, 1], [], []>} : vector<16x512xbf16>, vector<512x512xbf16>, vector<16x512xf32> -> vector<16x512xf32>
    %55 = vector.broadcast %7 : vector<1x512xf32> to vector<16x512xf32>
    %56 = arith.addf %54, %55 : vector<16x512xf32>
    %cst_43 = arith.constant 0.000000e+00 : f32
    %57 = vector.broadcast %cst_43 : f32 to vector<16x512xf32>
    %58 = arith.maximumf %56, %57 : vector<16x512xf32>
    %59 = arith.truncf %58 : vector<16x512xf32> to vector<16x512xbf16>
    %cst_44 = arith.constant dense<0.000000e+00> : vector<16x512xf32>
    %60 = tpu.matmul %1, %59, %cst_44 {dimension_numbers = #tpu.dot_dimension_numbers<[1], [0], [0], [1], [0, 0, 1, 1], [], []>} : vector<16x16xbf16>, vector<16x512xbf16>, vector<16x512xf32> -> vector<16x512xf32>
    %61 = arith.truncf %60 : vector<16x512xf32> to vector<16x512xbf16>
    %c0_45 = arith.constant 0 : index
    %c0_46 = arith.constant 0 : index
    %62 = vector.load %arg9[%c0_45, %c0_46] : memref<512x1xbf16, #tpu.memory_space<vmem>>, vector<512x1xbf16>
    %cst_47 = arith.constant dense<0.000000e+00> : vector<16x1xf32>
    %63 = tpu.matmul %61, %62, %cst_47 {dimension_numbers = #tpu.dot_dimension_numbers<[1], [0], [0], [1], [0, 0, 1, 1], [], []>} : vector<16x512xbf16>, vector<512x1xbf16>, vector<16x1xf32> -> vector<16x1xf32>
    %64 = vector.broadcast %10 : vector<1x1xf32> to vector<16x1xf32>
    %65 = arith.addf %63, %64 : vector<16x1xf32>
    %cst_48 = arith.constant 0.000000e+00 : f32
    %66 = vector.broadcast %cst_48 : f32 to vector<16x1xf32>
    %67 = arith.maximumf %65, %66 : vector<16x1xf32>
    %68 = vector.broadcast %11 : vector<1x1xf32> to vector<16x1xf32>
    %69 = arith.mulf %67, %68 : vector<16x1xf32>
    %70 = vector.broadcast %12 : vector<1x1xf32> to vector<16x1xf32>
    %71 = arith.addf %69, %70 : vector<16x1xf32>
    %72 = arith.negf %71 : vector<16x1xf32>
    %73 = math.exp %72 : vector<16x1xf32>
    %cst_49 = arith.constant 1.000000e+00 : f32
    %74 = vector.broadcast %cst_49 : f32 to vector<16x1xf32>
    %75 = arith.addf %74, %73 : vector<16x1xf32>
    %76 = arith.divf %74, %75 : vector<16x1xf32>
    %c0_50 = arith.constant 0 : index
    %c0_51 = arith.constant 0 : index
    %77 = vector.load %arg11[%c0_50, %c0_51] : memref<16x32xf32, #tpu.memory_space<vmem>>, vector<16x32xf32>
    %78 = arith.mulf %42, %77 : vector<16x32xf32>
    %cst_52 = arith.constant dense<0.000000e+00> : vector<16xf32>
    %79 = vector.multi_reduction <add>, %78, %cst_52 [1] : vector<16x32xf32> to vector<16xf32>
    %80 = vector.shape_cast %79 : vector<16xf32> to vector<16x1xf32>
    %81 = tpu.iota {dimensions = array<i32: 0>} : vector<16x16xi32>
    %82 = tpu.iota {dimensions = array<i32: 1>} : vector<16x16xi32>
    %83 = arith.cmpi eq, %81, %82 : vector<16x16xi32>
    %84 = arith.extui %83 : vector<16x16xi1> to vector<16x16xi32>
    %85 = arith.sitofp %84 : vector<16x16xi32> to vector<16x16xf32>
    %86 = vector.broadcast %80 : vector<16x1xf32> to vector<16x16xf32>
    %87 = arith.mulf %85, %86 : vector<16x16xf32>
    %cst_53 = arith.constant dense<0.000000e+00> : vector<16xf32>
    %88 = vector.multi_reduction <add>, %87, %cst_53 [0] : vector<16x16xf32> to vector<16xf32>
    %89 = vector.shape_cast %88 : vector<16xf32> to vector<1x16xf32>
    %c0_54 = arith.constant 0 : index
    %c0_55 = arith.constant 0 : index
    %90 = vector.load %arg12[%c0_54, %c0_55] : memref<1x16xf32, #tpu.memory_space<vmem>>, vector<1x16xf32>
    %91 = arith.mulf %90, %89 : vector<1x16xf32>
    %cst_56 = arith.constant dense<0.000000e+00> : vector<1xf32>
    %92 = vector.multi_reduction <add>, %91, %cst_56 [1] : vector<1x16xf32> to vector<1xf32>
    %93 = vector.shape_cast %92 : vector<1xf32> to vector<1x1xf32>
    %94 = arith.addf %93, %13 : vector<1x1xf32>
    %95 = arith.negf %94 : vector<1x1xf32>
    %96 = math.exp %95 : vector<1x1xf32>
    %cst_57 = arith.constant 1.000000e+00 : f32
    %97 = vector.broadcast %cst_57 : f32 to vector<1x1xf32>
    %98 = arith.addf %97, %96 : vector<1x1xf32>
    %99 = arith.divf %97, %98 : vector<1x1xf32>
    %cst_58 = arith.constant 0.000000e+00 : f32
    %100 = vector.broadcast %cst_58 : f32 to vector<8x16xf32>
    %c0_59 = arith.constant 0 : index
    %c0_60 = arith.constant 0 : index
    %c0_61 = arith.constant 0 : index
    %101 = vector.load %arg13[%c0_59, %c0_60, %c0_61] : memref<1x8x16xf32, #tpu.memory_space<vmem>>, vector<1x8x16xf32>
    %102 = vector.shape_cast %101 : vector<1x8x16xf32> to vector<8x16xf32>
    %103 = vector.shape_cast %100 : vector<8x16xf32> to vector<1x8x16xf32>
    tpu.vector_store %arg13[%c0_59, %c0_60, %c0_61], %103 {strides = array<i32>} : memref<1x8x16xf32, #tpu.memory_space<vmem>>, vector<1x8x16xf32>,
    %104 = tpu.iota {dimensions = array<i32: 0>} : vector<16x16xi32>
    %105 = tpu.iota {dimensions = array<i32: 1>} : vector<16x16xi32>
    %106 = arith.cmpi eq, %104, %105 : vector<16x16xi32>
    %107 = arith.extui %106 : vector<16x16xi1> to vector<16x16xi32>
    %108 = arith.sitofp %107 : vector<16x16xi32> to vector<16x16xf32>
    %109 = vector.broadcast %76 : vector<16x1xf32> to vector<16x16xf32>
    %110 = arith.mulf %108, %109 : vector<16x16xf32>
    %cst_62 = arith.constant dense<0.000000e+00> : vector<16xf32>
    %111 = vector.multi_reduction <add>, %110, %cst_62 [0] : vector<16x16xf32> to vector<16xf32>
    %112 = vector.shape_cast %111 : vector<16xf32> to vector<1x16xf32>
    %c0_63 = arith.constant 0 : index
    %c0_64 = arith.constant 0 : index
    %c0_65 = arith.constant 0 : index
    %113 = vector.load %arg13[%c0_63, %c0_64, %c0_65] : memref<1x8x16xf32, #tpu.memory_space<vmem>>, vector<1x1x16xf32>
    %114 = vector.shape_cast %113 : vector<1x1x16xf32> to vector<1x16xf32>
    %115 = vector.shape_cast %112 : vector<1x16xf32> to vector<1x1x16xf32>
    tpu.vector_store %arg13[%c0_63, %c0_64, %c0_65], %115 {strides = array<i32>} : memref<1x8x16xf32, #tpu.memory_space<vmem>>, vector<1x1x16xf32>,
    %116 = tpu.iota {dimensions = array<i32: 0>} : vector<1x1xi32>
    %117 = tpu.iota {dimensions = array<i32: 1>} : vector<1x1xi32>
    %118 = arith.cmpi eq, %116, %117 : vector<1x1xi32>
    %119 = arith.extui %118 : vector<1x1xi1> to vector<1x1xi32>
    %120 = arith.sitofp %119 : vector<1x1xi32> to vector<1x1xf32>
    %121 = arith.mulf %120, %99 : vector<1x1xf32>
    %cst_66 = arith.constant dense<0.000000e+00> : vector<1xf32>
    %122 = vector.multi_reduction <add>, %121, %cst_66 [0] : vector<1x1xf32> to vector<1xf32>
    %123 = vector.shape_cast %122 : vector<1xf32> to vector<1x1xf32>
    %c0_67 = arith.constant 0 : index
    %c1_68 = arith.constant 1 : index
    %c0_69 = arith.constant 0 : index
    %124 = vector.load %arg13[%c0_67, %c1_68, %c0_69] : memref<1x8x16xf32, #tpu.memory_space<vmem>>, vector<1x1x1xf32>
    %125 = vector.shape_cast %124 : vector<1x1x1xf32> to vector<1x1xf32>
    %126 = vector.shape_cast %123 : vector<1x1xf32> to vector<1x1x1xf32>
    tpu.vector_store %arg13[%c0_67, %c1_68, %c0_69], %126 {strides = array<i32>} : memref<1x8x16xf32, #tpu.memory_space<vmem>>, vector<1x1x1xf32>,
    return
  }
  func.func @transform_0(%arg0: i32) -> (i32, i32, i32) {
    %c0_i32 = arith.constant 0 : i32
    %c0_i32_0 = arith.constant 0 : i32
    %c0_i32_1 = arith.constant 0 : i32
    return %arg0, %c0_i32, %c0_i32_0 : i32, i32, i32
  }
  func.func @transform_1(%arg0: i32) -> (i32, i32, i32) {
    %c0_i32 = arith.constant 0 : i32
    %c0_i32_0 = arith.constant 0 : i32
    %c0_i32_1 = arith.constant 0 : i32
    return %arg0, %c0_i32, %c0_i32_0 : i32, i32, i32
  }
  func.func @transform_2(%arg0: i32) -> (i32, i32) {
    %c0_i32 = arith.constant 0 : i32
    %c0_i32_0 = arith.constant 0 : i32
    %c0_i32_1 = arith.constant 0 : i32
    return %c0_i32, %c0_i32_0 : i32, i32
  }
  func.func @transform_3(%arg0: i32) -> (i32, i32) {
    %c0_i32 = arith.constant 0 : i32
    %c0_i32_0 = arith.constant 0 : i32
    %c0_i32_1 = arith.constant 0 : i32
    return %c0_i32, %c0_i32_0 : i32, i32
  }
  func.func @transform_4(%arg0: i32) -> (i32, i32) {
    %c0_i32 = arith.constant 0 : i32
    %c0_i32_0 = arith.constant 0 : i32
    %c0_i32_1 = arith.constant 0 : i32
    return %c0_i32, %c0_i32_0 : i32, i32
  }
  func.func @transform_5(%arg0: i32) -> (i32, i32) {
    %c0_i32 = arith.constant 0 : i32
    %c0_i32_0 = arith.constant 0 : i32
    %c0_i32_1 = arith.constant 0 : i32
    return %c0_i32, %c0_i32_0 : i32, i32
  }
  func.func @transform_6(%arg0: i32) -> (i32, i32) {
    %c0_i32 = arith.constant 0 : i32
    %c0_i32_0 = arith.constant 0 : i32
    %c0_i32_1 = arith.constant 0 : i32
    return %c0_i32, %c0_i32_0 : i32, i32
  }
  func.func @transform_7(%arg0: i32) -> (i32, i32) {
    %c0_i32 = arith.constant 0 : i32
    %c0_i32_0 = arith.constant 0 : i32
    %c0_i32_1 = arith.constant 0 : i32
    return %c0_i32, %c0_i32_0 : i32, i32
  }
  func.func @transform_8(%arg0: i32) -> (i32, i32) {
    %c0_i32 = arith.constant 0 : i32
    %c0_i32_0 = arith.constant 0 : i32
    %c0_i32_1 = arith.constant 0 : i32
    return %c0_i32, %c0_i32_0 : i32, i32
  }
  func.func @transform_9(%arg0: i32) -> (i32, i32) {
    %c0_i32 = arith.constant 0 : i32
    %c0_i32_0 = arith.constant 0 : i32
    %c0_i32_1 = arith.constant 0 : i32
    return %c0_i32, %c0_i32_0 : i32, i32
  }
  func.func @transform_10(%arg0: i32) -> (i32, i32) {
    %c0_i32 = arith.constant 0 : i32
    %c0_i32_0 = arith.constant 0 : i32
    %c0_i32_1 = arith.constant 0 : i32
    return %c0_i32, %c0_i32_0 : i32, i32
  }
  func.func @transform_11(%arg0: i32) -> (i32, i32) {
    %c0_i32 = arith.constant 0 : i32
    %c0_i32_0 = arith.constant 0 : i32
    %c0_i32_1 = arith.constant 0 : i32
    return %c0_i32, %c0_i32_0 : i32, i32
  }
  func.func @transform_12(%arg0: i32) -> (i32, i32, i32) {
    %c0_i32 = arith.constant 0 : i32
    %c0_i32_0 = arith.constant 0 : i32
    %c0_i32_1 = arith.constant 0 : i32
    return %arg0, %c0_i32, %c0_i32_0 : i32, i32, i32
  }
}

</mosaic_0001>

<llo_original>
// kernel: dem_localization_forward.1
$region0: #{dem_localization_forward.1}
  #allocation0 [shape = 'u32[]', space=smem, size = 0x4, offset = 0x4, fixed_abs, tag = 'smem constant byte address 0x4 - core index']
  #allocation1 [shape = 'u32[72,128]{1,0:T(1,128)}', space=vmem, size = 0x9000, scoped, tag = 'internal scratch']
  %s0 = inlined_call_operand.vmem [shape: bf16[1,16,16], index: 0, kind: input, shape index: {}]
  %s1 = inlined_call_operand.vmem [shape: bf16[1,16,32], index: 1, kind: input, shape index: {}]
  %s2 = inlined_call_operand.vmem [shape: bf16[32,512], index: 2, kind: input, shape index: {}]
  %s3 = inlined_call_operand.vmem [shape: bf16[512,512], index: 3, kind: input, shape index: {}]
  %s4 = inlined_call_operand.vmem [shape: bf16[512,32], index: 4, kind: input, shape index: {}]
  %s5 = inlined_call_operand.vmem [shape: bf16[32,32], index: 5, kind: input, shape index: {}]
  %s6 = inlined_call_operand.vmem [shape: bf16[32,512], index: 6, kind: input, shape index: {}]
  %s7 = inlined_call_operand.vmem [shape: bf16[512,512], index: 7, kind: input, shape index: {}]
  %s8 = inlined_call_operand.vmem [shape: bf16[512,1], index: 8, kind: input, shape index: {}]
  %s9 = inlined_call_operand.vmem [shape: f32[8,512], index: 9, kind: input, shape index: {}]
  %s10 = inlined_call_operand.vmem [shape: f32[16,32], index: 10, kind: input, shape index: {}]
  %s11 = inlined_call_operand.vmem [shape: f32[1,16], index: 11, kind: input, shape index: {}]
  %s12 = inlined_call_operand.vmem [shape: f32[1,8,16], index: 12, kind: output, shape index: {}]
  %s13 = sld [smem:[#allocation0]]
  $region58: #{dem_localization_forward.1} parent=0
    _
  %s15 = ssub.s32 1, %s13
  %s16 = scalar_select 0, %s15, %s13
  // Predicated region
  $region2: #{dem_localization_forward.1} parent=0 // pred_check
    _
  $region3: #{dem_localization_forward.1} parent=0 // pred_check_branch
    %18 = sbr.rel (0) target = $region5
  $region4: #{dem_localization_forward.1} parent=0 // pred_region
    _
  $region5: #{dem_localization_forward.1} parent=0 // pred_fallthru
    _
  // Predicated region
  $region6: #{dem_localization_forward.1} parent=0 // pred_check
    _
  $region7: #{dem_localization_forward.1} parent=0 // pred_check_branch
    %20 = sbr.rel (0) target = $region9
  $region8: #{dem_localization_forward.1} parent=0 // pred_region
    _
  $region9: #{dem_localization_forward.1} parent=0 // pred_fallthru
    _
  // Predicated region
  $region10: #{dem_localization_forward.1} parent=0 // pred_check
    _
  $region11: #{dem_localization_forward.1} parent=0 // pred_check_branch
    %22 = sbr.rel (0) target = $region13
  $region12: #{dem_localization_forward.1} parent=0 // pred_region
    _
  $region13: #{dem_localization_forward.1} parent=0 // pred_fallthru
    _
  // Predicated region
  $region14: #{dem_localization_forward.1} parent=0 // pred_check
    _
  $region15: #{dem_localization_forward.1} parent=0 // pred_check_branch
    %24 = sbr.rel (0) target = $region17
  $region16: #{dem_localization_forward.1} parent=0 // pred_region
    _
  $region17: #{dem_localization_forward.1} parent=0 // pred_fallthru
    _
  // Predicated region
  $region18: #{dem_localization_forward.1} parent=0 // pred_check
    _
  $region19: #{dem_localization_forward.1} parent=0 // pred_check_branch
    %26 = sbr.rel (0) target = $region21
  $region20: #{dem_localization_forward.1} parent=0 // pred_region
    _
  $region21: #{dem_localization_forward.1} parent=0 // pred_fallthru
    _
  // Predicated region
  $region22: #{dem_localization_forward.1} parent=0 // pred_check
    _
  $region23: #{dem_localization_forward.1} parent=0 // pred_check_branch
    %28 = sbr.rel (0) target = $region25
  $region24: #{dem_localization_forward.1} parent=0 // pred_region
    _
  $region25: #{dem_localization_forward.1} parent=0 // pred_fallthru
    _
  // Predicated region
  $region26: #{dem_localization_forward.1} parent=0 // pred_check
    _
  $region27: #{dem_localization_forward.1} parent=0 // pred_check_branch
    %30 = sbr.rel (0) target = $region29
  $region28: #{dem_localization_forward.1} parent=0 // pred_region
    _
  $region29: #{dem_localization_forward.1} parent=0 // pred_fallthru
    _
  // Predicated region
  $region30: #{dem_localization_forward.1} parent=0 // pred_check
    _
  $region31: #{dem_localization_forward.1} parent=0 // pred_check_branch
    %32 = sbr.rel (0) target = $region33
  $region32: #{dem_localization_forward.1} parent=0 // pred_region
    _
  $region33: #{dem_localization_forward.1} parent=0 // pred_fallthru
    _
  // Predicated region
  $region34: #{dem_localization_forward.1} parent=0 // pred_check
    _
  $region35: #{dem_localization_forward.1} parent=0 // pred_check_branch
    %34 = sbr.rel (0) target = $region37
  $region36: #{dem_localization_forward.1} parent=0 // pred_region
    _
  $region37: #{dem_localization_forward.1} parent=0 // pred_fallthru
    _
  // Predicated region
  $region38: #{dem_localization_forward.1} parent=0 // pred_check
    _
  $region39: #{dem_localization_forward.1} parent=0 // pred_check_branch
    %36 = sbr.rel (0) target = $region41
  $region40: #{dem_localization_forward.1} parent=0 // pred_region
    _
  $region41: #{dem_localization_forward.1} parent=0 // pred_fallthru
    _
  // Predicated region
  $region42: #{dem_localization_forward.1} parent=0 // pred_check
    _
  $region43: #{dem_localization_forward.1} parent=0 // pred_check_branch
    %38 = sbr.rel (0) target = $region45
  $region44: #{dem_localization_forward.1} parent=0 // pred_region
    _
  $region45: #{dem_localization_forward.1} parent=0 // pred_fallthru
    _
  // Predicated region
  $region46: #{dem_localization_forward.1} parent=0 // pred_check
    _
  $region47: #{dem_localization_forward.1} parent=0 // pred_check_branch
    %40 = sbr.rel (0) target = $region49
  $region48: #{dem_localization_forward.1} parent=0 // pred_region
    _
  $region49: #{dem_localization_forward.1} parent=0 // pred_fallthru
    _
  %v42 = vld [vmem:[%s0] sm:$0xf]
  %v43 = vld [vmem:[%s0 + $0x4] sm:$0xf]
  %v44 = vld [vmem:[%s1] sm:$0xf]
  %v45 = vld [vmem:[%s1 + $0x4] sm:$0xf]
  %v46 = vld [vmem:[%s9] ss:$8 sm:$0xf]
  %s47 = scalar_lea.vmem %s9, 1
  %v48 = vld [vmem:[%s47] ss:$8 sm:$0xf]
  %s49 = scalar_lea.vmem %s9, 2
  %v50 = vld [vmem:[%s49] ss:$8 sm:$0xf]
  %s51 = scalar_lea.vmem %s9, 3
  %v52 = vld [vmem:[%s51] ss:$8 sm:$0xf]
  %v53 = vld [vmem:[%s9 + $0x4] ss:$0 sm:$0xff]
  %v54 = vld [vmem:[%s9 + $0x5] ss:$0 sm:$0xff]
  %v55 = vld [vmem:[%s9 + $0x6] ss:$0 sm:$0xff]
  %v58 = vunpack.c.l.b16 %v42
  %v59 = vunpack.c.l.b16 %v43
  %v60 = vpack.c.b16 %v59, %v58
  %v63 = vunpack.c.l.b16 %v44
  %v64 = vunpack.c.l.b16 %v45
  %v65 = vpack.c.b16 %v64, %v63
  %vm67 = vcmask 130048
  %v69 = vsel %vm67, %v60, 0
  %71 = vmatpush.bf16.msra.mxu0 0
  %72 = vmatpush.bf16.msra.mxu0 0
  %73 = vmatpush.bf16.msra.mxu0 0
  %74 = vmatpush.bf16.msra.mxu0 0
  %75 = vmatpush.bf16.msra.mxu0 0
  %76 = vmatpush.bf16.msra.mxu0 0
  %77 = vmatpush.bf16.msra.mxu0 0
  %78 = vmatpush.bf16.msra.mxu0 %v65
  %79 = vmatmul.bf16.gmra.mxu0 %v69
  %v80 = vpop.f32.mrf.mxu0
  %v81 = vadd.f32 0.0, %v80
  %v82 = vpop.f32.mrf.mxu0
  %v83 = vadd.f32 0.0, %v82
  %84 = vdwg.mxu0
  %v85 = vpack.c.bf16 %v83, %v81
  %v86 = vld [vmem:[%s2] sm:$0xff]
  %v87 = vld [vmem:[%s2 + $0x8] sm:$0xff]
  %v88 = vld [vmem:[%s2 + $0x10] sm:$0xff]
  %v89 = vld [vmem:[%s2 + $0x18] sm:$0xff]
  %v90 = vld [vmem:[%s2 + $0x20] sm:$0xff]
  %v91 = vld [vmem:[%s2 + $0x28] sm:$0xff]
  %v92 = vld [vmem:[%s2 + $0x30] sm:$0xff]
  %v93 = vld [vmem:[%s2 + $0x38] sm:$0xff]
  %v95 = vperm.slane %v46, 0
  %v96 = vperm.slane %v46, 1
  %v97 = vperm.slane %v46, 2
  %v98 = vperm.slane %v46, 3
  %v111 = vunpack.c.l.b16 %v86
  %v112 = vunpack.c.h.b16 %v86
  %v113 = vunpack.c.l.b16 %v87
  %v114 = vunpack.c.h.b16 %v87
  %v115 = vunpack.c.l.b16 %v88
  %v116 = vunpack.c.h.b16 %v88
  %v117 = vunpack.c.l.b16 %v89
  %v118 = vunpack.c.h.b16 %v89
  %v119 = vunpack.c.l.b16 %v90
  %v120 = vunpack.c.h.b16 %v90
  %v121 = vunpack.c.l.b16 %v91
  %v122 = vunpack.c.h.b16 %v91
  %v123 = vunpack.c.l.b16 %v92
  %v124 = vunpack.c.h.b16 %v92
  %v125 = vunpack.c.l.b16 %v93
  %v126 = vunpack.c.h.b16 %v93
  %v127 = vpack.c.b16 %v115, %v111
  %v128 = vpack.c.b16 %v116, %v112
  %v129 = vpack.c.b16 %v117, %v113
  %v130 = vpack.c.b16 %v118, %v114
  %v131 = vpack.c.b16 %v123, %v119
  %v132 = vpack.c.b16 %v124, %v120
  %v133 = vpack.c.b16 %v125, %v121
  %v134 = vpack.c.b16 %v126, %v122
  %vm143 = vcmask 261120
  %v145 = vsel %vm143, %v85, 0
  %147 = vmatpush.bf16.msra.mxu0 0
  %148 = vmatpush.bf16.msra.mxu0 0
  %149 = vmatpush.bf16.msra.mxu0 0
  %150 = vmatpush.bf16.msra.mxu0 0
  %151 = vmatpush.bf16.msra.mxu0 0
  %152 = vmatpush.bf16.msra.mxu0 0
  %153 = vmatpush.bf16.msra.mxu0 %v131
  %154 = vmatpush.bf16.msra.mxu0 %v127
  %155 = vmatmul.bf16.gmra.mxu0 %v145
  %v156 = vpop.f32.mrf.mxu0
  %v157 = vadd.f32 %v95, %v156
  %v158 = vpop.f32.mrf.mxu0
  %v159 = vadd.f32 %v95, %v158
  %160 = vdwg.mxu0
  %161 = vmatpush.bf16.msra.mxu0 0
  %162 = vmatpush.bf16.msra.mxu0 0
  %163 = vmatpush.bf16.msra.mxu0 0
  %164 = vmatpush.bf16.msra.mxu0 0
  %165 = vmatpush.bf16.msra.mxu0 0
  %166 = vmatpush.bf16.msra.mxu0 0
  %167 = vmatpush.bf16.msra.mxu0 %v132
  %168 = vmatpush.bf16.msra.mxu0 %v128
  %169 = vmatmul.bf16.gmra.mxu0 %v145
  %v170 = vpop.f32.mrf.mxu0
  %v171 = vadd.f32 %v96, %v170
  %v172 = vpop.f32.mrf.mxu0
  %v173 = vadd.f32 %v96, %v172
  %174 = vdwg.mxu0
  %175 = vmatpush.bf16.msra.mxu0 0
  %176 = vmatpush.bf16.msra.mxu0 0
  %177 = vmatpush.bf16.msra.mxu0 0
  %178 = vmatpush.bf16.msra.mxu0 0
  %179 = vmatpush.bf16.msra.mxu0 0
  %180 = vmatpush.bf16.msra.mxu0 0
  %181 = vmatpush.bf16.msra.mxu0 %v133
  %182 = vmatpush.bf16.msra.mxu0 %v129
  %183 = vmatmul.bf16.gmra.mxu0 %v145
  %v184 = vpop.f32.mrf.mxu0
  %v185 = vadd.f32 %v97, %v184
  %v186 = vpop.f32.mrf.mxu0
  %v187 = vadd.f32 %v97, %v186
  %188 = vdwg.mxu0
  %189 = vmatpush.bf16.msra.mxu0 0
  %190 = vmatpush.bf16.msra.mxu0 0
  %191 = vmatpush.bf16.msra.mxu0 0
  %192 = vmatpush.bf16.msra.mxu0 0
  %193 = vmatpush.bf16.msra.mxu0 0
  %194 = vmatpush.bf16.msra.mxu0 0
  %195 = vmatpush.bf16.msra.mxu0 %v134
  %196 = vmatpush.bf16.msra.mxu0 %v130
  %197 = vmatmul.bf16.gmra.mxu0 %v145
  %v198 = vpop.f32.mrf.mxu0
  %v199 = vadd.f32 %v98, %v198
  %v200 = vpop.f32.mrf.mxu0
  %v201 = vadd.f32 %v98, %v200
  %202 = vdwg.mxu0
  %v203 = vmax.f32 %v157, 0.0
  %v204 = vmax.f32 %v171, 0.0
  %v205 = vmax.f32 %v185, 0.0
  %v206 = vmax.f32 %v199, 0.0
  %v207 = vmax.f32 %v159, 0.0
  %v208 = vmax.f32 %v173, 0.0
  %v209 = vmax.f32 %v187, 0.0
  %v210 = vmax.f32 %v201, 0.0
  %v211 = vpack.c.bf16 %v207, %v203
  %v212 = vpack.c.bf16 %v208, %v204
  %v213 = vpack.c.bf16 %v209, %v205
  %v214 = vpack.c.bf16 %v210, %v206
  %v215 = vld [vmem:[%s3] sm:$0xff]
  %v216 = vld [vmem:[%s3 + $0x8] sm:$0xff]
  %v217 = vld [vmem:[%s3 + $0x10] sm:$0xff]
  %v218 = vld [vmem:[%s3 + $0x18] sm:$0xff]
  %v219 = vld [vmem:[%s3 + $0x20] sm:$0xff]
  %v220 = vld [vmem:[%s3 + $0x28] sm:$0xff]
  %v221 = vld [vmem:[%s3 + $0x30] sm:$0xff]
  %v222 = vld [vmem:[%s3 + $0x38] sm:$0xff]
  %v223 = vld [vmem:[%s3 + $0x40] sm:$0xff]
  %v224 = vld [vmem:[%s3 + $0x48] sm:$0xff]
  %v225 = vld [vmem:[%s3 + $0x50] sm:$0xff]
  %v226 = vld [vmem:[%s3 + $0x58] sm:$0xff]
  %v227 = vld [vmem:[%s3 + $0x60] sm:$0xff]
  %v228 = vld [vmem:[%s3 + $0x68] sm:$0xff]
  %v229 = vld [vmem:[%s3 + $0x70] sm:$0xff]
  %v230 = vld [vmem:[%s3 + $0x78] sm:$0xff]
  %v231 = vld [vmem:[%s3 + $0x80] sm:$0xff]
  %v232 = vld [vmem:[%s3 + $0x88] sm:$0xff]
  %v233 = vld [vmem:[%s3 + $0x90] sm:$0xff]
  %v234 = vld [vmem:[%s3 + $0x98] sm:$0xff]
  %v235 = vld [vmem:[%s3 + $0xa0] sm:$0xff]
  %v236 = vld [vmem:[%s3 + $0xa8] sm:$0xff]
  %v237 = vld [vmem:[%s3 + $0xb0] sm:$0xff]
  %v238 = vld [vmem:[%s3 + $0xb8] sm:$0xff]
  %v239 = vld [vmem:[%s3 + $0xc0] sm:$0xff]
  %v240 = vld [vmem:[%s3 + $0xc8] sm:$0xff]
  %v241 = vld [vmem:[%s3 + $0xd0] sm:$0xff]
  %v242 = vld [vmem:[%s3 + $0xd8] sm:$0xff]
  %v243 = vld [vmem:[%s3 + $0xe0] sm:$0xff]
  %v244 = vld [vmem:[%s3 + $0xe8] sm:$0xff]
  %v245 = vld [vmem:[%s3 + $0xf0] sm:$0xff]
  %v246 = vld [vmem:[%s3 + $0xf8] sm:$0xff]
  %v247 = vld [vmem:[%s3 + $0x100] sm:$0xff]
  %v248 = vld [vmem:[%s3 + $0x108] sm:$0xff]
  %v249 = vld [vmem:[%s3 + $0x110] sm:$0xff]
  %v250 = vld [vmem:[%s3 + $0x118] sm:$0xff]
  %v251 = vld [vmem:[%s3 + $0x120] sm:$0xff]
  %v252 = vld [vmem:[%s3 + $0x128] sm:$0xff]
  %v253 = vld [vmem:[%s3 + $0x130] sm:$0xff]
  %v254 = vld [vmem:[%s3 + $0x138] sm:$0xff]
  %v255 = vld [vmem:[%s3 + $0x140] sm:$0xff]
  %v256 = vld [vmem:[%s3 + $0x148] sm:$0xff]
  %v257 = vld [vmem:[%s3 + $0x150] sm:$0xff]
  %v258 = vld [vmem:[%s3 + $0x158] sm:$0xff]
  %v259 = vld [vmem:[%s3 + $0x160] sm:$0xff]
  %v260 = vld [vmem:[%s3 + $0x168] sm:$0xff]
  %v261 = vld [vmem:[%s3 + $0x170] sm:$0xff]
  %v262 = vld [vmem:[%s3 + $0x178] sm:$0xff]
  %v263 = vld [vmem:[%s3 + $0x180] sm:$0xff]
  %v264 = vld [vmem:[%s3 + $0x188] sm:$0xff]
  %v265 = vld [vmem:[%s3 + $0x190] sm:$0xff]
  %v266 = vld [vmem:[%s3 + $0x198] sm:$0xff]
  %v267 = vld [vmem:[%s3 + $0x1a0] sm:$0xff]
  %v268 = vld [vmem:[%s3 + $0x1a8] sm:$0xff]
  %v269 = vld [vmem:[%s3 + $0x1b0] sm:$0xff]
  %v270 = vld [vmem:[%s3 + $0x1b8] sm:$0xff]
  %v271 = vld [vmem:[%s3 + $0x1c0] sm:$0xff]
  %v272 = vld [vmem:[%s3 + $0x1c8] sm:$0xff]
  %v273 = vld [vmem:[%s3 + $0x1d0] sm:$0xff]
  %v274 = vld [vmem:[%s3 + $0x1d8] sm:$0xff]
  %v275 = vld [vmem:[%s3 + $0x1e0] sm:$0xff]
  %v276 = vld [vmem:[%s3 + $0x1e8] sm:$0xff]
  %v277 = vld [vmem:[%s3 + $0x1f0] sm:$0xff]
  %v278 = vld [vmem:[%s3 + $0x1f8] sm:$0xff]
  %v279 = vld [vmem:[%s3 + $0x200] sm:$0xff]
  %v280 = vld [vmem:[%s3 + $0x208] sm:$0xff]
  %v281 = vld [vmem:[%s3 + $0x210] sm:$0xff]
  %v282 = vld [vmem:[%s3 + $0x218] sm:$0xff]
  %v283 = vld [vmem:[%s3 + $0x220] sm:$0xff]
  %v284 = vld [vmem:[%s3 + $0x228] sm:$0xff]
  %v285 = vld [vmem:[%s3 + $0x230] sm:$0xff]
  %v286 = vld [vmem:[%s3 + $0x238] sm:$0xff]
  %v287 = vld [vmem:[%s3 + $0x240] sm:$0xff]
  %v288 = vld [vmem:[%s3 + $0x248] sm:$0xff]
  %v289 = vld [vmem:[%s3 + $0x250] sm:$0xff]
  %v290 = vld [vmem:[%s3 + $0x258] sm:$0xff]
  %v291 = vld [vmem:[%s3 + $0x260] sm:$0xff]
  %v292 = vld [vmem:[%s3 + $0x268] sm:$0xff]
  %v293 = vld [vmem:[%s3 + $0x270] sm:$0xff]
  %v294 = vld [vmem:[%s3 + $0x278] sm:$0xff]
  %v295 = vld [vmem:[%s3 + $0x280] sm:$0xff]
  %v296 = vld [vmem:[%s3 + $0x288] sm:$0xff]
  %v297 = vld [vmem:[%s3 + $0x290] sm:$0xff]
  %v298 = vld [vmem:[%s3 + $0x298] sm:$0xff]
  %v299 = vld [vmem:[%s3 + $0x2a0] sm:$0xff]
  %v300 = vld [vmem:[%s3 + $0x2a8] sm:$0xff]
  %v301 = vld [vmem:[%s3 + $0x2b0] sm:$0xff]
  %v302 = vld [vmem:[%s3 + $0x2b8] sm:$0xff]
  %v303 = vld [vmem:[%s3 + $0x2c0] sm:$0xff]
  %v304 = vld [vmem:[%s3 + $0x2c8] sm:$0xff]
  %v305 = vld [vmem:[%s3 + $0x2d0] sm:$0xff]
  %v306 = vld [vmem:[%s3 + $0x2d8] sm:$0xff]
  %v307 = vld [vmem:[%s3 + $0x2e0] sm:$0xff]
  %v308 = vld [vmem:[%s3 + $0x2e8] sm:$0xff]
  %v309 = vld [vmem:[%s3 + $0x2f0] sm:$0xff]
  %v310 = vld [vmem:[%s3 + $0x2f8] sm:$0xff]
  %v311 = vld [vmem:[%s3 + $0x300] sm:$0xff]
  %v312 = vld [vmem:[%s3 + $0x308] sm:$0xff]
  %v313 = vld [vmem:[%s3 + $0x310] sm:$0xff]
  %v314 = vld [vmem:[%s3 + $0x318] sm:$0xff]
  %v315 = vld [vmem:[%s3 + $0x320] sm:$0xff]
  %v316 = vld [vmem:[%s3 + $0x328] sm:$0xff]
  %v317 = vld [vmem:[%s3 + $0x330] sm:$0xff]
  %v318 = vld [vmem:[%s3 + $0x338] sm:$0xff]
  %v319 = vld [vmem:[%s3 + $0x340] sm:$0xff]
  %v320 = vld [vmem:[%s3 + $0x348] sm:$0xff]
  %v321 = vld [vmem:[%s3 + $0x350] sm:$0xff]
  %v322 = vld [vmem:[%s3 + $0x358] sm:$0xff]
  %v323 = vld [vmem:[%s3 + $0x360] sm:$0xff]
  %v324 = vld [vmem:[%s3 + $0x368] sm:$0xff]
  %v325 = vld [vmem:[%s3 + $0x370] sm:$0xff]
  %v326 = vld [vmem:[%s3 + $0x378] sm:$0xff]
  %v327 = vld [vmem:[%s3 + $0x380] sm:$0xff]
  %v328 = vld [vmem:[%s3 + $0x388] sm:$0xff]
  %v329 = vld [vmem:[%s3 + $0x390] sm:$0xff]
  %v330 = vld [vmem:[%s3 + $0x398] sm:$0xff]
  %v331 = vld [vmem:[%s3 + $0x3a0] sm:$0xff]
  %v332 = vld [vmem:[%s3 + $0x3a8] sm:$0xff]
  %v333 = vld [vmem:[%s3 + $0x3b0] sm:$0xff]
  %v334 = vld [vmem:[%s3 + $0x3b8] sm:$0xff]
  %v335 = vld [vmem:[%s3 + $0x3c0] sm:$0xff]
  %v336 = vld [vmem:[%s3 + $0x3c8] sm:$0xff]
  %v337 = vld [vmem:[%s3 + $0x3d0] sm:$0xff]
  %v338 = vld [vmem:[%s3 + $0x3d8] sm:$0xff]
  %v339 = vld [vmem:[%s3 + $0x3e0] sm:$0xff]
  %v340 = vld [vmem:[%s3 + $0x3e8] sm:$0xff]
  %v341 = vld [vmem:[%s3 + $0x3f0] sm:$0xff]
  %v342 = vld [vmem:[%s3 + $0x3f8] sm:$0xff]
  %v344 = vperm.slane %v48, 0
  %v345 = vperm.slane %v48, 1
  %v346 = vperm.slane %v48, 2
  %v347 = vperm.slane %v48, 3
  %v480 = vunpack.c.l.b16 %v215
  %v481 = vunpack.c.h.b16 %v215
  %v482 = vunpack.c.l.b16 %v216
  %v483 = vunpack.c.h.b16 %v216
  %v484 = vunpack.c.l.b16 %v217
  %v485 = vunpack.c.h.b16 %v217
  %v486 = vunpack.c.l.b16 %v218
  %v487 = vunpack.c.h.b16 %v218
  %v488 = vunpack.c.l.b16 %v219
  %v489 = vunpack.c.h.b16 %v219
  %v490 = vunpack.c.l.b16 %v220
  %v491 = vunpack.c.h.b16 %v220
  %v492 = vunpack.c.l.b16 %v221
  %v493 = vunpack.c.h.b16 %v221
  %v494 = vunpack.c.l.b16 %v222
  %v495 = vunpack.c.h.b16 %v222
  %v496 = vunpack.c.l.b16 %v223
  %v497 = vunpack.c.h.b16 %v223
  %v498 = vunpack.c.l.b16 %v224
  %v499 = vunpack.c.h.b16 %v224
  %v500 = vunpack.c.l.b16 %v225
  %v501 = vunpack.c.h.b16 %v225
  %v502 = vunpack.c.l.b16 %v226
  %v503 = vunpack.c.h.b16 %v226
  %v504 = vunpack.c.l.b16 %v227
  %v505 = vunpack.c.h.b16 %v227
  %v506 = vunpack.c.l.b16 %v228
  %v507 = vunpack.c.h.b16 %v228
  %v508 = vunpack.c.l.b16 %v229
  %v509 = vunpack.c.h.b16 %v229
  %v510 = vunpack.c.l.b16 %v230
  %v511 = vunpack.c.h.b16 %v230
  %v512 = vunpack.c.l.b16 %v231
  %v513 = vunpack.c.h.b16 %v231
  %v514 = vunpack.c.l.b16 %v232
  %v515 = vunpack.c.h.b16 %v232
  %v516 = vunpack.c.l.b16 %v233
  %v517 = vunpack.c.h.b16 %v233
  %v518 = vunpack.c.l.b16 %v234
  %v519 = vunpack.c.h.b16 %v234
  %v520 = vunpack.c.l.b16 %v235
  %v521 = vunpack.c.h.b16 %v235
  %v522 = vunpack.c.l.b16 %v236
  %v523 = vunpack.c.h.b16 %v236
  %v524 = vunpack.c.l.b16 %v237
  %v525 = vunpack.c.h.b16 %v237
  %v526 = vunpack.c.l.b16 %v238
  %v527 = vunpack.c.h.b16 %v238
  %v528 = vunpack.c.l.b16 %v239
  %v529 = vunpack.c.h.b16 %v239
  %v530 = vunpack.c.l.b16 %v240
  %v531 = vunpack.c.h.b16 %v240
  %v532 = vunpack.c.l.b16 %v241
  %v533 = vunpack.c.h.b16 %v241
  %v534 = vunpack.c.l.b16 %v242
  %v535 = vunpack.c.h.b16 %v242
  %v536 = vunpack.c.l.b16 %v243
  %v537 = vunpack.c.h.b16 %v243
  %v538 = vunpack.c.l.b16 %v244
  %v539 = vunpack.c.h.b16 %v244
  %v540 = vunpack.c.l.b16 %v245
  %v541 = vunpack.c.h.b16 %v245
  %v542 = vunpack.c.l.b16 %v246
  %v543 = vunpack.c.h.b16 %v246
  %v544 = vunpack.c.l.b16 %v247
  %v545 = vunpack.c.h.b16 %v247
  %v546 = vunpack.c.l.b16 %v248
  %v547 = vunpack.c.h.b16 %v248
  %v548 = vunpack.c.l.b16 %v249
  %v549 = vunpack.c.h.b16 %v249
  %v550 = vunpack.c.l.b16 %v250
  %v551 = vunpack.c.h.b16 %v250
  %v552 = vunpack.c.l.b16 %v251
  %v553 = vunpack.c.h.b16 %v251
  %v554 = vunpack.c.l.b16 %v252
  %v555 = vunpack.c.h.b16 %v252
  %v556 = vunpack.c.l.b16 %v253
  %v557 = vunpack.c.h.b16 %v253
  %v558 = vunpack.c.l.b16 %v254
  %v559 = vunpack.c.h.b16 %v254
  %v560 = vunpack.c.l.b16 %v255
  %v561 = vunpack.c.h.b16 %v255
  %v562 = vunpack.c.l.b16 %v256
  %v563 = vunpack.c.h.b16 %v256
  %v564 = vunpack.c.l.b16 %v257
  %v565 = vunpack.c.h.b16 %v257
  %v566 = vunpack.c.l.b16 %v258
  %v567 = vunpack.c.h.b16 %v258
  %v568 = vunpack.c.l.b16 %v259
  %v569 = vunpack.c.h.b16 %v259
  %v570 = vunpack.c.l.b16 %v260
  %v571 = vunpack.c.h.b16 %v260
  %v572 = vunpack.c.l.b16 %v261
  %v573 = vunpack.c.h.b16 %v261
  %v574 = vunpack.c.l.b16 %v262
  %v575 = vunpack.c.h.b16 %v262
  %v576 = vunpack.c.l.b16 %v263
  %v577 = vunpack.c.h.b16 %v263
  %v578 = vunpack.c.l.b16 %v264
  %v579 = vunpack.c.h.b16 %v264
  %v580 = vunpack.c.l.b16 %v265
  %v581 = vunpack.c.h.b16 %v265
  %v582 = vunpack.c.l.b16 %v266
  %v583 = vunpack.c.h.b16 %v266
  %v584 = vunpack.c.l.b16 %v267
  %v585 = vunpack.c.h.b16 %v267
  %v586 = vunpack.c.l.b16 %v268
  %v587 = vunpack.c.h.b16 %v268
  %v588 = vunpack.c.l.b16 %v269
  %v589 = vunpack.c.h.b16 %v269
  %v590 = vunpack.c.l.b16 %v270
  %v591 = vunpack.c.h.b16 %v270
  %v592 = vunpack.c.l.b16 %v271
  %v593 = vunpack.c.h.b16 %v271
  %v594 = vunpack.c.l.b16 %v272
  %v595 = vunpack.c.h.b16 %v272
  %v596 = vunpack.c.l.b16 %v273
  %v597 = vunpack.c.h.b16 %v273
  %v598 = vunpack.c.l.b16 %v274
  %v599 = vunpack.c.h.b16 %v274
  %v600 = vunpack.c.l.b16 %v275
  %v601 = vunpack.c.h.b16 %v275
  %v602 = vunpack.c.l.b16 %v276
  %v603 = vunpack.c.h.b16 %v276
  %v604 = vunpack.c.l.b16 %v277
  %v605 = vunpack.c.h.b16 %v277
  %v606 = vunpack.c.l.b16 %v278
  %v607 = vunpack.c.h.b16 %v278
  %v608 = vunpack.c.l.b16 %v279
  %v609 = vunpack.c.h.b16 %v279
  %v610 = vunpack.c.l.b16 %v280
  %v611 = vunpack.c.h.b16 %v280
  %v612 = vunpack.c.l.b16 %v281
  %v613 = vunpack.c.h.b16 %v281
  %v614 = vunpack.c.l.b16 %v282
  %v615 = vunpack.c.h.b16 %v282
  %v616 = vunpack.c.l.b16 %v283
  %v617 = vunpack.c.h.b16 %v283
  %v618 = vunpack.c.l.b16 %v284
  %v619 = vunpack.c.h.b16 %v284
  %v620 = vunpack.c.l.b16 %v285
  %v621 = vunpack.c.h.b16 %v285
  %v622 = vunpack.c.l.b16 %v286
  %v623 = vunpack.c.h.b16 %v286
  %v624 = vunpack.c.l.b16 %v287
  %v625 = vunpack.c.h.b16 %v287
  %v626 = vunpack.c.l.b16 %v288
  %v627 = vunpack.c.h.b16 %v288
  %v628 = vunpack.c.l.b16 %v289
  %v629 = vunpack.c.h.b16 %v289
  %v630 = vunpack.c.l.b16 %v290
  %v631 = vunpack.c.h.b16 %v290
  %v632 = vunpack.c.l.b16 %v291
  %v633 = vunpack.c.h.b16 %v291
  %v634 = vunpack.c.l.b16 %v292
  %v635 = vunpack.c.h.b16 %v292
  %v636 = vunpack.c.l.b16 %v293
  %v637 = vunpack.c.h.b16 %v293
  %v638 = vunpack.c.l.b16 %v294
  %v639 = vunpack.c.h.b16 %v294
  %v640 = vunpack.c.l.b16 %v295
  %v641 = vunpack.c.h.b16 %v295
  %v642 = vunpack.c.l.b16 %v296
  %v643 = vunpack.c.h.b16 %v296
  %v644 = vunpack.c.l.b16 %v297
  %v645 = vunpack.c.h.b16 %v297
  %v646 = vunpack.c.l.b16 %v298
  %v647 = vunpack.c.h.b16 %v298
  %v648 = vunpack.c.l.b16 %v299
  %v649 = vunpack.c.h.b16 %v299
  %v650 = vunpack.c.l.b16 %v300
  %v651 = vunpack.c.h.b16 %v300
  %v652 = vunpack.c.l.b16 %v301
  %v653 = vunpack.c.h.b16 %v301
  %v654 = vunpack.c.l.b16 %v302
  %v655 = vunpack.c.h.b16 %v302
  %v656 = vunpack.c.l.b16 %v303
  %v657 = vunpack.c.h.b16 %v303
  %v658 = vunpack.c.l.b16 %v304
  %v659 = vunpack.c.h.b16 %v304
  %v660 = vunpack.c.l.b16 %v305
  %v661 = vunpack.c.h.b16 %v305
  %v662 = vunpack.c.l.b16 %v306
  %v663 = vunpack.c.h.b16 %v306
  %v664 = vunpack.c.l.b16 %v307
  %v665 = vunpack.c.h.b16 %v307
  %v666 = vunpack.c.l.b16 %v308
  %v667 = vunpack.c.h.b16 %v308
  %v668 = vunpack.c.l.b16 %v309
  %v669 = vunpack.c.h.b16 %v309
  %v670 = vunpack.c.l.b16 %v310
  %v671 = vunpack.c.h.b16 %v310
  %v672 = vunpack.c.l.b16 %v311
  %v673 = vunpack.c.h.b16 %v311
  %v674 = vunpack.c.l.b16 %v312
  %v675 = vunpack.c.h.b16 %v312
  %v676 = vunpack.c.l.b16 %v313
  %v677 = vunpack.c.h.b16 %v313
  %v678 = vunpack.c.l.b16 %v314
  %v679 = vunpack.c.h.b16 %v314
  %v680 = vunpack.c.l.b16 %v315
  %v681 = vunpack.c.h.b16 %v315
  %v682 = vunpack.c.l.b16 %v316
  %v683 = vunpack.c.h.b16 %v316
  %v684 = vunpack.c.l.b16 %v317
  %v685 = vunpack.c.h.b16 %v317
  %v686 = vunpack.c.l.b16 %v318
  %v687 = vunpack.c.h.b16 %v318
  %v688 = vunpack.c.l.b16 %v319
  %v689 = vunpack.c.h.b16 %v319
  %v690 = vunpack.c.l.b16 %v320
  %v691 = vunpack.c.h.b16 %v320
  %v692 = vunpack.c.l.b16 %v321
  %v693 = vunpack.c.h.b16 %v321
  %v694 = vunpack.c.l.b16 %v322
  %v695 = vunpack.c.h.b16 %v322
  %v696 = vunpack.c.l.b16 %v323
  %v697 = vunpack.c.h.b16 %v323
  %v698 = vunpack.c.l.b16 %v324
  %v699 = vunpack.c.h.b16 %v324
  %v700 = vunpack.c.l.b16 %v325
  %v701 = vunpack.c.h.b16 %v325
  %v702 = vunpack.c.l.b16 %v326
  %v703 = vunpack.c.h.b16 %v326
  %v704 = vunpack.c.l.b16 %v327
  %v705 = vunpack.c.h.b16 %v327
  %v706 = vunpack.c.l.b16 %v328
  %v707 = vunpack.c.h.b16 %v328
  %v708 = vunpack.c.l.b16 %v329
  %v709 = vunpack.c.h.b16 %v329
  %v710 = vunpack.c.l.b16 %v330
  %v711 = vunpack.c.h.b16 %v330
  %v712 = vunpack.c.l.b16 %v331
  %v713 = vunpack.c.h.b16 %v331
  %v714 = vunpack.c.l.b16 %v332
  %v715 = vunpack.c.h.b16 %v332
  %v716 = vunpack.c.l.b16 %v333
  %v717 = vunpack.c.h.b16 %v333
  %v718 = vunpack.c.l.b16 %v334
  %v719 = vunpack.c.h.b16 %v334
  %v720 = vunpack.c.l.b16 %v335
  %v721 = vunpack.c.h.b16 %v335
  %v722 = vunpack.c.l.b16 %v336
  %v723 = vunpack.c.h.b16 %v336
  %v724 = vunpack.c.l.b16 %v337
  %v725 = vunpack.c.h.b16 %v337
  %v726 = vunpack.c.l.b16 %v338
  %v727 = vunpack.c.h.b16 %v338
  %v728 = vunpack.c.l.b16 %v339
  %v729 = vunpack.c.h.b16 %v339
  %v730 = vunpack.c.l.b16 %v340
  %v731 = vunpack.c.h.b16 %v340
  %v732 = vunpack.c.l.b16 %v341
  %v733 = vunpack.c.h.b16 %v341
  %v734 = vunpack.c.l.b16 %v342
  %v735 = vunpack.c.h.b16 %v342
  %v736 = vpack.c.b16 %v484, %v480
  %v737 = vpack.c.b16 %v485, %v481
  %v738 = vpack.c.b16 %v486, %v482
  %v739 = vpack.c.b16 %v487, %v483
  %v740 = vpack.c.b16 %v492, %v488
  %v741 = vpack.c.b16 %v493, %v489
  %v742 = vpack.c.b16 %v494, %v490
  %v743 = vpack.c.b16 %v495, %v491
  %v744 = vpack.c.b16 %v500, %v496
  %v745 = vpack.c.b16 %v501, %v497
  %v746 = vpack.c.b16 %v502, %v498
  %v747 = vpack.c.b16 %v503, %v499
  %v748 = vpack.c.b16 %v508, %v504
  %v749 = vpack.c.b16 %v509, %v505
  %v750 = vpack.c.b16 %v510, %v506
  %v751 = vpack.c.b16 %v511, %v507
  %v752 = vpack.c.b16 %v516, %v512
  %v753 = vpack.c.b16 %v517, %v513
  %v754 = vpack.c.b16 %v518, %v514
  %v755 = vpack.c.b16 %v519, %v515
  %v756 = vpack.c.b16 %v524, %v520
  %v757 = vpack.c.b16 %v525, %v521
  %v758 = vpack.c.b16 %v526, %v522
  %v759 = vpack.c.b16 %v527, %v523
  %v760 = vpack.c.b16 %v532, %v528
  %v761 = vpack.c.b16 %v533, %v529
  %v762 = vpack.c.b16 %v534, %v530
  %v763 = vpack.c.b16 %v535, %v531
  %v764 = vpack.c.b16 %v540, %v536
  %v765 = vpack.c.b16 %v541, %v537
  %v766 = vpack.c.b16 %v542, %v538
  %v767 = vpack.c.b16 %v543, %v539
  %v768 = vpack.c.b16 %v548, %v544
  %v769 = vpack.c.b16 %v549, %v545
  %v770 = vpack.c.b16 %v550, %v546
  %v771 = vpack.c.b16 %v551, %v547
  %v772 = vpack.c.b16 %v556, %v552
  %v773 = vpack.c.b16 %v557, %v553
  %v774 = vpack.c.b16 %v558, %v554
  %v775 = vpack.c.b16 %v559, %v555
  %v776 = vpack.c.b16 %v564, %v560
  %v777 = vpack.c.b16 %v565, %v561
  %v778 = vpack.c.b16 %v566, %v562
  %v779 = vpack.c.b16 %v567, %v563
  %v780 = vpack.c.b16 %v572, %v568
  %v781 = vpack.c.b16 %v573, %v569
  %v782 = vpack.c.b16 %v574, %v570
  %v783 = vpack.c.b16 %v575, %v571
  %v784 = vpack.c.b16 %v580, %v576
  %v785 = vpack.c.b16 %v581, %v577
  %v786 = vpack.c.b16 %v582, %v578
  %v787 = vpack.c.b16 %v583, %v579
  %v788 = vpack.c.b16 %v588, %v584
  %v789 = vpack.c.b16 %v589, %v585
  %v790 = vpack.c.b16 %v590, %v586
  %v791 = vpack.c.b16 %v591, %v587
  %v792 = vpack.c.b16 %v596, %v592
  %v793 = vpack.c.b16 %v597, %v593
  %v794 = vpack.c.b16 %v598, %v594
  %v795 = vpack.c.b16 %v599, %v595
  %v796 = vpack.c.b16 %v604, %v600
  %v797 = vpack.c.b16 %v605, %v601
  %v798 = vpack.c.b16 %v606, %v602
  %v799 = vpack.c.b16 %v607, %v603
  %v800 = vpack.c.b16 %v612, %v608
  %v801 = vpack.c.b16 %v613, %v609
  %v802 = vpack.c.b16 %v614, %v610
  %v803 = vpack.c.b16 %v615, %v611
  %v804 = vpack.c.b16 %v620, %v616
  %v805 = vpack.c.b16 %v621, %v617
  %v806 = vpack.c.b16 %v622, %v618
  %v807 = vpack.c.b16 %v623, %v619
  %v808 = vpack.c.b16 %v628, %v624
  %v809 = vpack.c.b16 %v629, %v625
  %v810 = vpack.c.b16 %v630, %v626
  %v811 = vpack.c.b16 %v631, %v627
  %v812 = vpack.c.b16 %v636, %v632
  %v813 = vpack.c.b16 %v637, %v633
  %v814 = vpack.c.b16 %v638, %v634
  %v815 = vpack.c.b16 %v639, %v635
  %v816 = vpack.c.b16 %v644, %v640
  %v817 = vpack.c.b16 %v645, %v641
  %v818 = vpack.c.b16 %v646, %v642
  %v819 = vpack.c.b16 %v647, %v643
  %v820 = vpack.c.b16 %v652, %v648
  %v821 = vpack.c.b16 %v653, %v649
  %v822 = vpack.c.b16 %v654, %v650
  %v823 = vpack.c.b16 %v655, %v651
  %v824 = vpack.c.b16 %v660, %v656
  %v825 = vpack.c.b16 %v661, %v657
  %v826 = vpack.c.b16 %v662, %v658
  %v827 = vpack.c.b16 %v663, %v659
  %v828 = vpack.c.b16 %v668, %v664
  %v829 = vpack.c.b16 %v669, %v665
  %v830 = vpack.c.b16 %v670, %v666
  %v831 = vpack.c.b16 %v671, %v667
  %v832 = vpack.c.b16 %v676, %v672
  %v833 = vpack.c.b16 %v677, %v673
  %v834 = vpack.c.b16 %v678, %v674
  %v835 = vpack.c.b16 %v679, %v675
  %v836 = vpack.c.b16 %v684, %v680
  %v837 = vpack.c.b16 %v685, %v681
  %v838 = vpack.c.b16 %v686, %v682
  %v839 = vpack.c.b16 %v687, %v683
  %v840 = vpack.c.b16 %v692, %v688
  %v841 = vpack.c.b16 %v693, %v689
  %v842 = vpack.c.b16 %v694, %v690
  %v843 = vpack.c.b16 %v695, %v691
  %v844 = vpack.c.b16 %v700, %v696
  %v845 = vpack.c.b16 %v701, %v697
  %v846 = vpack.c.b16 %v702, %v698
  %v847 = vpack.c.b16 %v703, %v699
  %v848 = vpack.c.b16 %v708, %v704
  %v849 = vpack.c.b16 %v709, %v705
  %v850 = vpack.c.b16 %v710, %v706
  %v851 = vpack.c.b16 %v711, %v707
  %v852 = vpack.c.b16 %v716, %v712
  %v853 = vpack.c.b16 %v717, %v713
  %v854 = vpack.c.b16 %v718, %v714
  %v855 = vpack.c.b16 %v719, %v715
  %v856 = vpack.c.b16 %v724, %v720
  %v857 = vpack.c.b16 %v725, %v721
  %v858 = vpack.c.b16 %v726, %v722
  %v859 = vpack.c.b16 %v727, %v723
  %v860 = vpack.c.b16 %v732, %v728
  %v861 = vpack.c.b16 %v733, %v729
  %v862 = vpack.c.b16 %v734, %v730
  %v863 = vpack.c.b16 %v735, %v731
  %992 = vmatpush.bf16.msra.mxu0 %v764
  %993 = vmatpush.bf16.msra.mxu0 %v760
  %994 = vmatpush.bf16.msra.mxu0 %v756
  %995 = vmatpush.bf16.msra.mxu0 %v752
  %996 = vmatpush.bf16.msra.mxu0 %v748
  %997 = vmatpush.bf16.msra.mxu0 %v744
  %998 = vmatpush.bf16.msra.mxu0 %v740
  %999 = vmatpush.bf16.msra.mxu0 %v736
  %1000 = vmatmul.bf16.gmra.mxu0 %v211
  %v1001 = vpop.f32.mrf.mxu0
  %v1002 = vadd.f32 %v344, %v1001
  %v1003 = vpop.f32.mrf.mxu0
  %v1004 = vadd.f32 %v344, %v1003
  %1005 = vdwg.mxu0
  %1006 = vmatpush.bf16.msra.mxu0 %v796
  %1007 = vmatpush.bf16.msra.mxu0 %v792
  %1008 = vmatpush.bf16.msra.mxu0 %v788
  %1009 = vmatpush.bf16.msra.mxu0 %v784
  %1010 = vmatpush.bf16.msra.mxu0 %v780
  %1011 = vmatpush.bf16.msra.mxu0 %v776
  %1012 = vmatpush.bf16.msra.mxu0 %v772
  %1013 = vmatpush.bf16.msra.mxu0 %v768
  %1014 = vmatmul.bf16.gmra.mxu0 %v212
  %v1015 = vpop.f32.mrf.mxu0
  %v1016 = vadd.f32 %v1002, %v1015
  %v1017 = vpop.f32.mrf.mxu0
  %v1018 = vadd.f32 %v1004, %v1017
  %1019 = vdwg.mxu0
  %1020 = vmatpush.bf16.msra.mxu0 %v828
  %1021 = vmatpush.bf16.msra.mxu0 %v824
  %1022 = vmatpush.bf16.msra.mxu0 %v820
  %1023 = vmatpush.bf16.msra.mxu0 %v816
  %1024 = vmatpush.bf16.msra.mxu0 %v812
  %1025 = vmatpush.bf16.msra.mxu0 %v808
  %1026 = vmatpush.bf16.msra.mxu0 %v804
  %1027 = vmatpush.bf16.msra.mxu0 %v800
  %1028 = vmatmul.bf16.gmra.mxu0 %v213
  %v1029 = vpop.f32.mrf.mxu0
  %v1030 = vadd.f32 %v1016, %v1029
  %v1031 = vpop.f32.mrf.mxu0
  %v1032 = vadd.f32 %v1018, %v1031
  %1033 = vdwg.mxu0
  %1034 = vmatpush.bf16.msra.mxu0 %v860
  %1035 = vmatpush.bf16.msra.mxu0 %v856
  %1036 = vmatpush.bf16.msra.mxu0 %v852
  %1037 = vmatpush.bf16.msra.mxu0 %v848
  %1038 = vmatpush.bf16.msra.mxu0 %v844
  %1039 = vmatpush.bf16.msra.mxu0 %v840
  %1040 = vmatpush.bf16.msra.mxu0 %v836
  %1041 = vmatpush.bf16.msra.mxu0 %v832
  %1042 = vmatmul.bf16.gmra.mxu0 %v214
  %v1043 = vpop.f32.mrf.mxu0
  %v1044 = vadd.f32 %v1030, %v1043
  %v1045 = vpop.f32.mrf.mxu0
  %v1046 = vadd.f32 %v1032, %v1045
  %1047 = vdwg.mxu0
  %1048 = vmatpush.bf16.msra.mxu0 %v765
  %1049 = vmatpush.bf16.msra.mxu0 %v761
  %1050 = vmatpush.bf16.msra.mxu0 %v757
  %1051 = vmatpush.bf16.msra.mxu0 %v753
  %1052 = vmatpush.bf16.msra.mxu0 %v749
  %1053 = vmatpush.bf16.msra.mxu0 %v745
  %1054 = vmatpush.bf16.msra.mxu0 %v741
  %1055 = vmatpush.bf16.msra.mxu0 %v737
  %1056 = vmatmul.bf16.gmra.mxu0 %v211
  %v1057 = vpop.f32.mrf.mxu0
  %v1058 = vadd.f32 %v345, %v1057
  %v1059 = vpop.f32.mrf.mxu0
  %v1060 = vadd.f32 %v345, %v1059
  %1061 = vdwg.mxu0
  %1062 = vmatpush.bf16.msra.mxu0 %v797
  %1063 = vmatpush.bf16.msra.mxu0 %v793
  %1064 = vmatpush.bf16.msra.mxu0 %v789
  %1065 = vmatpush.bf16.msra.mxu0 %v785
  %1066 = vmatpush.bf16.msra.mxu0 %v781
  %1067 = vmatpush.bf16.msra.mxu0 %v777
  %1068 = vmatpush.bf16.msra.mxu0 %v773
  %1069 = vmatpush.bf16.msra.mxu0 %v769
  %1070 = vmatmul.bf16.gmra.mxu0 %v212
  %v1071 = vpop.f32.mrf.mxu0
  %v1072 = vadd.f32 %v1058, %v1071
  %v1073 = vpop.f32.mrf.mxu0
  %v1074 = vadd.f32 %v1060, %v1073
  %1075 = vdwg.mxu0
  %1076 = vmatpush.bf16.msra.mxu0 %v829
  %1077 = vmatpush.bf16.msra.mxu0 %v825
  %1078 = vmatpush.bf16.msra.mxu0 %v821
  %1079 = vmatpush.bf16.msra.mxu0 %v817
  %1080 = vmatpush.bf16.msra.mxu0 %v813
  %1081 = vmatpush.bf16.msra.mxu0 %v809
  %1082 = vmatpush.bf16.msra.mxu0 %v805
  %1083 = vmatpush.bf16.msra.mxu0 %v801
  %1084 = vmatmul.bf16.gmra.mxu0 %v213
  %v1085 = vpop.f32.mrf.mxu0
  %v1086 = vadd.f32 %v1072, %v1085
  %v1087 = vpop.f32.mrf.mxu0
  %v1088 = vadd.f32 %v1074, %v1087
  %1089 = vdwg.mxu0
  %1090 = vmatpush.bf16.msra.mxu0 %v861
  %1091 = vmatpush.bf16.msra.mxu0 %v857
  %1092 = vmatpush.bf16.msra.mxu0 %v853
  %1093 = vmatpush.bf16.msra.mxu0 %v849
  %1094 = vmatpush.bf16.msra.mxu0 %v845
  %1095 = vmatpush.bf16.msra.mxu0 %v841
  %1096 = vmatpush.bf16.msra.mxu0 %v837
  %1097 = vmatpush.bf16.msra.mxu0 %v833
  %1098 = vmatmul.bf16.gmra.mxu0 %v214
  %v1099 = vpop.f32.mrf.mxu0
  %v1100 = vadd.f32 %v1086, %v1099
  %v1101 = vpop.f32.mrf.mxu0
  %v1102 = vadd.f32 %v1088, %v1101
  %1103 = vdwg.mxu0
  %1104 = vmatpush.bf16.msra.mxu0 %v766
  %1105 = vmatpush.bf16.msra.mxu0 %v762
  %1106 = vmatpush.bf16.msra.mxu0 %v758
  %1107 = vmatpush.bf16.msra.mxu0 %v754
  %1108 = vmatpush.bf16.msra.mxu0 %v750
  %1109 = vmatpush.bf16.msra.mxu0 %v746
  %1110 = vmatpush.bf16.msra.mxu0 %v742
  %1111 = vmatpush.bf16.msra.mxu0 %v738
  %1112 = vmatmul.bf16.gmra.mxu0 %v211
  %v1113 = vpop.f32.mrf.mxu0
  %v1114 = vadd.f32 %v346, %v1113
  %v1115 = vpop.f32.mrf.mxu0
  %v1116 = vadd.f32 %v346, %v1115
  %1117 = vdwg.mxu0
  %1118 = vmatpush.bf16.msra.mxu0 %v798
  %1119 = vmatpush.bf16.msra.mxu0 %v794
  %1120 = vmatpush.bf16.msra.mxu0 %v790
  %1121 = vmatpush.bf16.msra.mxu0 %v786
  %1122 = vmatpush.bf16.msra.mxu0 %v782
  %1123 = vmatpush.bf16.msra.mxu0 %v778
  %1124 = vmatpush.bf16.msra.mxu0 %v774
  %1125 = vmatpush.bf16.msra.mxu0 %v770
  %1126 = vmatmul.bf16.gmra.mxu0 %v212
  %v1127 = vpop.f32.mrf.mxu0
  %v1128 = vadd.f32 %v1114, %v1127
  %v1129 = vpop.f32.mrf.mxu0
  %v1130 = vadd.f32 %v1116, %v1129
  %1131 = vdwg.mxu0
  %1132 = vmatpush.bf16.msra.mxu0 %v830
  %1133 = vmatpush.bf16.msra.mxu0 %v826
  %1134 = vmatpush.bf16.msra.mxu0 %v822
  %1135 = vmatpush.bf16.msra.mxu0 %v818
  %1136 = vmatpush.bf16.msra.mxu0 %v814
  %1137 = vmatpush.bf16.msra.mxu0 %v810
  %1138 = vmatpush.bf16.msra.mxu0 %v806
  %1139 = vmatpush.bf16.msra.mxu0 %v802
  %1140 = vmatmul.bf16.gmra.mxu0 %v213
  %v1141 = vpop.f32.mrf.mxu0
  %v1142 = vadd.f32 %v1128, %v1141
  %v1143 = vpop.f32.mrf.mxu0
  %v1144 = vadd.f32 %v1130, %v1143
  %1145 = vdwg.mxu0
  %1146 = vmatpush.bf16.msra.mxu0 %v862
  %1147 = vmatpush.bf16.msra.mxu0 %v858
  %1148 = vmatpush.bf16.msra.mxu0 %v854
  %1149 = vmatpush.bf16.msra.mxu0 %v850
  %1150 = vmatpush.bf16.msra.mxu0 %v846
  %1151 = vmatpush.bf16.msra.mxu0 %v842
  %1152 = vmatpush.bf16.msra.mxu0 %v838
  %1153 = vmatpush.bf16.msra.mxu0 %v834
  %1154 = vmatmul.bf16.gmra.mxu0 %v214
  %v1155 = vpop.f32.mrf.mxu0
  %v1156 = vadd.f32 %v1142, %v1155
  %v1157 = vpop.f32.mrf.mxu0
  %v1158 = vadd.f32 %v1144, %v1157
  %1159 = vdwg.mxu0
  %1160 = vmatpush.bf16.msra.mxu0 %v767
  %1161 = vmatpush.bf16.msra.mxu0 %v763
  %1162 = vmatpush.bf16.msra.mxu0 %v759
  %1163 = vmatpush.bf16.msra.mxu0 %v755
  %1164 = vmatpush.bf16.msra.mxu0 %v751
  %1165 = vmatpush.bf16.msra.mxu0 %v747
  %1166 = vmatpush.bf16.msra.mxu0 %v743
  %1167 = vmatpush.bf16.msra.mxu0 %v739
  %1168 = vmatmul.bf16.gmra.mxu0 %v211
  %v1169 = vpop.f32.mrf.mxu0
  %v1170 = vadd.f32 %v347, %v1169
  %v1171 = vpop.f32.mrf.mxu0
  %v1172 = vadd.f32 %v347, %v1171
  %1173 = vdwg.mxu0
  %1174 = vmatpush.bf16.msra.mxu0 %v799
  %1175 = vmatpush.bf16.msra.mxu0 %v795
  %1176 = vmatpush.bf16.msra.mxu0 %v791
  %1177 = vmatpush.bf16.msra.mxu0 %v787
  %1178 = vmatpush.bf16.msra.mxu0 %v783
  %1179 = vmatpush.bf16.msra.mxu0 %v779
  %1180 = vmatpush.bf16.msra.mxu0 %v775
  %1181 = vmatpush.bf16.msra.mxu0 %v771
  %1182 = vmatmul.bf16.gmra.mxu0 %v212
  %v1183 = vpop.f32.mrf.mxu0
  %v1184 = vadd.f32 %v1170, %v1183
  %v1185 = vpop.f32.mrf.mxu0
  %v1186 = vadd.f32 %v1172, %v1185
  %1187 = vdwg.mxu0
  %1188 = vmatpush.bf16.msra.mxu0 %v831
  %1189 = vmatpush.bf16.msra.mxu0 %v827
  %1190 = vmatpush.bf16.msra.mxu0 %v823
  %1191 = vmatpush.bf16.msra.mxu0 %v819
  %1192 = vmatpush.bf16.msra.mxu0 %v815
  %1193 = vmatpush.bf16.msra.mxu0 %v811
  %1194 = vmatpush.bf16.msra.mxu0 %v807
  %1195 = vmatpush.bf16.msra.mxu0 %v803
  %1196 = vmatmul.bf16.gmra.mxu0 %v213
  %v1197 = vpop.f32.mrf.mxu0
  %v1198 = vadd.f32 %v1184, %v1197
  %v1199 = vpop.f32.mrf.mxu0
  %v1200 = vadd.f32 %v1186, %v1199
  %1201 = vdwg.mxu0
  %1202 = vmatpush.bf16.msra.mxu0 %v863
  %1203 = vmatpush.bf16.msra.mxu0 %v859
  %1204 = vmatpush.bf16.msra.mxu0 %v855
  %1205 = vmatpush.bf16.msra.mxu0 %v851
  %1206 = vmatpush.bf16.msra.mxu0 %v847
  %1207 = vmatpush.bf16.msra.mxu0 %v843
  %1208 = vmatpush.bf16.msra.mxu0 %v839
  %1209 = vmatpush.bf16.msra.mxu0 %v835
  %1210 = vmatmul.bf16.gmra.mxu0 %v214
  %v1211 = vpop.f32.mrf.mxu0
  %v1212 = vadd.f32 %v1198, %v1211
  %v1213 = vpop.f32.mrf.mxu0
  %v1214 = vadd.f32 %v1200, %v1213
  %1215 = vdwg.mxu0
  %v1216 = vmax.f32 %v1044, 0.0
  %v1217 = vmax.f32 %v1100, 0.0
  %v1218 = vmax.f32 %v1156, 0.0
  %v1219 = vmax.f32 %v1212, 0.0
  %v1220 = vmax.f32 %v1046, 0.0
  %v1221 = vmax.f32 %v1102, 0.0
  %v1222 = vmax.f32 %v1158, 0.0
  %v1223 = vmax.f32 %v1214, 0.0
  %v1224 = vpack.c.bf16 %v1220, %v1216
  %v1225 = vpack.c.bf16 %v1221, %v1217
  %v1226 = vpack.c.bf16 %v1222, %v1218
  %v1227 = vpack.c.bf16 %v1223, %v1219
  %1228 = vmatpush.bf16.msra.mxu0 0
  %1229 = vmatpush.bf16.msra.mxu0 0
  %1230 = vmatpush.bf16.msra.mxu0 0
  %1231 = vmatpush.bf16.msra.mxu0 0
  %1232 = vmatpush.bf16.msra.mxu0 0
  %1233 = vmatpush.bf16.msra.mxu0 0
  %1234 = vmatpush.bf16.msra.mxu0 0
  %1235 = vmatpush.bf16.msra.mxu0 %v1224
  %1236 = vmatmul.bf16.gmra.mxu0 %v69
  %v1237 = vpop.f32.mrf.mxu0
  %v1238 = vadd.f32 0.0, %v1237
  %v1239 = vpop.f32.mrf.mxu0
  %v1240 = vadd.f32 0.0, %v1239
  %1241 = vdwg.mxu0
  %1242 = vmatpush.bf16.msra.mxu0 0
  %1243 = vmatpush.bf16.msra.mxu0 0
  %1244 = vmatpush.bf16.msra.mxu0 0
  %1245 = vmatpush.bf16.msra.mxu0 0
  %1246 = vmatpush.bf16.msra.mxu0 0
  %1247 = vmatpush.bf16.msra.mxu0 0
  %1248 = vmatpush.bf16.msra.mxu0 0
  %1249 = vmatpush.bf16.msra.mxu0 %v1225
  %1250 = vmatmul.bf16.gmra.mxu0 %v69
  %v1251 = vpop.f32.mrf.mxu0
  %v1252 = vadd.f32 0.0, %v1251
  %v1253 = vpop.f32.mrf.mxu0
  %v1254 = vadd.f32 0.0, %v1253
  %1255 = vdwg.mxu0
  %1256 = vmatpush.bf16.msra.mxu0 0
  %1257 = vmatpush.bf16.msra.mxu0 0
  %1258 = vmatpush.bf16.msra.mxu0 0
  %1259 = vmatpush.bf16.msra.mxu0 0
  %1260 = vmatpush.bf16.msra.mxu0 0
  %1261 = vmatpush.bf16.msra.mxu0 0
  %1262 = vmatpush.bf16.msra.mxu0 0
  %1263 = vmatpush.bf16.msra.mxu0 %v1226
  %1264 = vmatmul.bf16.gmra.mxu0 %v69
  %v1265 = vpop.f32.mrf.mxu0
  %v1266 = vadd.f32 0.0, %v1265
  %v1267 = vpop.f32.mrf.mxu0
  %v1268 = vadd.f32 0.0, %v1267
  %1269 = vdwg.mxu0
  %1270 = vmatpush.bf16.msra.mxu0 0
  %1271 = vmatpush.bf16.msra.mxu0 0
  %1272 = vmatpush.bf16.msra.mxu0 0
  %1273 = vmatpush.bf16.msra.mxu0 0
  %1274 = vmatpush.bf16.msra.mxu0 0
  %1275 = vmatpush.bf16.msra.mxu0 0
  %1276 = vmatpush.bf16.msra.mxu0 0
  %1277 = vmatpush.bf16.msra.mxu0 %v1227
  %1278 = vmatmul.bf16.gmra.mxu0 %v69
  %v1279 = vpop.f32.mrf.mxu0
  %v1280 = vadd.f32 0.0, %v1279
  %v1281 = vpop.f32.mrf.mxu0
  %v1282 = vadd.f32 0.0, %v1281
  %1283 = vdwg.mxu0
  %v1284 = vpack.c.bf16 %v1240, %v1238
  %v1285 = vpack.c.bf16 %v1254, %v1252
  %v1286 = vpack.c.bf16 %v1268, %v1266
  %v1287 = vpack.c.bf16 %v1282, %v1280
  %v1288 = vld [vmem:[%s4] sm:$0xf]
  %v1289 = vld [vmem:[%s4 + $0x4] sm:$0xf]
  %v1290 = vld [vmem:[%s4 + $0x8] sm:$0xf]
  %v1291 = vld [vmem:[%s4 + $0xc] sm:$0xf]
  %v1292 = vld [vmem:[%s4 + $0x10] sm:$0xf]
  %v1293 = vld [vmem:[%s4 + $0x14] sm:$0xf]
  %v1294 = vld [vmem:[%s4 + $0x18] sm:$0xf]
  %v1295 = vld [vmem:[%s4 + $0x1c] sm:$0xf]
  %v1296 = vld [vmem:[%s4 + $0x20] sm:$0xf]
  %v1297 = vld [vmem:[%s4 + $0x24] sm:$0xf]
  %v1298 = vld [vmem:[%s4 + $0x28] sm:$0xf]
  %v1299 = vld [vmem:[%s4 + $0x2c] sm:$0xf]
  %v1300 = vld [vmem:[%s4 + $0x30] sm:$0xf]
  %v1301 = vld [vmem:[%s4 + $0x34] sm:$0xf]
  %v1302 = vld [vmem:[%s4 + $0x38] sm:$0xf]
  %v1303 = vld [vmem:[%s4 + $0x3c] sm:$0xf]
  %v1304 = vld [vmem:[%s4 + $0x40] sm:$0xf]
  %v1305 = vld [vmem:[%s4 + $0x44] sm:$0xf]
  %v1306 = vld [vmem:[%s4 + $0x48] sm:$0xf]
  %v1307 = vld [vmem:[%s4 + $0x4c] sm:$0xf]
  %v1308 = vld [vmem:[%s4 + $0x50] sm:$0xf]
  %v1309 = vld [vmem:[%s4 + $0x54] sm:$0xf]
  %v1310 = vld [vmem:[%s4 + $0x58] sm:$0xf]
  %v1311 = vld [vmem:[%s4 + $0x5c] sm:$0xf]
  %v1312 = vld [vmem:[%s4 + $0x60] sm:$0xf]
  %v1313 = vld [vmem:[%s4 + $0x64] sm:$0xf]
  %v1314 = vld [vmem:[%s4 + $0x68] sm:$0xf]
  %v1315 = vld [vmem:[%s4 + $0x6c] sm:$0xf]
  %v1316 = vld [vmem:[%s4 + $0x70] sm:$0xf]
  %v1317 = vld [vmem:[%s4 + $0x74] sm:$0xf]
  %v1318 = vld [vmem:[%s4 + $0x78] sm:$0xf]
  %v1319 = vld [vmem:[%s4 + $0x7c] sm:$0xf]
  %v1320 = vld [vmem:[%s4 + $0x80] sm:$0xf]
  %v1321 = vld [vmem:[%s4 + $0x84] sm:$0xf]
  %v1322 = vld [vmem:[%s4 + $0x88] sm:$0xf]
  %v1323 = vld [vmem:[%s4 + $0x8c] sm:$0xf]
  %v1324 = vld [vmem:[%s4 + $0x90] sm:$0xf]
  %v1325 = vld [vmem:[%s4 + $0x94] sm:$0xf]
  %v1326 = vld [vmem:[%s4 + $0x98] sm:$0xf]
  %v1327 = vld [vmem:[%s4 + $0x9c] sm:$0xf]
  %v1328 = vld [vmem:[%s4 + $0xa0] sm:$0xf]
  %v1329 = vld [vmem:[%s4 + $0xa4] sm:$0xf]
  %v1330 = vld [vmem:[%s4 + $0xa8] sm:$0xf]
  %v1331 = vld [vmem:[%s4 + $0xac] sm:$0xf]
  %v1332 = vld [vmem:[%s4 + $0xb0] sm:$0xf]
  %v1333 = vld [vmem:[%s4 + $0xb4] sm:$0xf]
  %v1334 = vld [vmem:[%s4 + $0xb8] sm:$0xf]
  %v1335 = vld [vmem:[%s4 + $0xbc] sm:$0xf]
  %v1336 = vld [vmem:[%s4 + $0xc0] sm:$0xf]
  %v1337 = vld [vmem:[%s4 + $0xc4] sm:$0xf]
  %v1338 = vld [vmem:[%s4 + $0xc8] sm:$0xf]
  %v1339 = vld [vmem:[%s4 + $0xcc] sm:$0xf]
  %v1340 = vld [vmem:[%s4 + $0xd0] sm:$0xf]
  %v1341 = vld [vmem:[%s4 + $0xd4] sm:$0xf]
  %v1342 = vld [vmem:[%s4 + $0xd8] sm:$0xf]
  %v1343 = vld [vmem:[%s4 + $0xdc] sm:$0xf]
  %v1344 = vld [vmem:[%s4 + $0xe0] sm:$0xf]
  %v1345 = vld [vmem:[%s4 + $0xe4] sm:$0xf]
  %v1346 = vld [vmem:[%s4 + $0xe8] sm:$0xf]
  %v1347 = vld [vmem:[%s4 + $0xec] sm:$0xf]
  %v1348 = vld [vmem:[%s4 + $0xf0] sm:$0xf]
  %v1349 = vld [vmem:[%s4 + $0xf4] sm:$0xf]
  %v1350 = vld [vmem:[%s4 + $0xf8] sm:$0xf]
  %v1351 = vld [vmem:[%s4 + $0xfc] sm:$0xf]
  %v1416 = vunpack.c.l.b16 %v1288
  %v1417 = vunpack.c.l.b16 %v1289
  %v1418 = vunpack.c.l.b16 %v1290
  %v1419 = vunpack.c.l.b16 %v1291
  %v1420 = vunpack.c.l.b16 %v1292
  %v1421 = vunpack.c.l.b16 %v1293
  %v1422 = vunpack.c.l.b16 %v1294
  %v1423 = vunpack.c.l.b16 %v1295
  %v1424 = vunpack.c.l.b16 %v1296
  %v1425 = vunpack.c.l.b16 %v1297
  %v1426 = vunpack.c.l.b16 %v1298
  %v1427 = vunpack.c.l.b16 %v1299
  %v1428 = vunpack.c.l.b16 %v1300
  %v1429 = vunpack.c.l.b16 %v1301
  %v1430 = vunpack.c.l.b16 %v1302
  %v1431 = vunpack.c.l.b16 %v1303
  %v1432 = vunpack.c.l.b16 %v1304
  %v1433 = vunpack.c.l.b16 %v1305
  %v1434 = vunpack.c.l.b16 %v1306
  %v1435 = vunpack.c.l.b16 %v1307
  %v1436 = vunpack.c.l.b16 %v1308
  %v1437 = vunpack.c.l.b16 %v1309
  %v1438 = vunpack.c.l.b16 %v1310
  %v1439 = vunpack.c.l.b16 %v1311
  %v1440 = vunpack.c.l.b16 %v1312
  %v1441 = vunpack.c.l.b16 %v1313
  %v1442 = vunpack.c.l.b16 %v1314
  %v1443 = vunpack.c.l.b16 %v1315
  %v1444 = vunpack.c.l.b16 %v1316
  %v1445 = vunpack.c.l.b16 %v1317
  %v1446 = vunpack.c.l.b16 %v1318
  %v1447 = vunpack.c.l.b16 %v1319
  %v1448 = vunpack.c.l.b16 %v1320
  %v1449 = vunpack.c.l.b16 %v1321
  %v1450 = vunpack.c.l.b16 %v1322
  %v1451 = vunpack.c.l.b16 %v1323
  %v1452 = vunpack.c.l.b16 %v1324
  %v1453 = vunpack.c.l.b16 %v1325
  %v1454 = vunpack.c.l.b16 %v1326
  %v1455 = vunpack.c.l.b16 %v1327
  %v1456 = vunpack.c.l.b16 %v1328
  %v1457 = vunpack.c.l.b16 %v1329
  %v1458 = vunpack.c.l.b16 %v1330
  %v1459 = vunpack.c.l.b16 %v1331
  %v1460 = vunpack.c.l.b16 %v1332
  %v1461 = vunpack.c.l.b16 %v1333
  %v1462 = vunpack.c.l.b16 %v1334
  %v1463 = vunpack.c.l.b16 %v1335
  %v1464 = vunpack.c.l.b16 %v1336
  %v1465 = vunpack.c.l.b16 %v1337
  %v1466 = vunpack.c.l.b16 %v1338
  %v1467 = vunpack.c.l.b16 %v1339
  %v1468 = vunpack.c.l.b16 %v1340
  %v1469 = vunpack.c.l.b16 %v1341
  %v1470 = vunpack.c.l.b16 %v1342
  %v1471 = vunpack.c.l.b16 %v1343
  %v1472 = vunpack.c.l.b16 %v1344
  %v1473 = vunpack.c.l.b16 %v1345
  %v1474 = vunpack.c.l.b16 %v1346
  %v1475 = vunpack.c.l.b16 %v1347
  %v1476 = vunpack.c.l.b16 %v1348
  %v1477 = vunpack.c.l.b16 %v1349
  %v1478 = vunpack.c.l.b16 %v1350
  %v1479 = vunpack.c.l.b16 %v1351
  %v1480 = vpack.c.b16 %v1417, %v1416
  %v1481 = vpack.c.b16 %v1419, %v1418
  %v1482 = vpack.c.b16 %v1421, %v1420
  %v1483 = vpack.c.b16 %v1423, %v1422
  %v1484 = vpack.c.b16 %v1425, %v1424
  %v1485 = vpack.c.b16 %v1427, %v1426
  %v1486 = vpack.c.b16 %v1429, %v1428
  %v1487 = vpack.c.b16 %v1431, %v1430
  %v1488 = vpack.c.b16 %v1433, %v1432
  %v1489 = vpack.c.b16 %v1435, %v1434
  %v1490 = vpack.c.b16 %v1437, %v1436
  %v1491 = vpack.c.b16 %v1439, %v1438
  %v1492 = vpack.c.b16 %v1441, %v1440
  %v1493 = vpack.c.b16 %v1443, %v1442
  %v1494 = vpack.c.b16 %v1445, %v1444
  %v1495 = vpack.c.b16 %v1447, %v1446
  %v1496 = vpack.c.b16 %v1449, %v1448
  %v1497 = vpack.c.b16 %v1451, %v1450
  %v1498 = vpack.c.b16 %v1453, %v1452
  %v1499 = vpack.c.b16 %v1455, %v1454
  %v1500 = vpack.c.b16 %v1457, %v1456
  %v1501 = vpack.c.b16 %v1459, %v1458
  %v1502 = vpack.c.b16 %v1461, %v1460
  %v1503 = vpack.c.b16 %v1463, %v1462
  %v1504 = vpack.c.b16 %v1465, %v1464
  %v1505 = vpack.c.b16 %v1467, %v1466
  %v1506 = vpack.c.b16 %v1469, %v1468
  %v1507 = vpack.c.b16 %v1471, %v1470
  %v1508 = vpack.c.b16 %v1473, %v1472
  %v1509 = vpack.c.b16 %v1475, %v1474
  %v1510 = vpack.c.b16 %v1477, %v1476
  %v1511 = vpack.c.b16 %v1479, %v1478
  %1544 = vmatpush.bf16.msra.mxu0 %v1487
  %1545 = vmatpush.bf16.msra.mxu0 %v1486
  %1546 = vmatpush.bf16.msra.mxu0 %v1485
  %1547 = vmatpush.bf16.msra.mxu0 %v1484
  %1548 = vmatpush.bf16.msra.mxu0 %v1483
  %1549 = vmatpush.bf16.msra.mxu0 %v1482
  %1550 = vmatpush.bf16.msra.mxu0 %v1481
  %1551 = vmatpush.bf16.msra.mxu0 %v1480
  %1552 = vmatmul.bf16.gmra.mxu0 %v1284
  %v1553 = vpop.f32.mrf.mxu0
  %v1554 = vadd.f32 %v53, %v1553
  %v1555 = vpop.f32.mrf.mxu0
  %v1556 = vadd.f32 %v53, %v1555
  %1557 = vdwg.mxu0
  %1558 = vmatpush.bf16.msra.mxu0 %v1495
  %1559 = vmatpush.bf16.msra.mxu0 %v1494
  %1560 = vmatpush.bf16.msra.mxu0 %v1493
  %1561 = vmatpush.bf16.msra.mxu0 %v1492
  %1562 = vmatpush.bf16.msra.mxu0 %v1491
  %1563 = vmatpush.bf16.msra.mxu0 %v1490
  %1564 = vmatpush.bf16.msra.mxu0 %v1489
  %1565 = vmatpush.bf16.msra.mxu0 %v1488
  %1566 = vmatmul.bf16.gmra.mxu0 %v1285
  %v1567 = vpop.f32.mrf.mxu0
  %v1568 = vadd.f32 %v1554, %v1567
  %v1569 = vpop.f32.mrf.mxu0
  %v1570 = vadd.f32 %v1556, %v1569
  %1571 = vdwg.mxu0
  %1572 = vmatpush.bf16.msra.mxu0 %v1503
  %1573 = vmatpush.bf16.msra.mxu0 %v1502
  %1574 = vmatpush.bf16.msra.mxu0 %v1501
  %1575 = vmatpush.bf16.msra.mxu0 %v1500
  %1576 = vmatpush.bf16.msra.mxu0 %v1499
  %1577 = vmatpush.bf16.msra.mxu0 %v1498
  %1578 = vmatpush.bf16.msra.mxu0 %v1497
  %1579 = vmatpush.bf16.msra.mxu0 %v1496
  %1580 = vmatmul.bf16.gmra.mxu0 %v1286
  %v1581 = vpop.f32.mrf.mxu0
  %v1582 = vadd.f32 %v1568, %v1581
  %v1583 = vpop.f32.mrf.mxu0
  %v1584 = vadd.f32 %v1570, %v1583
  %1585 = vdwg.mxu0
  %1586 = vmatpush.bf16.msra.mxu0 %v1511
  %1587 = vmatpush.bf16.msra.mxu0 %v1510
  %1588 = vmatpush.bf16.msra.mxu0 %v1509
  %1589 = vmatpush.bf16.msra.mxu0 %v1508
  %1590 = vmatpush.bf16.msra.mxu0 %v1507
  %1591 = vmatpush.bf16.msra.mxu0 %v1506
  %1592 = vmatpush.bf16.msra.mxu0 %v1505
  %1593 = vmatpush.bf16.msra.mxu0 %v1504
  %1594 = vmatmul.bf16.gmra.mxu0 %v1287
  %v1595 = vpop.f32.mrf.mxu0
  %v1596 = vadd.f32 %v1582, %v1595
  %v1597 = vpop.f32.mrf.mxu0
  %v1598 = vadd.f32 %v1584, %v1597
  %1599 = vdwg.mxu0
  %v1600 = vmax.f32 %v1596, 0.0
  %v1601 = vmax.f32 %v1598, 0.0
  %v1602 = vpack.c.bf16 %v1601, %v1600
  %v1603 = vld [vmem:[%s5] sm:$0xf]
  %v1604 = vld [vmem:[%s5 + $0x4] sm:$0xf]
  %v1605 = vld [vmem:[%s5 + $0x8] sm:$0xf]
  %v1606 = vld [vmem:[%s5 + $0xc] sm:$0xf]
  %v1611 = vunpack.c.l.b16 %v1603
  %v1612 = vunpack.c.l.b16 %v1604
  %v1613 = vunpack.c.l.b16 %v1605
  %v1614 = vunpack.c.l.b16 %v1606
  %v1615 = vpack.c.b16 %v1612, %v1611
  %v1616 = vpack.c.b16 %v1614, %v1613
  %v1620 = vsel %vm143, %v1602, 0
  %1622 = vmatpush.bf16.msra.mxu0 0
  %1623 = vmatpush.bf16.msra.mxu0 0
  %1624 = vmatpush.bf16.msra.mxu0 0
  %1625 = vmatpush.bf16.msra.mxu0 0
  %1626 = vmatpush.bf16.msra.mxu0 0
  %1627 = vmatpush.bf16.msra.mxu0 0
  %1628 = vmatpush.bf16.msra.mxu0 %v1616
  %1629 = vmatpush.bf16.msra.mxu0 %v1615
  %1630 = vmatmul.bf16.gmra.mxu0 %v1620
  %v1631 = vpop.f32.mrf.mxu0
  %v1632 = vadd.f32 %v54, %v1631
  %v1633 = vpop.f32.mrf.mxu0
  %v1634 = vadd.f32 %v54, %v1633
  %1635 = vdwg.mxu0
  %v1636 = vpack.c.bf16 %v1634, %v1632
  %1637 = vmatpush.bf16.msra.mxu0 0
  %1638 = vmatpush.bf16.msra.mxu0 0
  %1639 = vmatpush.bf16.msra.mxu0 0
  %1640 = vmatpush.bf16.msra.mxu0 0
  %1641 = vmatpush.bf16.msra.mxu0 0
  %1642 = vmatpush.bf16.msra.mxu0 0
  %1643 = vmatpush.bf16.msra.mxu0 0
  %1644 = vmatpush.bf16.msra.mxu0 %v1636
  %1645 = vmatmul.bf16.gmra.mxu0 %v69
  %v1646 = vpop.f32.mrf.mxu0
  %v1647 = vadd.f32 0.0, %v1646
  %v1648 = vpop.f32.mrf.mxu0
  %v1649 = vadd.f32 0.0, %v1648
  %1650 = vdwg.mxu0
  %v1651 = vpack.c.bf16 %v1649, %v1647
  %v1652 = vld [vmem:[%s6] sm:$0xff]
  %v1653 = vld [vmem:[%s6 + $0x8] sm:$0xff]
  %v1654 = vld [vmem:[%s6 + $0x10] sm:$0xff]
  %v1655 = vld [vmem:[%s6 + $0x18] sm:$0xff]
  %v1656 = vld [vmem:[%s6 + $0x20] sm:$0xff]
  %v1657 = vld [vmem:[%s6 + $0x28] sm:$0xff]
  %v1658 = vld [vmem:[%s6 + $0x30] sm:$0xff]
  %v1659 = vld [vmem:[%s6 + $0x38] sm:$0xff]
  %v1661 = vperm.slane %v50, 0
  %v1662 = vperm.slane %v50, 1
  %v1663 = vperm.slane %v50, 2
  %v1664 = vperm.slane %v50, 3
  %v1677 = vunpack.c.l.b16 %v1652
  %v1678 = vunpack.c.h.b16 %v1652
  %v1679 = vunpack.c.l.b16 %v1653
  %v1680 = vunpack.c.h.b16 %v1653
  %v1681 = vunpack.c.l.b16 %v1654
  %v1682 = vunpack.c.h.b16 %v1654
  %v1683 = vunpack.c.l.b16 %v1655
  %v1684 = vunpack.c.h.b16 %v1655
  %v1685 = vunpack.c.l.b16 %v1656
  %v1686 = vunpack.c.h.b16 %v1656
  %v1687 = vunpack.c.l.b16 %v1657
  %v1688 = vunpack.c.h.b16 %v1657
  %v1689 = vunpack.c.l.b16 %v1658
  %v1690 = vunpack.c.h.b16 %v1658
  %v1691 = vunpack.c.l.b16 %v1659
  %v1692 = vunpack.c.h.b16 %v1659
  %v1693 = vpack.c.b16 %v1681, %v1677
  %v1694 = vpack.c.b16 %v1682, %v1678
  %v1695 = vpack.c.b16 %v1683, %v1679
  %v1696 = vpack.c.b16 %v1684, %v1680
  %v1697 = vpack.c.b16 %v1689, %v1685
  %v1698 = vpack.c.b16 %v1690, %v1686
  %v1699 = vpack.c.b16 %v1691, %v1687
  %v1700 = vpack.c.b16 %v1692, %v1688
  %v1710 = vsel %vm143, %v1651, 0
  %1712 = vmatpush.bf16.msra.mxu0 0
  %1713 = vmatpush.bf16.msra.mxu0 0
  %1714 = vmatpush.bf16.msra.mxu0 0
  %1715 = vmatpush.bf16.msra.mxu0 0
  %1716 = vmatpush.bf16.msra.mxu0 0
  %1717 = vmatpush.bf16.msra.mxu0 0
  %1718 = vmatpush.bf16.msra.mxu0 %v1697
  %1719 = vmatpush.bf16.msra.mxu0 %v1693
  %1720 = vmatmul.bf16.gmra.mxu0 %v1710
  %v1721 = vpop.f32.mrf.mxu0
  %v1722 = vadd.f32 %v1661, %v1721
  %v1723 = vpop.f32.mrf.mxu0
  %v1724 = vadd.f32 %v1661, %v1723
  %1725 = vdwg.mxu0
  %1726 = vmatpush.bf16.msra.mxu0 0
  %1727 = vmatpush.bf16.msra.mxu0 0
  %1728 = vmatpush.bf16.msra.mxu0 0
  %1729 = vmatpush.bf16.msra.mxu0 0
  %1730 = vmatpush.bf16.msra.mxu0 0
  %1731 = vmatpush.bf16.msra.mxu0 0
  %1732 = vmatpush.bf16.msra.mxu0 %v1698
  %1733 = vmatpush.bf16.msra.mxu0 %v1694
  %1734 = vmatmul.bf16.gmra.mxu0 %v1710
  %v1735 = vpop.f32.mrf.mxu0
  %v1736 = vadd.f32 %v1662, %v1735
  %v1737 = vpop.f32.mrf.mxu0
  %v1738 = vadd.f32 %v1662, %v1737
  %1739 = vdwg.mxu0
  %1740 = vmatpush.bf16.msra.mxu0 0
  %1741 = vmatpush.bf16.msra.mxu0 0
  %1742 = vmatpush.bf16.msra.mxu0 0
  %1743 = vmatpush.bf16.msra.mxu0 0
  %1744 = vmatpush.bf16.msra.mxu0 0
  %1745 = vmatpush.bf16.msra.mxu0 0
  %1746 = vmatpush.bf16.msra.mxu0 %v1699
  %1747 = vmatpush.bf16.msra.mxu0 %v1695
  %1748 = vmatmul.bf16.gmra.mxu0 %v1710
  %v1749 = vpop.f32.mrf.mxu0
  %v1750 = vadd.f32 %v1663, %v1749
  %v1751 = vpop.f32.mrf.mxu0
  %v1752 = vadd.f32 %v1663, %v1751
  %1753 = vdwg.mxu0
  %1754 = vmatpush.bf16.msra.mxu0 0
  %1755 = vmatpush.bf16.msra.mxu0 0
  %1756 = vmatpush.bf16.msra.mxu0 0
  %1757 = vmatpush.bf16.msra.mxu0 0
  %1758 = vmatpush.bf16.msra.mxu0 0
  %1759 = vmatpush.bf16.msra.mxu0 0
  %1760 = vmatpush.bf16.msra.mxu0 %v1700
  %1761 = vmatpush.bf16.msra.mxu0 %v1696
  %1762 = vmatmul.bf16.gmra.mxu0 %v1710
  %v1763 = vpop.f32.mrf.mxu0
  %v1764 = vadd.f32 %v1664, %v1763
  %v1765 = vpop.f32.mrf.mxu0
  %v1766 = vadd.f32 %v1664, %v1765
  %1767 = vdwg.mxu0
  %v1768 = vmax.f32 %v1722, 0.0
  %v1769 = vmax.f32 %v1736, 0.0
  %v1770 = vmax.f32 %v1750, 0.0
  %v1771 = vmax.f32 %v1764, 0.0
  %v1772 = vmax.f32 %v1724, 0.0
  %v1773 = vmax.f32 %v1738, 0.0
  %v1774 = vmax.f32 %v1752, 0.0
  %v1775 = vmax.f32 %v1766, 0.0
  %v1776 = vpack.c.bf16 %v1772, %v1768
  %v1777 = vpack.c.bf16 %v1773, %v1769
  %v1778 = vpack.c.bf16 %v1774, %v1770
  %v1779 = vpack.c.bf16 %v1775, %v1771
  %v1780 = vld [vmem:[%s7] sm:$0xff]
  %v1781 = vld [vmem:[%s7 + $0x8] sm:$0xff]
  %v1782 = vld [vmem:[%s7 + $0x10] sm:$0xff]
  %v1783 = vld [vmem:[%s7 + $0x18] sm:$0xff]
  %v1784 = vld [vmem:[%s7 + $0x20] sm:$0xff]
  %v1785 = vld [vmem:[%s7 + $0x28] sm:$0xff]
  %v1786 = vld [vmem:[%s7 + $0x30] sm:$0xff]
  %v1787 = vld [vmem:[%s7 + $0x38] sm:$0xff]
  %v1788 = vld [vmem:[%s7 + $0x40] sm:$0xff]
  %v1789 = vld [vmem:[%s7 + $0x48] sm:$0xff]
  %v1790 = vld [vmem:[%s7 + $0x50] sm:$0xff]
  %v1791 = vld [vmem:[%s7 + $0x58] sm:$0xff]
  %v1792 = vld [vmem:[%s7 + $0x60] sm:$0xff]
  %v1793 = vld [vmem:[%s7 + $0x68] sm:$0xff]
  %v1794 = vld [vmem:[%s7 + $0x70] sm:$0xff]
  %v1795 = vld [vmem:[%s7 + $0x78] sm:$0xff]
  %v1796 = vld [vmem:[%s7 + $0x80] sm:$0xff]
  %v1797 = vld [vmem:[%s7 + $0x88] sm:$0xff]
  %v1798 = vld [vmem:[%s7 + $0x90] sm:$0xff]
  %v1799 = vld [vmem:[%s7 + $0x98] sm:$0xff]
  %v1800 = vld [vmem:[%s7 + $0xa0] sm:$0xff]
  %v1801 = vld [vmem:[%s7 + $0xa8] sm:$0xff]
  %v1802 = vld [vmem:[%s7 + $0xb0] sm:$0xff]
  %v1803 = vld [vmem:[%s7 + $0xb8] sm:$0xff]
  %v1804 = vld [vmem:[%s7 + $0xc0] sm:$0xff]
  %v1805 = vld [vmem:[%s7 + $0xc8] sm:$0xff]
  %v1806 = vld [vmem:[%s7 + $0xd0] sm:$0xff]
  %v1807 = vld [vmem:[%s7 + $0xd8] sm:$0xff]
  %v1808 = vld [vmem:[%s7 + $0xe0] sm:$0xff]
  %v1809 = vld [vmem:[%s7 + $0xe8] sm:$0xff]
  %v1810 = vld [vmem:[%s7 + $0xf0] sm:$0xff]
  %v1811 = vld [vmem:[%s7 + $0xf8] sm:$0xff]
  %v1812 = vld [vmem:[%s7 + $0x100] sm:$0xff]
  %v1813 = vld [vmem:[%s7 + $0x108] sm:$0xff]
  %v1814 = vld [vmem:[%s7 + $0x110] sm:$0xff]
  %v1815 = vld [vmem:[%s7 + $0x118] sm:$0xff]
  %v1816 = vld [vmem:[%s7 + $0x120] sm:$0xff]
  %v1817 = vld [vmem:[%s7 + $0x128] sm:$0xff]
  %v1818 = vld [vmem:[%s7 + $0x130] sm:$0xff]
  %v1819 = vld [vmem:[%s7 + $0x138] sm:$0xff]
  %v1820 = vld [vmem:[%s7 + $0x140] sm:$0xff]
  %v1821 = vld [vmem:[%s7 + $0x148] sm:$0xff]
  %v1822 = vld [vmem:[%s7 + $0x150] sm:$0xff]
  %v1823 = vld [vmem:[%s7 + $0x158] sm:$0xff]
  %v1824 = vld [vmem:[%s7 + $0x160] sm:$0xff]
  %v1825 = vld [vmem:[%s7 + $0x168] sm:$0xff]
  %v1826 = vld [vmem:[%s7 + $0x170] sm:$0xff]
  %v1827 = vld [vmem:[%s7 + $0x178] sm:$0xff]
  %v1828 = vld [vmem:[%s7 + $0x180] sm:$0xff]
  %v1829 = vld [vmem:[%s7 + $0x188] sm:$0xff]
  %v1830 = vld [vmem:[%s7 + $0x190] sm:$0xff]
  %v1831 = vld [vmem:[%s7 + $0x198] sm:$0xff]
  %v1832 = vld [vmem:[%s7 + $0x1a0] sm:$0xff]
  %v1833 = vld [vmem:[%s7 + $0x1a8] sm:$0xff]
  %v1834 = vld [vmem:[%s7 + $0x1b0] sm:$0xff]
  %v1835 = vld [vmem:[%s7 + $0x1b8] sm:$0xff]
  %v1836 = vld [vmem:[%s7 + $0x1c0] sm:$0xff]
  %v1837 = vld [vmem:[%s7 + $0x1c8] sm:$0xff]
  %v1838 = vld [vmem:[%s7 + $0x1d0] sm:$0xff]
  %v1839 = vld [vmem:[%s7 + $0x1d8] sm:$0xff]
  %v1840 = vld [vmem:[%s7 + $0x1e0] sm:$0xff]
  %v1841 = vld [vmem:[%s7 + $0x1e8] sm:$0xff]
  %v1842 = vld [vmem:[%s7 + $0x1f0] sm:$0xff]
  %v1843 = vld [vmem:[%s7 + $0x1f8] sm:$0xff]
  %v1844 = vld [vmem:[%s7 + $0x200] sm:$0xff]
  %v1845 = vld [vmem:[%s7 + $0x208] sm:$0xff]
  %v1846 = vld [vmem:[%s7 + $0x210] sm:$0xff]
  %v1847 = vld [vmem:[%s7 + $0x218] sm:$0xff]
  %v1848 = vld [vmem:[%s7 + $0x220] sm:$0xff]
  %v1849 = vld [vmem:[%s7 + $0x228] sm:$0xff]
  %v1850 = vld [vmem:[%s7 + $0x230] sm:$0xff]
  %v1851 = vld [vmem:[%s7 + $0x238] sm:$0xff]
  %v1852 = vld [vmem:[%s7 + $0x240] sm:$0xff]
  %v1853 = vld [vmem:[%s7 + $0x248] sm:$0xff]
  %v1854 = vld [vmem:[%s7 + $0x250] sm:$0xff]
  %v1855 = vld [vmem:[%s7 + $0x258] sm:$0xff]
  %v1856 = vld [vmem:[%s7 + $0x260] sm:$0xff]
  %v1857 = vld [vmem:[%s7 + $0x268] sm:$0xff]
  %v1858 = vld [vmem:[%s7 + $0x270] sm:$0xff]
  %v1859 = vld [vmem:[%s7 + $0x278] sm:$0xff]
  %v1860 = vld [vmem:[%s7 + $0x280] sm:$0xff]
  %v1861 = vld [vmem:[%s7 + $0x288] sm:$0xff]
  %v1862 = vld [vmem:[%s7 + $0x290] sm:$0xff]
  %v1863 = vld [vmem:[%s7 + $0x298] sm:$0xff]
  %v1864 = vld [vmem:[%s7 + $0x2a0] sm:$0xff]
  %v1865 = vld [vmem:[%s7 + $0x2a8] sm:$0xff]
  %v1866 = vld [vmem:[%s7 + $0x2b0] sm:$0xff]
  %v1867 = vld [vmem:[%s7 + $0x2b8] sm:$0xff]
  %v1868 = vld [vmem:[%s7 + $0x2c0] sm:$0xff]
  %v1869 = vld [vmem:[%s7 + $0x2c8] sm:$0xff]
  %v1870 = vld [vmem:[%s7 + $0x2d0] sm:$0xff]
  %v1871 = vld [vmem:[%s7 + $0x2d8] sm:$0xff]
  %v1872 = vld [vmem:[%s7 + $0x2e0] sm:$0xff]
  %v1873 = vld [vmem:[%s7 + $0x2e8] sm:$0xff]
  %v1874 = vld [vmem:[%s7 + $0x2f0] sm:$0xff]
  %v1875 = vld [vmem:[%s7 + $0x2f8] sm:$0xff]
  %v1876 = vld [vmem:[%s7 + $0x300] sm:$0xff]
  %v1877 = vld [vmem:[%s7 + $0x308] sm:$0xff]
  %v1878 = vld [vmem:[%s7 + $0x310] sm:$0xff]
  %v1879 = vld [vmem:[%s7 + $0x318] sm:$0xff]
  %v1880 = vld [vmem:[%s7 + $0x320] sm:$0xff]
  %v1881 = vld [vmem:[%s7 + $0x328] sm:$0xff]
  %v1882 = vld [vmem:[%s7 + $0x330] sm:$0xff]
  %v1883 = vld [vmem:[%s7 + $0x338] sm:$0xff]
  %v1884 = vld [vmem:[%s7 + $0x340] sm:$0xff]
  %v1885 = vld [vmem:[%s7 + $0x348] sm:$0xff]
  %v1886 = vld [vmem:[%s7 + $0x350] sm:$0xff]
  %v1887 = vld [vmem:[%s7 + $0x358] sm:$0xff]
  %v1888 = vld [vmem:[%s7 + $0x360] sm:$0xff]
  %v1889 = vld [vmem:[%s7 + $0x368] sm:$0xff]
  %v1890 = vld [vmem:[%s7 + $0x370] sm:$0xff]
  %v1891 = vld [vmem:[%s7 + $0x378] sm:$0xff]
  %v1892 = vld [vmem:[%s7 + $0x380] sm:$0xff]
  %v1893 = vld [vmem:[%s7 + $0x388] sm:$0xff]
  %v1894 = vld [vmem:[%s7 + $0x390] sm:$0xff]
  %v1895 = vld [vmem:[%s7 + $0x398] sm:$0xff]
  %v1896 = vld [vmem:[%s7 + $0x3a0] sm:$0xff]
  %v1897 = vld [vmem:[%s7 + $0x3a8] sm:$0xff]
  %v1898 = vld [vmem:[%s7 + $0x3b0] sm:$0xff]
  %v1899 = vld [vmem:[%s7 + $0x3b8] sm:$0xff]
  %v1900 = vld [vmem:[%s7 + $0x3c0] sm:$0xff]
  %v1901 = vld [vmem:[%s7 + $0x3c8] sm:$0xff]
  %v1902 = vld [vmem:[%s7 + $0x3d0] sm:$0xff]
  %v1903 = vld [vmem:[%s7 + $0x3d8] sm:$0xff]
  %v1904 = vld [vmem:[%s7 + $0x3e0] sm:$0xff]
  %v1905 = vld [vmem:[%s7 + $0x3e8] sm:$0xff]
  %v1906 = vld [vmem:[%s7 + $0x3f0] sm:$0xff]
  %v1907 = vld [vmem:[%s7 + $0x3f8] sm:$0xff]
  %v1909 = vperm.slane %v52, 0
  %v1910 = vperm.slane %v52, 1
  %v1911 = vperm.slane %v52, 2
  %v1912 = vperm.slane %v52, 3
  %v2045 = vunpack.c.l.b16 %v1780
  %v2046 = vunpack.c.h.b16 %v1780
  %v2047 = vunpack.c.l.b16 %v1781
  %v2048 = vunpack.c.h.b16 %v1781
  %v2049 = vunpack.c.l.b16 %v1782
  %v2050 = vunpack.c.h.b16 %v1782
  %v2051 = vunpack.c.l.b16 %v1783
  %v2052 = vunpack.c.h.b16 %v1783
  %v2053 = vunpack.c.l.b16 %v1784
  %v2054 = vunpack.c.h.b16 %v1784
  %v2055 = vunpack.c.l.b16 %v1785
  %v2056 = vunpack.c.h.b16 %v1785
  %v2057 = vunpack.c.l.b16 %v1786
  %v2058 = vunpack.c.h.b16 %v1786
  %v2059 = vunpack.c.l.b16 %v1787
  %v2060 = vunpack.c.h.b16 %v1787
  %v2061 = vunpack.c.l.b16 %v1788
  %v2062 = vunpack.c.h.b16 %v1788
  %v2063 = vunpack.c.l.b16 %v1789
  %v2064 = vunpack.c.h.b16 %v1789
  %v2065 = vunpack.c.l.b16 %v1790
  %v2066 = vunpack.c.h.b16 %v1790
  %v2067 = vunpack.c.l.b16 %v1791
  %v2068 = vunpack.c.h.b16 %v1791
  %v2069 = vunpack.c.l.b16 %v1792
  %v2070 = vunpack.c.h.b16 %v1792
  %v2071 = vunpack.c.l.b16 %v1793
  %v2072 = vunpack.c.h.b16 %v1793
  %v2073 = vunpack.c.l.b16 %v1794
  %v2074 = vunpack.c.h.b16 %v1794
  %v2075 = vunpack.c.l.b16 %v1795
  %v2076 = vunpack.c.h.b16 %v1795
  %v2077 = vunpack.c.l.b16 %v1796
  %v2078 = vunpack.c.h.b16 %v1796
  %v2079 = vunpack.c.l.b16 %v1797
  %v2080 = vunpack.c.h.b16 %v1797
  %v2081 = vunpack.c.l.b16 %v1798
  %v2082 = vunpack.c.h.b16 %v1798
  %v2083 = vunpack.c.l.b16 %v1799
  %v2084 = vunpack.c.h.b16 %v1799
  %v2085 = vunpack.c.l.b16 %v1800
  %v2086 = vunpack.c.h.b16 %v1800
  %v2087 = vunpack.c.l.b16 %v1801
  %v2088 = vunpack.c.h.b16 %v1801
  %v2089 = vunpack.c.l.b16 %v1802
  %v2090 = vunpack.c.h.b16 %v1802
  %v2091 = vunpack.c.l.b16 %v1803
  %v2092 = vunpack.c.h.b16 %v1803
  %v2093 = vunpack.c.l.b16 %v1804
  %v2094 = vunpack.c.h.b16 %v1804
  %v2095 = vunpack.c.l.b16 %v1805
  %v2096 = vunpack.c.h.b16 %v1805
  %v2097 = vunpack.c.l.b16 %v1806
  %v2098 = vunpack.c.h.b16 %v1806
  %v2099 = vunpack.c.l.b16 %v1807
  %v2100 = vunpack.c.h.b16 %v1807
  %v2101 = vunpack.c.l.b16 %v1808
  %v2102 = vunpack.c.h.b16 %v1808
  %v2103 = vunpack.c.l.b16 %v1809
  %v2104 = vunpack.c.h.b16 %v1809
  %v2105 = vunpack.c.l.b16 %v1810
  %v2106 = vunpack.c.h.b16 %v1810
  %v2107 = vunpack.c.l.b16 %v1811
  %v2108 = vunpack.c.h.b16 %v1811
  %v2109 = vunpack.c.l.b16 %v1812
  %v2110 = vunpack.c.h.b16 %v1812
  %v2111 = vunpack.c.l.b16 %v1813
  %v2112 = vunpack.c.h.b16 %v1813
  %v2113 = vunpack.c.l.b16 %v1814
  %v2114 = vunpack.c.h.b16 %v1814
  %v2115 = vunpack.c.l.b16 %v1815
  %v2116 = vunpack.c.h.b16 %v1815
  %v2117 = vunpack.c.l.b16 %v1816
  %v2118 = vunpack.c.h.b16 %v1816
  %v2119 = vunpack.c.l.b16 %v1817
  %v2120 = vunpack.c.h.b16 %v1817
  %v2121 = vunpack.c.l.b16 %v1818
  %v2122 = vunpack.c.h.b16 %v1818
  %v2123 = vunpack.c.l.b16 %v1819
  %v2124 = vunpack.c.h.b16 %v1819
  %v2125 = vunpack.c.l.b16 %v1820
  %v2126 = vunpack.c.h.b16 %v1820
  %v2127 = vunpack.c.l.b16 %v1821
  %v2128 = vunpack.c.h.b16 %v1821
  %v2129 = vunpack.c.l.b16 %v1822
  %v2130 = vunpack.c.h.b16 %v1822
  %v2131 = vunpack.c.l.b16 %v1823
  %v2132 = vunpack.c.h.b16 %v1823
  %v2133 = vunpack.c.l.b16 %v1824
  %v2134 = vunpack.c.h.b16 %v1824
  %v2135 = vunpack.c.l.b16 %v1825
  %v2136 = vunpack.c.h.b16 %v1825
  %v2137 = vunpack.c.l.b16 %v1826
  %v2138 = vunpack.c.h.b16 %v1826
  %v2139 = vunpack.c.l.b16 %v1827
  %v2140 = vunpack.c.h.b16 %v1827
  %v2141 = vunpack.c.l.b16 %v1828
  %v2142 = vunpack.c.h.b16 %v1828
  %v2143 = vunpack.c.l.b16 %v1829
  %v2144 = vunpack.c.h.b16 %v1829
  %v2145 = vunpack.c.l.b16 %v1830
  %v2146 = vunpack.c.h.b16 %v1830
  %v2147 = vunpack.c.l.b16 %v1831
  %v2148 = vunpack.c.h.b16 %v1831
  %v2149 = vunpack.c.l.b16 %v1832
  %v2150 = vunpack.c.h.b16 %v1832
  %v2151 = vunpack.c.l.b16 %v1833
  %v2152 = vunpack.c.h.b16 %v1833
  %v2153 = vunpack.c.l.b16 %v1834
  %v2154 = vunpack.c.h.b16 %v1834
  %v2155 = vunpack.c.l.b16 %v1835
  %v2156 = vunpack.c.h.b16 %v1835
  %v2157 = vunpack.c.l.b16 %v1836
  %v2158 = vunpack.c.h.b16 %v1836
  %v2159 = vunpack.c.l.b16 %v1837
  %v2160 = vunpack.c.h.b16 %v1837
  %v2161 = vunpack.c.l.b16 %v1838
  %v2162 = vunpack.c.h.b16 %v1838
  %v2163 = vunpack.c.l.b16 %v1839
  %v2164 = vunpack.c.h.b16 %v1839
  %v2165 = vunpack.c.l.b16 %v1840
  %v2166 = vunpack.c.h.b16 %v1840
  %v2167 = vunpack.c.l.b16 %v1841
  %v2168 = vunpack.c.h.b16 %v1841
  %v2169 = vunpack.c.l.b16 %v1842
  %v2170 = vunpack.c.h.b16 %v1842
  %v2171 = vunpack.c.l.b16 %v1843
  %v2172 = vunpack.c.h.b16 %v1843
  %v2173 = vunpack.c.l.b16 %v1844
  %v2174 = vunpack.c.h.b16 %v1844
  %v2175 = vunpack.c.l.b16 %v1845
  %v2176 = vunpack.c.h.b16 %v1845
  %v2177 = vunpack.c.l.b16 %v1846
  %v2178 = vunpack.c.h.b16 %v1846
  %v2179 = vunpack.c.l.b16 %v1847
  %v2180 = vunpack.c.h.b16 %v1847
  %v2181 = vunpack.c.l.b16 %v1848
  %v2182 = vunpack.c.h.b16 %v1848
  %v2183 = vunpack.c.l.b16 %v1849
  %v2184 = vunpack.c.h.b16 %v1849
  %v2185 = vunpack.c.l.b16 %v1850
  %v2186 = vunpack.c.h.b16 %v1850
  %v2187 = vunpack.c.l.b16 %v1851
  %v2188 = vunpack.c.h.b16 %v1851
  %v2189 = vunpack.c.l.b16 %v1852
  %v2190 = vunpack.c.h.b16 %v1852
  %v2191 = vunpack.c.l.b16 %v1853
  %v2192 = vunpack.c.h.b16 %v1853
  %v2193 = vunpack.c.l.b16 %v1854
  %v2194 = vunpack.c.h.b16 %v1854
  %v2195 = vunpack.c.l.b16 %v1855
  %v2196 = vunpack.c.h.b16 %v1855
  %v2197 = vunpack.c.l.b16 %v1856
  %v2198 = vunpack.c.h.b16 %v1856
  %v2199 = vunpack.c.l.b16 %v1857
  %v2200 = vunpack.c.h.b16 %v1857
  %v2201 = vunpack.c.l.b16 %v1858
  %v2202 = vunpack.c.h.b16 %v1858
  %v2203 = vunpack.c.l.b16 %v1859
  %v2204 = vunpack.c.h.b16 %v1859
  %v2205 = vunpack.c.l.b16 %v1860
  %v2206 = vunpack.c.h.b16 %v1860
  %v2207 = vunpack.c.l.b16 %v1861
  %v2208 = vunpack.c.h.b16 %v1861
  %v2209 = vunpack.c.l.b16 %v1862
  %v2210 = vunpack.c.h.b16 %v1862
  %v2211 = vunpack.c.l.b16 %v1863
  %v2212 = vunpack.c.h.b16 %v1863
  %v2213 = vunpack.c.l.b16 %v1864
  %v2214 = vunpack.c.h.b16 %v1864
  %v2215 = vunpack.c.l.b16 %v1865
  %v2216 = vunpack.c.h.b16 %v1865
  %v2217 = vunpack.c.l.b16 %v1866
  %v2218 = vunpack.c.h.b16 %v1866
  %v2219 = vunpack.c.l.b16 %v1867
  %v2220 = vunpack.c.h.b16 %v1867
  %v2221 = vunpack.c.l.b16 %v1868
  %v2222 = vunpack.c.h.b16 %v1868
  %v2223 = vunpack.c.l.b16 %v1869
  %v2224 = vunpack.c.h.b16 %v1869
  %v2225 = vunpack.c.l.b16 %v1870
  %v2226 = vunpack.c.h.b16 %v1870
  %v2227 = vunpack.c.l.b16 %v1871
  %v2228 = vunpack.c.h.b16 %v1871
  %v2229 = vunpack.c.l.b16 %v1872
  %v2230 = vunpack.c.h.b16 %v1872
  %v2231 = vunpack.c.l.b16 %v1873
  %v2232 = vunpack.c.h.b16 %v1873
  %v2233 = vunpack.c.l.b16 %v1874
  %v2234 = vunpack.c.h.b16 %v1874
  %v2235 = vunpack.c.l.b16 %v1875
  %v2236 = vunpack.c.h.b16 %v1875
  %v2237 = vunpack.c.l.b16 %v1876
  %v2238 = vunpack.c.h.b16 %v1876
  %v2239 = vunpack.c.l.b16 %v1877
  %v2240 = vunpack.c.h.b16 %v1877
  %v2241 = vunpack.c.l.b16 %v1878
  %v2242 = vunpack.c.h.b16 %v1878
  %v2243 = vunpack.c.l.b16 %v1879
  %v2244 = vunpack.c.h.b16 %v1879
  %v2245 = vunpack.c.l.b16 %v1880
  %v2246 = vunpack.c.h.b16 %v1880
  %v2247 = vunpack.c.l.b16 %v1881
  %v2248 = vunpack.c.h.b16 %v1881
  %v2249 = vunpack.c.l.b16 %v1882
  %v2250 = vunpack.c.h.b16 %v1882
  %v2251 = vunpack.c.l.b16 %v1883
  %v2252 = vunpack.c.h.b16 %v1883
  %v2253 = vunpack.c.l.b16 %v1884
  %v2254 = vunpack.c.h.b16 %v1884
  %v2255 = vunpack.c.l.b16 %v1885
  %v2256 = vunpack.c.h.b16 %v1885
  %v2257 = vunpack.c.l.b16 %v1886
  %v2258 = vunpack.c.h.b16 %v1886
  %v2259 = vunpack.c.l.b16 %v1887
  %v2260 = vunpack.c.h.b16 %v1887
  %v2261 = vunpack.c.l.b16 %v1888
  %v2262 = vunpack.c.h.b16 %v1888
  %v2263 = vunpack.c.l.b16 %v1889
  %v2264 = vunpack.c.h.b16 %v1889
  %v2265 = vunpack.c.l.b16 %v1890
  %v2266 = vunpack.c.h.b16 %v1890
  %v2267 = vunpack.c.l.b16 %v1891
  %v2268 = vunpack.c.h.b16 %v1891
  %v2269 = vunpack.c.l.b16 %v1892
  %v2270 = vunpack.c.h.b16 %v1892
  %v2271 = vunpack.c.l.b16 %v1893
  %v2272 = vunpack.c.h.b16 %v1893
  %v2273 = vunpack.c.l.b16 %v1894
  %v2274 = vunpack.c.h.b16 %v1894
  %v2275 = vunpack.c.l.b16 %v1895
  %v2276 = vunpack.c.h.b16 %v1895
  %v2277 = vunpack.c.l.b16 %v1896
  %v2278 = vunpack.c.h.b16 %v1896
  %v2279 = vunpack.c.l.b16 %v1897
  %v2280 = vunpack.c.h.b16 %v1897
  %v2281 = vunpack.c.l.b16 %v1898
  %v2282 = vunpack.c.h.b16 %v1898
  %v2283 = vunpack.c.l.b16 %v1899
  %v2284 = vunpack.c.h.b16 %v1899
  %v2285 = vunpack.c.l.b16 %v1900
  %v2286 = vunpack.c.h.b16 %v1900
  %v2287 = vunpack.c.l.b16 %v1901
  %v2288 = vunpack.c.h.b16 %v1901
  %v2289 = vunpack.c.l.b16 %v1902
  %v2290 = vunpack.c.h.b16 %v1902
  %v2291 = vunpack.c.l.b16 %v1903
  %v2292 = vunpack.c.h.b16 %v1903
  %v2293 = vunpack.c.l.b16 %v1904
  %v2294 = vunpack.c.h.b16 %v1904
  %v2295 = vunpack.c.l.b16 %v1905
  %v2296 = vunpack.c.h.b16 %v1905
  %v2297 = vunpack.c.l.b16 %v1906
  %v2298 = vunpack.c.h.b16 %v1906
  %v2299 = vunpack.c.l.b16 %v1907
  %v2300 = vunpack.c.h.b16 %v1907
  %v2301 = vpack.c.b16 %v2049, %v2045
  %v2302 = vpack.c.b16 %v2050, %v2046
  %v2303 = vpack.c.b16 %v2051, %v2047
  %v2304 = vpack.c.b16 %v2052, %v2048
  %v2305 = vpack.c.b16 %v2057, %v2053
  %v2306 = vpack.c.b16 %v2058, %v2054
  %v2307 = vpack.c.b16 %v2059, %v2055
  %v2308 = vpack.c.b16 %v2060, %v2056
  %v2309 = vpack.c.b16 %v2065, %v2061
  %v2310 = vpack.c.b16 %v2066, %v2062
  %v2311 = vpack.c.b16 %v2067, %v2063
  %v2312 = vpack.c.b16 %v2068, %v2064
  %v2313 = vpack.c.b16 %v2073, %v2069
  %v2314 = vpack.c.b16 %v2074, %v2070
  %v2315 = vpack.c.b16 %v2075, %v2071
  %v2316 = vpack.c.b16 %v2076, %v2072
  %v2317 = vpack.c.b16 %v2081, %v2077
  %v2318 = vpack.c.b16 %v2082, %v2078
  %v2319 = vpack.c.b16 %v2083, %v2079
  %v2320 = vpack.c.b16 %v2084, %v2080
  %v2321 = vpack.c.b16 %v2089, %v2085
  %v2322 = vpack.c.b16 %v2090, %v2086
  %v2323 = vpack.c.b16 %v2091, %v2087
  %v2324 = vpack.c.b16 %v2092, %v2088
  %v2325 = vpack.c.b16 %v2097, %v2093
  %v2326 = vpack.c.b16 %v2098, %v2094
  %v2327 = vpack.c.b16 %v2099, %v2095
  %v2328 = vpack.c.b16 %v2100, %v2096
  %v2329 = vpack.c.b16 %v2105, %v2101
  %v2330 = vpack.c.b16 %v2106, %v2102
  %v2331 = vpack.c.b16 %v2107, %v2103
  %v2332 = vpack.c.b16 %v2108, %v2104
  %v2333 = vpack.c.b16 %v2113, %v2109
  %v2334 = vpack.c.b16 %v2114, %v2110
  %v2335 = vpack.c.b16 %v2115, %v2111
  %v2336 = vpack.c.b16 %v2116, %v2112
  %v2337 = vpack.c.b16 %v2121, %v2117
  %v2338 = vpack.c.b16 %v2122, %v2118
  %v2339 = vpack.c.b16 %v2123, %v2119
  %v2340 = vpack.c.b16 %v2124, %v2120
  %v2341 = vpack.c.b16 %v2129, %v2125
  %v2342 = vpack.c.b16 %v2130, %v2126
  %v2343 = vpack.c.b16 %v2131, %v2127
  %v2344 = vpack.c.b16 %v2132, %v2128
  %v2345 = vpack.c.b16 %v2137, %v2133
  %v2346 = vpack.c.b16 %v2138, %v2134
  %v2347 = vpack.c.b16 %v2139, %v2135
  %v2348 = vpack.c.b16 %v2140, %v2136
  %v2349 = vpack.c.b16 %v2145, %v2141
  %v2350 = vpack.c.b16 %v2146, %v2142
  %v2351 = vpack.c.b16 %v2147, %v2143
  %v2352 = vpack.c.b16 %v2148, %v2144
  %v2353 = vpack.c.b16 %v2153, %v2149
  %v2354 = vpack.c.b16 %v2154, %v2150
  %v2355 = vpack.c.b16 %v2155, %v2151
  %v2356 = vpack.c.b16 %v2156, %v2152
  %v2357 = vpack.c.b16 %v2161, %v2157
  %v2358 = vpack.c.b16 %v2162, %v2158
  %v2359 = vpack.c.b16 %v2163, %v2159
  %v2360 = vpack.c.b16 %v2164, %v2160
  %v2361 = vpack.c.b16 %v2169, %v2165
  %v2362 = vpack.c.b16 %v2170, %v2166
  %v2363 = vpack.c.b16 %v2171, %v2167
  %v2364 = vpack.c.b16 %v2172, %v2168
  %v2365 = vpack.c.b16 %v2177, %v2173
  %v2366 = vpack.c.b16 %v2178, %v2174
  %v2367 = vpack.c.b16 %v2179, %v2175
  %v2368 = vpack.c.b16 %v2180, %v2176
  %v2369 = vpack.c.b16 %v2185, %v2181
  %v2370 = vpack.c.b16 %v2186, %v2182
  %v2371 = vpack.c.b16 %v2187, %v2183
  %v2372 = vpack.c.b16 %v2188, %v2184
  %v2373 = vpack.c.b16 %v2193, %v2189
  %v2374 = vpack.c.b16 %v2194, %v2190
  %v2375 = vpack.c.b16 %v2195, %v2191
  %v2376 = vpack.c.b16 %v2196, %v2192
  %v2377 = vpack.c.b16 %v2201, %v2197
  %v2378 = vpack.c.b16 %v2202, %v2198
  %v2379 = vpack.c.b16 %v2203, %v2199
  %v2380 = vpack.c.b16 %v2204, %v2200
  %v2381 = vpack.c.b16 %v2209, %v2205
  %v2382 = vpack.c.b16 %v2210, %v2206
  %v2383 = vpack.c.b16 %v2211, %v2207
  %v2384 = vpack.c.b16 %v2212, %v2208
  %v2385 = vpack.c.b16 %v2217, %v2213
  %v2386 = vpack.c.b16 %v2218, %v2214
  %v2387 = vpack.c.b16 %v2219, %v2215
  %v2388 = vpack.c.b16 %v2220, %v2216
  %v2389 = vpack.c.b16 %v2225, %v2221
  %v2390 = vpack.c.b16 %v2226, %v2222
  %v2391 = vpack.c.b16 %v2227, %v2223
  %v2392 = vpack.c.b16 %v2228, %v2224
  %v2393 = vpack.c.b16 %v2233, %v2229
  %v2394 = vpack.c.b16 %v2234, %v2230
  %v2395 = vpack.c.b16 %v2235, %v2231
  %v2396 = vpack.c.b16 %v2236, %v2232
  %v2397 = vpack.c.b16 %v2241, %v2237
  %v2398 = vpack.c.b16 %v2242, %v2238
  %v2399 = vpack.c.b16 %v2243, %v2239
  %v2400 = vpack.c.b16 %v2244, %v2240
  %v2401 = vpack.c.b16 %v2249, %v2245
  %v2402 = vpack.c.b16 %v2250, %v2246
  %v2403 = vpack.c.b16 %v2251, %v2247
  %v2404 = vpack.c.b16 %v2252, %v2248
  %v2405 = vpack.c.b16 %v2257, %v2253
  %v2406 = vpack.c.b16 %v2258, %v2254
  %v2407 = vpack.c.b16 %v2259, %v2255
  %v2408 = vpack.c.b16 %v2260, %v2256
  %v2409 = vpack.c.b16 %v2265, %v2261
  %v2410 = vpack.c.b16 %v2266, %v2262
  %v2411 = vpack.c.b16 %v2267, %v2263
  %v2412 = vpack.c.b16 %v2268, %v2264
  %v2413 = vpack.c.b16 %v2273, %v2269
  %v2414 = vpack.c.b16 %v2274, %v2270
  %v2415 = vpack.c.b16 %v2275, %v2271
  %v2416 = vpack.c.b16 %v2276, %v2272
  %v2417 = vpack.c.b16 %v2281, %v2277
  %v2418 = vpack.c.b16 %v2282, %v2278
  %v2419 = vpack.c.b16 %v2283, %v2279
  %v2420 = vpack.c.b16 %v2284, %v2280
  %v2421 = vpack.c.b16 %v2289, %v2285
  %v2422 = vpack.c.b16 %v2290, %v2286
  %v2423 = vpack.c.b16 %v2291, %v2287
  %v2424 = vpack.c.b16 %v2292, %v2288
  %v2425 = vpack.c.b16 %v2297, %v2293
  %v2426 = vpack.c.b16 %v2298, %v2294
  %v2427 = vpack.c.b16 %v2299, %v2295
  %v2428 = vpack.c.b16 %v2300, %v2296
  %2557 = vmatpush.bf16.msra.mxu0 %v2329
  %2558 = vmatpush.bf16.msra.mxu0 %v2325
  %2559 = vmatpush.bf16.msra.mxu0 %v2321
  %2560 = vmatpush.bf16.msra.mxu0 %v2317
  %2561 = vmatpush.bf16.msra.mxu0 %v2313
  %2562 = vmatpush.bf16.msra.mxu0 %v2309
  %2563 = vmatpush.bf16.msra.mxu0 %v2305
  %2564 = vmatpush.bf16.msra.mxu0 %v2301
  %2565 = vmatmul.bf16.gmra.mxu0 %v1776
  %v2566 = vpop.f32.mrf.mxu0
  %v2567 = vadd.f32 %v1909, %v2566
  %v2568 = vpop.f32.mrf.mxu0
  %v2569 = vadd.f32 %v1909, %v2568
  %2570 = vdwg.mxu0
  %2571 = vmatpush.bf16.msra.mxu0 %v2361
  %2572 = vmatpush.bf16.msra.mxu0 %v2357
  %2573 = vmatpush.bf16.msra.mxu0 %v2353
  %2574 = vmatpush.bf16.msra.mxu0 %v2349
  %2575 = vmatpush.bf16.msra.mxu0 %v2345
  %2576 = vmatpush.bf16.msra.mxu0 %v2341
  %2577 = vmatpush.bf16.msra.mxu0 %v2337
  %2578 = vmatpush.bf16.msra.mxu0 %v2333
  %2579 = vmatmul.bf16.gmra.mxu0 %v1777
  %v2580 = vpop.f32.mrf.mxu0
  %v2581 = vadd.f32 %v2567, %v2580
  %v2582 = vpop.f32.mrf.mxu0
  %v2583 = vadd.f32 %v2569, %v2582
  %2584 = vdwg.mxu0
  %2585 = vmatpush.bf16.msra.mxu0 %v2393
  %2586 = vmatpush.bf16.msra.mxu0 %v2389
  %2587 = vmatpush.bf16.msra.mxu0 %v2385
  %2588 = vmatpush.bf16.msra.mxu0 %v2381
  %2589 = vmatpush.bf16.msra.mxu0 %v2377
  %2590 = vmatpush.bf16.msra.mxu0 %v2373
  %2591 = vmatpush.bf16.msra.mxu0 %v2369
  %2592 = vmatpush.bf16.msra.mxu0 %v2365
  %2593 = vmatmul.bf16.gmra.mxu0 %v1778
  %v2594 = vpop.f32.mrf.mxu0
  %v2595 = vadd.f32 %v2581, %v2594
  %v2596 = vpop.f32.mrf.mxu0
  %v2597 = vadd.f32 %v2583, %v2596
  %2598 = vdwg.mxu0
  %2599 = vmatpush.bf16.msra.mxu0 %v2425
  %2600 = vmatpush.bf16.msra.mxu0 %v2421
  %2601 = vmatpush.bf16.msra.mxu0 %v2417
  %2602 = vmatpush.bf16.msra.mxu0 %v2413
  %2603 = vmatpush.bf16.msra.mxu0 %v2409
  %2604 = vmatpush.bf16.msra.mxu0 %v2405
  %2605 = vmatpush.bf16.msra.mxu0 %v2401
  %2606 = vmatpush.bf16.msra.mxu0 %v2397
  %2607 = vmatmul.bf16.gmra.mxu0 %v1779
  %v2608 = vpop.f32.mrf.mxu0
  %v2609 = vadd.f32 %v2595, %v2608
  %v2610 = vpop.f32.mrf.mxu0
  %v2611 = vadd.f32 %v2597, %v2610
  %2612 = vdwg.mxu0
  %2613 = vmatpush.bf16.msra.mxu0 %v2330
  %2614 = vmatpush.bf16.msra.mxu0 %v2326
  %2615 = vmatpush.bf16.msra.mxu0 %v2322
  %2616 = vmatpush.bf16.msra.mxu0 %v2318
  %2617 = vmatpush.bf16.msra.mxu0 %v2314
  %2618 = vmatpush.bf16.msra.mxu0 %v2310
  %2619 = vmatpush.bf16.msra.mxu0 %v2306
  %2620 = vmatpush.bf16.msra.mxu0 %v2302
  %2621 = vmatmul.bf16.gmra.mxu0 %v1776
  %v2622 = vpop.f32.mrf.mxu0
  %v2623 = vadd.f32 %v1910, %v2622
  %v2624 = vpop.f32.mrf.mxu0
  %v2625 = vadd.f32 %v1910, %v2624
  %2626 = vdwg.mxu0
  %2627 = vmatpush.bf16.msra.mxu0 %v2362
  %2628 = vmatpush.bf16.msra.mxu0 %v2358
  %2629 = vmatpush.bf16.msra.mxu0 %v2354
  %2630 = vmatpush.bf16.msra.mxu0 %v2350
  %2631 = vmatpush.bf16.msra.mxu0 %v2346
  %2632 = vmatpush.bf16.msra.mxu0 %v2342
  %2633 = vmatpush.bf16.msra.mxu0 %v2338
  %2634 = vmatpush.bf16.msra.mxu0 %v2334
  %2635 = vmatmul.bf16.gmra.mxu0 %v1777
  %v2636 = vpop.f32.mrf.mxu0
  %v2637 = vadd.f32 %v2623, %v2636
  %v2638 = vpop.f32.mrf.mxu0
  %v2639 = vadd.f32 %v2625, %v2638
  %2640 = vdwg.mxu0
  %2641 = vmatpush.bf16.msra.mxu0 %v2394
  %2642 = vmatpush.bf16.msra.mxu0 %v2390
  %2643 = vmatpush.bf16.msra.mxu0 %v2386
  %2644 = vmatpush.bf16.msra.mxu0 %v2382
  %2645 = vmatpush.bf16.msra.mxu0 %v2378
  %2646 = vmatpush.bf16.msra.mxu0 %v2374
  %2647 = vmatpush.bf16.msra.mxu0 %v2370
  %2648 = vmatpush.bf16.msra.mxu0 %v2366
  %2649 = vmatmul.bf16.gmra.mxu0 %v1778
  %v2650 = vpop.f32.mrf.mxu0
  %v2651 = vadd.f32 %v2637, %v2650
  %v2652 = vpop.f32.mrf.mxu0
  %v2653 = vadd.f32 %v2639, %v2652
  %2654 = vdwg.mxu0
  %2655 = vmatpush.bf16.msra.mxu0 %v2426
  %2656 = vmatpush.bf16.msra.mxu0 %v2422
  %2657 = vmatpush.bf16.msra.mxu0 %v2418
  %2658 = vmatpush.bf16.msra.mxu0 %v2414
  %2659 = vmatpush.bf16.msra.mxu0 %v2410
  %2660 = vmatpush.bf16.msra.mxu0 %v2406
  %2661 = vmatpush.bf16.msra.mxu0 %v2402
  %2662 = vmatpush.bf16.msra.mxu0 %v2398
  %2663 = vmatmul.bf16.gmra.mxu0 %v1779
  %v2664 = vpop.f32.mrf.mxu0
  %v2665 = vadd.f32 %v2651, %v2664
  %v2666 = vpop.f32.mrf.mxu0
  %v2667 = vadd.f32 %v2653, %v2666
  %2668 = vdwg.mxu0
  %2669 = vmatpush.bf16.msra.mxu0 %v2331
  %2670 = vmatpush.bf16.msra.mxu0 %v2327
  %2671 = vmatpush.bf16.msra.mxu0 %v2323
  %2672 = vmatpush.bf16.msra.mxu0 %v2319
  %2673 = vmatpush.bf16.msra.mxu0 %v2315
  %2674 = vmatpush.bf16.msra.mxu0 %v2311
  %2675 = vmatpush.bf16.msra.mxu0 %v2307
  %2676 = vmatpush.bf16.msra.mxu0 %v2303
  %2677 = vmatmul.bf16.gmra.mxu0 %v1776
  %v2678 = vpop.f32.mrf.mxu0
  %v2679 = vadd.f32 %v1911, %v2678
  %v2680 = vpop.f32.mrf.mxu0
  %v2681 = vadd.f32 %v1911, %v2680
  %2682 = vdwg.mxu0
  %2683 = vmatpush.bf16.msra.mxu0 %v2363
  %2684 = vmatpush.bf16.msra.mxu0 %v2359
  %2685 = vmatpush.bf16.msra.mxu0 %v2355
  %2686 = vmatpush.bf16.msra.mxu0 %v2351
  %2687 = vmatpush.bf16.msra.mxu0 %v2347
  %2688 = vmatpush.bf16.msra.mxu0 %v2343
  %2689 = vmatpush.bf16.msra.mxu0 %v2339
  %2690 = vmatpush.bf16.msra.mxu0 %v2335
  %2691 = vmatmul.bf16.gmra.mxu0 %v1777
  %v2692 = vpop.f32.mrf.mxu0
  %v2693 = vadd.f32 %v2679, %v2692
  %v2694 = vpop.f32.mrf.mxu0
  %v2695 = vadd.f32 %v2681, %v2694
  %2696 = vdwg.mxu0
  %2697 = vmatpush.bf16.msra.mxu0 %v2395
  %2698 = vmatpush.bf16.msra.mxu0 %v2391
  %2699 = vmatpush.bf16.msra.mxu0 %v2387
  %2700 = vmatpush.bf16.msra.mxu0 %v2383
  %2701 = vmatpush.bf16.msra.mxu0 %v2379
  %2702 = vmatpush.bf16.msra.mxu0 %v2375
  %2703 = vmatpush.bf16.msra.mxu0 %v2371
  %2704 = vmatpush.bf16.msra.mxu0 %v2367
  %2705 = vmatmul.bf16.gmra.mxu0 %v1778
  %v2706 = vpop.f32.mrf.mxu0
  %v2707 = vadd.f32 %v2693, %v2706
  %v2708 = vpop.f32.mrf.mxu0
  %v2709 = vadd.f32 %v2695, %v2708
  %2710 = vdwg.mxu0
  %2711 = vmatpush.bf16.msra.mxu0 %v2427
  %2712 = vmatpush.bf16.msra.mxu0 %v2423
  %2713 = vmatpush.bf16.msra.mxu0 %v2419
  %2714 = vmatpush.bf16.msra.mxu0 %v2415
  %2715 = vmatpush.bf16.msra.mxu0 %v2411
  %2716 = vmatpush.bf16.msra.mxu0 %v2407
  %2717 = vmatpush.bf16.msra.mxu0 %v2403
  %2718 = vmatpush.bf16.msra.mxu0 %v2399
  %2719 = vmatmul.bf16.gmra.mxu0 %v1779
  %v2720 = vpop.f32.mrf.mxu0
  %v2721 = vadd.f32 %v2707, %v2720
  %v2722 = vpop.f32.mrf.mxu0
  %v2723 = vadd.f32 %v2709, %v2722
  %2724 = vdwg.mxu0
  %2725 = vmatpush.bf16.msra.mxu0 %v2332
  %2726 = vmatpush.bf16.msra.mxu0 %v2328
  %2727 = vmatpush.bf16.msra.mxu0 %v2324
  %2728 = vmatpush.bf16.msra.mxu0 %v2320
  %2729 = vmatpush.bf16.msra.mxu0 %v2316
  %2730 = vmatpush.bf16.msra.mxu0 %v2312
  %2731 = vmatpush.bf16.msra.mxu0 %v2308
  %2732 = vmatpush.bf16.msra.mxu0 %v2304
  %2733 = vmatmul.bf16.gmra.mxu0 %v1776
  %v2734 = vpop.f32.mrf.mxu0
  %v2735 = vadd.f32 %v1912, %v2734
  %v2736 = vpop.f32.mrf.mxu0
  %v2737 = vadd.f32 %v1912, %v2736
  %2738 = vdwg.mxu0
  %2739 = vmatpush.bf16.msra.mxu0 %v2364
  %2740 = vmatpush.bf16.msra.mxu0 %v2360
  %2741 = vmatpush.bf16.msra.mxu0 %v2356
  %2742 = vmatpush.bf16.msra.mxu0 %v2352
  %2743 = vmatpush.bf16.msra.mxu0 %v2348
  %2744 = vmatpush.bf16.msra.mxu0 %v2344
  %2745 = vmatpush.bf16.msra.mxu0 %v2340
  %2746 = vmatpush.bf16.msra.mxu0 %v2336
  %2747 = vmatmul.bf16.gmra.mxu0 %v1777
  %v2748 = vpop.f32.mrf.mxu0
  %v2749 = vadd.f32 %v2735, %v2748
  %v2750 = vpop.f32.mrf.mxu0
  %v2751 = vadd.f32 %v2737, %v2750
  %2752 = vdwg.mxu0
  %2753 = vmatpush.bf16.msra.mxu0 %v2396
  %2754 = vmatpush.bf16.msra.mxu0 %v2392
  %2755 = vmatpush.bf16.msra.mxu0 %v2388
  %2756 = vmatpush.bf16.msra.mxu0 %v2384
  %2757 = vmatpush.bf16.msra.mxu0 %v2380
  %2758 = vmatpush.bf16.msra.mxu0 %v2376
  %2759 = vmatpush.bf16.msra.mxu0 %v2372
  %2760 = vmatpush.bf16.msra.mxu0 %v2368
  %2761 = vmatmul.bf16.gmra.mxu0 %v1778
  %v2762 = vpop.f32.mrf.mxu0
  %v2763 = vadd.f32 %v2749, %v2762
  %v2764 = vpop.f32.mrf.mxu0
  %v2765 = vadd.f32 %v2751, %v2764
  %2766 = vdwg.mxu0
  %2767 = vmatpush.bf16.msra.mxu0 %v2428
  %2768 = vmatpush.bf16.msra.mxu0 %v2424
  %2769 = vmatpush.bf16.msra.mxu0 %v2420
  %2770 = vmatpush.bf16.msra.mxu0 %v2416
  %2771 = vmatpush.bf16.msra.mxu0 %v2412
  %2772 = vmatpush.bf16.msra.mxu0 %v2408
  %2773 = vmatpush.bf16.msra.mxu0 %v2404
  %2774 = vmatpush.bf16.msra.mxu0 %v2400
  %2775 = vmatmul.bf16.gmra.mxu0 %v1779
  %v2776 = vpop.f32.mrf.mxu0
  %v2777 = vadd.f32 %v2763, %v2776
  %v2778 = vpop.f32.mrf.mxu0
  %v2779 = vadd.f32 %v2765, %v2778
  %2780 = vdwg.mxu0
  %v2781 = vmax.f32 %v2609, 0.0
  %v2782 = vmax.f32 %v2665, 0.0
  %v2783 = vmax.f32 %v2721, 0.0
  %v2784 = vmax.f32 %v2777, 0.0
  %v2785 = vmax.f32 %v2611, 0.0
  %v2786 = vmax.f32 %v2667, 0.0
  %v2787 = vmax.f32 %v2723, 0.0
  %v2788 = vmax.f32 %v2779, 0.0
  %v2789 = vpack.c.bf16 %v2785, %v2781
  %v2790 = vpack.c.bf16 %v2786, %v2782
  %v2791 = vpack.c.bf16 %v2787, %v2783
  %v2792 = vpack.c.bf16 %v2788, %v2784
  %2793 = vmatpush.bf16.msra.mxu0 0
  %2794 = vmatpush.bf16.msra.mxu0 0
  %2795 = vmatpush.bf16.msra.mxu0 0
  %2796 = vmatpush.bf16.msra.mxu0 0
  %2797 = vmatpush.bf16.msra.mxu0 0
  %2798 = vmatpush.bf16.msra.mxu0 0
  %2799 = vmatpush.bf16.msra.mxu0 0
  %2800 = vmatpush.bf16.msra.mxu0 %v2789
  %2801 = vmatmul.bf16.gmra.mxu0 %v69
  %v2802 = vpop.f32.mrf.mxu0
  %v2803 = vadd.f32 0.0, %v2802
  %v2804 = vpop.f32.mrf.mxu0
  %v2805 = vadd.f32 0.0, %v2804
  %2806 = vdwg.mxu0
  %2807 = vmatpush.bf16.msra.mxu0 0
  %2808 = vmatpush.bf16.msra.mxu0 0
  %2809 = vmatpush.bf16.msra.mxu0 0
  %2810 = vmatpush.bf16.msra.mxu0 0
  %2811 = vmatpush.bf16.msra.mxu0 0
  %2812 = vmatpush.bf16.msra.mxu0 0
  %2813 = vmatpush.bf16.msra.mxu0 0
  %2814 = vmatpush.bf16.msra.mxu0 %v2790
  %2815 = vmatmul.bf16.gmra.mxu0 %v69
  %v2816 = vpop.f32.mrf.mxu0
  %v2817 = vadd.f32 0.0, %v2816
  %v2818 = vpop.f32.mrf.mxu0
  %v2819 = vadd.f32 0.0, %v2818
  %2820 = vdwg.mxu0
  %2821 = vmatpush.bf16.msra.mxu0 0
  %2822 = vmatpush.bf16.msra.mxu0 0
  %2823 = vmatpush.bf16.msra.mxu0 0
  %2824 = vmatpush.bf16.msra.mxu0 0
  %2825 = vmatpush.bf16.msra.mxu0 0
  %2826 = vmatpush.bf16.msra.mxu0 0
  %2827 = vmatpush.bf16.msra.mxu0 0
  %2828 = vmatpush.bf16.msra.mxu0 %v2791
  %2829 = vmatmul.bf16.gmra.mxu0 %v69
  %v2830 = vpop.f32.mrf.mxu0
  %v2831 = vadd.f32 0.0, %v2830
  %v2832 = vpop.f32.mrf.mxu0
  %v2833 = vadd.f32 0.0, %v2832
  %2834 = vdwg.mxu0
  %2835 = vmatpush.bf16.msra.mxu0 0
  %2836 = vmatpush.bf16.msra.mxu0 0
  %2837 = vmatpush.bf16.msra.mxu0 0
  %2838 = vmatpush.bf16.msra.mxu0 0
  %2839 = vmatpush.bf16.msra.mxu0 0
  %2840 = vmatpush.bf16.msra.mxu0 0
  %2841 = vmatpush.bf16.msra.mxu0 0
  %2842 = vmatpush.bf16.msra.mxu0 %v2792
  %2843 = vmatmul.bf16.gmra.mxu0 %v69
  %v2844 = vpop.f32.mrf.mxu0
  %v2845 = vadd.f32 0.0, %v2844
  %v2846 = vpop.f32.mrf.mxu0
  %v2847 = vadd.f32 0.0, %v2846
  %2848 = vdwg.mxu0
  %v2849 = vpack.c.bf16 %v2805, %v2803
  %v2850 = vpack.c.bf16 %v2819, %v2817
  %v2851 = vpack.c.bf16 %v2833, %v2831
  %v2852 = vpack.c.bf16 %v2847, %v2845
  %v2853 = vld [vmem:[%s8] sm:$0xf]
  %v2854 = vld [vmem:[%s8 + $0x4] sm:$0xf]
  %v2855 = vld [vmem:[%s8 + $0x8] sm:$0xf]
  %v2856 = vld [vmem:[%s8 + $0xc] sm:$0xf]
  %v2857 = vld [vmem:[%s8 + $0x10] sm:$0xf]
  %v2858 = vld [vmem:[%s8 + $0x14] sm:$0xf]
  %v2859 = vld [vmem:[%s8 + $0x18] sm:$0xf]
  %v2860 = vld [vmem:[%s8 + $0x1c] sm:$0xf]
  %v2861 = vld [vmem:[%s8 + $0x20] sm:$0xf]
  %v2862 = vld [vmem:[%s8 + $0x24] sm:$0xf]
  %v2863 = vld [vmem:[%s8 + $0x28] sm:$0xf]
  %v2864 = vld [vmem:[%s8 + $0x2c] sm:$0xf]
  %v2865 = vld [vmem:[%s8 + $0x30] sm:$0xf]
  %v2866 = vld [vmem:[%s8 + $0x34] sm:$0xf]
  %v2867 = vld [vmem:[%s8 + $0x38] sm:$0xf]
  %v2868 = vld [vmem:[%s8 + $0x3c] sm:$0xf]
  %v2869 = vld [vmem:[%s8 + $0x40] sm:$0xf]
  %v2870 = vld [vmem:[%s8 + $0x44] sm:$0xf]
  %v2871 = vld [vmem:[%s8 + $0x48] sm:$0xf]
  %v2872 = vld [vmem:[%s8 + $0x4c] sm:$0xf]
  %v2873 = vld [vmem:[%s8 + $0x50] sm:$0xf]
  %v2874 = vld [vmem:[%s8 + $0x54] sm:$0xf]
  %v2875 = vld [vmem:[%s8 + $0x58] sm:$0xf]
  %v2876 = vld [vmem:[%s8 + $0x5c] sm:$0xf]
  %v2877 = vld [vmem:[%s8 + $0x60] sm:$0xf]
  %v2878 = vld [vmem:[%s8 + $0x64] sm:$0xf]
  %v2879 = vld [vmem:[%s8 + $0x68] sm:$0xf]
  %v2880 = vld [vmem:[%s8 + $0x6c] sm:$0xf]
  %v2881 = vld [vmem:[%s8 + $0x70] sm:$0xf]
  %v2882 = vld [vmem:[%s8 + $0x74] sm:$0xf]
  %v2883 = vld [vmem:[%s8 + $0x78] sm:$0xf]
  %v2884 = vld [vmem:[%s8 + $0x7c] sm:$0xf]
  %v2885 = vld [vmem:[%s8 + $0x80] sm:$0xf]
  %v2886 = vld [vmem:[%s8 + $0x84] sm:$0xf]
  %v2887 = vld [vmem:[%s8 + $0x88] sm:$0xf]
  %v2888 = vld [vmem:[%s8 + $0x8c] sm:$0xf]
  %v2889 = vld [vmem:[%s8 + $0x90] sm:$0xf]
  %v2890 = vld [vmem:[%s8 + $0x94] sm:$0xf]
  %v2891 = vld [vmem:[%s8 + $0x98] sm:$0xf]
  %v2892 = vld [vmem:[%s8 + $0x9c] sm:$0xf]
  %v2893 = vld [vmem:[%s8 + $0xa0] sm:$0xf]
  %v2894 = vld [vmem:[%s8 + $0xa4] sm:$0xf]
  %v2895 = vld [vmem:[%s8 + $0xa8] sm:$0xf]
  %v2896 = vld [vmem:[%s8 + $0xac] sm:$0xf]
  %v2897 = vld [vmem:[%s8 + $0xb0] sm:$0xf]
  %v2898 = vld [vmem:[%s8 + $0xb4] sm:$0xf]
  %v2899 = vld [vmem:[%s8 + $0xb8] sm:$0xf]
  %v2900 = vld [vmem:[%s8 + $0xbc] sm:$0xf]
  %v2901 = vld [vmem:[%s8 + $0xc0] sm:$0xf]
  %v2902 = vld [vmem:[%s8 + $0xc4] sm:$0xf]
  %v2903 = vld [vmem:[%s8 + $0xc8] sm:$0xf]
  %v2904 = vld [vmem:[%s8 + $0xcc] sm:$0xf]
  %v2905 = vld [vmem:[%s8 + $0xd0] sm:$0xf]
  %v2906 = vld [vmem:[%s8 + $0xd4] sm:$0xf]
  %v2907 = vld [vmem:[%s8 + $0xd8] sm:$0xf]
  %v2908 = vld [vmem:[%s8 + $0xdc] sm:$0xf]
  %v2909 = vld [vmem:[%s8 + $0xe0] sm:$0xf]
  %v2910 = vld [vmem:[%s8 + $0xe4] sm:$0xf]
  %v2911 = vld [vmem:[%s8 + $0xe8] sm:$0xf]
  %v2912 = vld [vmem:[%s8 + $0xec] sm:$0xf]
  %v2913 = vld [vmem:[%s8 + $0xf0] sm:$0xf]
  %v2914 = vld [vmem:[%s8 + $0xf4] sm:$0xf]
  %v2915 = vld [vmem:[%s8 + $0xf8] sm:$0xf]
  %v2916 = vld [vmem:[%s8 + $0xfc] sm:$0xf]
  %v2981 = vunpack.c.l.b16 %v2853
  %v2982 = vunpack.c.l.b16 %v2854
  %v2983 = vunpack.c.l.b16 %v2855
  %v2984 = vunpack.c.l.b16 %v2856
  %v2985 = vunpack.c.l.b16 %v2857
  %v2986 = vunpack.c.l.b16 %v2858
  %v2987 = vunpack.c.l.b16 %v2859
  %v2988 = vunpack.c.l.b16 %v2860
  %v2989 = vunpack.c.l.b16 %v2861
  %v2990 = vunpack.c.l.b16 %v2862
  %v2991 = vunpack.c.l.b16 %v2863
  %v2992 = vunpack.c.l.b16 %v2864
  %v2993 = vunpack.c.l.b16 %v2865
  %v2994 = vunpack.c.l.b16 %v2866
  %v2995 = vunpack.c.l.b16 %v2867
  %v2996 = vunpack.c.l.b16 %v2868
  %v2997 = vunpack.c.l.b16 %v2869
  %v2998 = vunpack.c.l.b16 %v2870
  %v2999 = vunpack.c.l.b16 %v2871
  %v3000 = vunpack.c.l.b16 %v2872
  %v3001 = vunpack.c.l.b16 %v2873
  %v3002 = vunpack.c.l.b16 %v2874
  %v3003 = vunpack.c.l.b16 %v2875
  %v3004 = vunpack.c.l.b16 %v2876
  %v3005 = vunpack.c.l.b16 %v2877
  %v3006 = vunpack.c.l.b16 %v2878
  %v3007 = vunpack.c.l.b16 %v2879
  %v3008 = vunpack.c.l.b16 %v2880
  %v3009 = vunpack.c.l.b16 %v2881
  %v3010 = vunpack.c.l.b16 %v2882
  %v3011 = vunpack.c.l.b16 %v2883
  %v3012 = vunpack.c.l.b16 %v2884
  %v3013 = vunpack.c.l.b16 %v2885
  %v3014 = vunpack.c.l.b16 %v2886
  %v3015 = vunpack.c.l.b16 %v2887
  %v3016 = vunpack.c.l.b16 %v2888
  %v3017 = vunpack.c.l.b16 %v2889
  %v3018 = vunpack.c.l.b16 %v2890
  %v3019 = vunpack.c.l.b16 %v2891
  %v3020 = vunpack.c.l.b16 %v2892
  %v3021 = vunpack.c.l.b16 %v2893
  %v3022 = vunpack.c.l.b16 %v2894
  %v3023 = vunpack.c.l.b16 %v2895
  %v3024 = vunpack.c.l.b16 %v2896
  %v3025 = vunpack.c.l.b16 %v2897
  %v3026 = vunpack.c.l.b16 %v2898
  %v3027 = vunpack.c.l.b16 %v2899
  %v3028 = vunpack.c.l.b16 %v2900
  %v3029 = vunpack.c.l.b16 %v2901
  %v3030 = vunpack.c.l.b16 %v2902
  %v3031 = vunpack.c.l.b16 %v2903
  %v3032 = vunpack.c.l.b16 %v2904
  %v3033 = vunpack.c.l.b16 %v2905
  %v3034 = vunpack.c.l.b16 %v2906
  %v3035 = vunpack.c.l.b16 %v2907
  %v3036 = vunpack.c.l.b16 %v2908
  %v3037 = vunpack.c.l.b16 %v2909
  %v3038 = vunpack.c.l.b16 %v2910
  %v3039 = vunpack.c.l.b16 %v2911
  %v3040 = vunpack.c.l.b16 %v2912
  %v3041 = vunpack.c.l.b16 %v2913
  %v3042 = vunpack.c.l.b16 %v2914
  %v3043 = vunpack.c.l.b16 %v2915
  %v3044 = vunpack.c.l.b16 %v2916
  %v3045 = vpack.c.b16 %v2982, %v2981
  %v3046 = vpack.c.b16 %v2984, %v2983
  %v3047 = vpack.c.b16 %v2986, %v2985
  %v3048 = vpack.c.b16 %v2988, %v2987
  %v3049 = vpack.c.b16 %v2990, %v2989
  %v3050 = vpack.c.b16 %v2992, %v2991
  %v3051 = vpack.c.b16 %v2994, %v2993
  %v3052 = vpack.c.b16 %v2996, %v2995
  %v3053 = vpack.c.b16 %v2998, %v2997
  %v3054 = vpack.c.b16 %v3000, %v2999
  %v3055 = vpack.c.b16 %v3002, %v3001
  %v3056 = vpack.c.b16 %v3004, %v3003
  %v3057 = vpack.c.b16 %v3006, %v3005
  %v3058 = vpack.c.b16 %v3008, %v3007
  %v3059 = vpack.c.b16 %v3010, %v3009
  %v3060 = vpack.c.b16 %v3012, %v3011
  %v3061 = vpack.c.b16 %v3014, %v3013
  %v3062 = vpack.c.b16 %v3016, %v3015
  %v3063 = vpack.c.b16 %v3018, %v3017
  %v3064 = vpack.c.b16 %v3020, %v3019
  %v3065 = vpack.c.b16 %v3022, %v3021
  %v3066 = vpack.c.b16 %v3024, %v3023
  %v3067 = vpack.c.b16 %v3026, %v3025
  %v3068 = vpack.c.b16 %v3028, %v3027
  %v3069 = vpack.c.b16 %v3030, %v3029
  %v3070 = vpack.c.b16 %v3032, %v3031
  %v3071 = vpack.c.b16 %v3034, %v3033
  %v3072 = vpack.c.b16 %v3036, %v3035
  %v3073 = vpack.c.b16 %v3038, %v3037
  %v3074 = vpack.c.b16 %v3040, %v3039
  %v3075 = vpack.c.b16 %v3042, %v3041
  %v3076 = vpack.c.b16 %v3044, %v3043
  %3109 = vmatpush.bf16.msra.mxu0 %v3052
  %3110 = vmatpush.bf16.msra.mxu0 %v3051
  %3111 = vmatpush.bf16.msra.mxu0 %v3050
  %3112 = vmatpush.bf16.msra.mxu0 %v3049
  %3113 = vmatpush.bf16.msra.mxu0 %v3048
  %3114 = vmatpush.bf16.msra.mxu0 %v3047
  %3115 = vmatpush.bf16.msra.mxu0 %v3046
  %3116 = vmatpush.bf16.msra.mxu0 %v3045
  %3117 = vmatmul.bf16.gmra.mxu0 %v2849
  %v3118 = vpop.f32.mrf.mxu0
  %v3119 = vadd.f32 %v55, %v3118
  %v3120 = vpop.f32.mrf.mxu0
  %v3121 = vadd.f32 %v55, %v3120
  %3122 = vdwg.mxu0
  %3123 = vmatpush.bf16.msra.mxu0 %v3060
  %3124 = vmatpush.bf16.msra.mxu0 %v3059
  %3125 = vmatpush.bf16.msra.mxu0 %v3058
  %3126 = vmatpush.bf16.msra.mxu0 %v3057
  %3127 = vmatpush.bf16.msra.mxu0 %v3056
  %3128 = vmatpush.bf16.msra.mxu0 %v3055
  %3129 = vmatpush.bf16.msra.mxu0 %v3054
  %3130 = vmatpush.bf16.msra.mxu0 %v3053
  %3131 = vmatmul.bf16.gmra.mxu0 %v2850
  %v3132 = vpop.f32.mrf.mxu0
  %v3133 = vadd.f32 %v3119, %v3132
  %v3134 = vpop.f32.mrf.mxu0
  %v3135 = vadd.f32 %v3121, %v3134
  %3136 = vdwg.mxu0
  %3137 = vmatpush.bf16.msra.mxu0 %v3068
  %3138 = vmatpush.bf16.msra.mxu0 %v3067
  %3139 = vmatpush.bf16.msra.mxu0 %v3066
  %3140 = vmatpush.bf16.msra.mxu0 %v3065
  %3141 = vmatpush.bf16.msra.mxu0 %v3064
  %3142 = vmatpush.bf16.msra.mxu0 %v3063
  %3143 = vmatpush.bf16.msra.mxu0 %v3062
  %3144 = vmatpush.bf16.msra.mxu0 %v3061
  %3145 = vmatmul.bf16.gmra.mxu0 %v2851
  %v3146 = vpop.f32.mrf.mxu0
  %v3147 = vadd.f32 %v3133, %v3146
  %v3148 = vpop.f32.mrf.mxu0
  %v3149 = vadd.f32 %v3135, %v3148
  %3150 = vdwg.mxu0
  %3151 = vmatpush.bf16.msra.mxu0 %v3076
  %3152 = vmatpush.bf16.msra.mxu0 %v3075
  %3153 = vmatpush.bf16.msra.mxu0 %v3074
  %3154 = vmatpush.bf16.msra.mxu0 %v3073
  %3155 = vmatpush.bf16.msra.mxu0 %v3072
  %3156 = vmatpush.bf16.msra.mxu0 %v3071
  %3157 = vmatpush.bf16.msra.mxu0 %v3070
  %3158 = vmatpush.bf16.msra.mxu0 %v3069
  %3159 = vmatmul.bf16.gmra.mxu0 %v2852
  %v3160 = vpop.f32.mrf.mxu0
  %v3161 = vadd.f32 %v3147, %v3160
  %v3162 = vpop.f32.mrf.mxu0
  %v3163 = vadd.f32 %v3149, %v3162
  %3164 = vdwg.mxu0
  %v3165 = vmax.f32 %v3161, 0.0
  %v3166 = vmax.f32 %v3163, 0.0
  %3168 = vrot.lane.b32.xlu0 %v55, 127
  %v3169 = vpop.permute.xlu0 %3168
  %v3171 = vmul.f32 %v3165, %v3169
  %v3172 = vmul.f32 %v3166, %v3169
  %3173 = vrot.lane.b32.xlu0 %v55, 126
  %v3174 = vpop.permute.xlu0 %3173
  %v3176 = vadd.f32 %v3171, %v3174
  %v3177 = vadd.f32 %v3172, %v3174
  %v3178 = vxor.u32 %v3176, 2147483648
  %v3179 = vxor.u32 %v3177, 2147483648
  %v3180 = vmul.f32 %v3178, 1.442695
  %v3181 = vpow.pop %v3180
  %v3182 = vmul.f32 %v3179, 1.442695
  %v3183 = vpow.pop %v3182
  %v3184 = vadd.f32 %v3181, 1.0
  %v3185 = vadd.f32 %v3183, 1.0
  %v3186 = vrcp.pop %v3184
  %v3187 = vmul.f32 %v3184, %v3186
  %v3188 = vsub.f32 1.0, %v3187
  %v3189 = vmul.f32 %v3186, %v3188
  %v3190 = vadd.f32 %v3186, %v3189
  %vm3191 = vweird.f32 %v3184
  %vm3192 = vweird.f32 %v3186
  %vm3193 = vmor %vm3191, %vm3192
  %v3194 = vsel %vm3193, %v3186, %v3190
  %v3195 = vand.u32 2147483647, %v3184
  %vm3196 = vcmp.eq.f32.partialorder %v3195, 8.507059e+37
  %v3197 = vand.u32 %v3184, 2147483648
  %v3198 = vor.u32 1.1754944e-38, %v3197
  %v3199 = vsel %vm3196, %v3198, %v3194
  %v3200 = vmul.f32 1.0, %v3199
  %v3201 = vrcp.pop %v3185
  %v3202 = vmul.f32 %v3185, %v3201
  %v3203 = vsub.f32 1.0, %v3202
  %v3204 = vmul.f32 %v3201, %v3203
  %v3205 = vadd.f32 %v3201, %v3204
  %vm3206 = vweird.f32 %v3185
  %vm3207 = vweird.f32 %v3201
  %vm3208 = vmor %vm3206, %vm3207
  %v3209 = vsel %vm3208, %v3201, %v3205
  %v3210 = vand.u32 2147483647, %v3185
  %vm3211 = vcmp.eq.f32.partialorder %v3210, 8.507059e+37
  %v3212 = vand.u32 %v3185, 2147483648
  %v3213 = vor.u32 1.1754944e-38, %v3212
  %v3214 = vsel %vm3211, %v3213, %v3209
  %v3215 = vmul.f32 1.0, %v3214
  %v3216 = vld [vmem:[%s10] sm:$0xff]
  %v3217 = vld [vmem:[%s10 + $0x8] sm:$0xff]
  %v3218 = vmul.f32 %v1632, %v3216
  %v3219 = vmul.f32 %v1634, %v3217
  %v3220 = vsel %vm143, %v3218, 0.0
  %3221 = vadd.xlane.f32.xlu0 %v3220
  %v3222 = vpop.xlane.xlu0 %3221
  %v3223 = vsel %vm143, %v3219, 0.0
  %3224 = vadd.xlane.f32.xlu0 %v3223
  %v3225 = vpop.xlane.xlu0 %3224
  %v3226 = vlaneseq
  %v3227 = vshrl.u32 %v3226, 7
  %v3228 = vadd.s32 %v3227, 8
  %v3229 = vlaneseq
  %v3230 = vand.u32 %v3229, 127
  %vm3231 = vcmp.eq.s32.totalorder %v3227, %v3230
  %vm3232 = vcmp.eq.s32.totalorder %v3228, %v3230
  %v3233 = vsel %vm3231, 1, 0
  %v3234 = vsel %vm3232, 1, 0
  %v3235 = vcvt.s32.f32 %v3233
  %v3236 = vcvt.s32.f32 %v3234
  %v3237 = vmul.f32 %v3235, %v3222
  %v3238 = vmul.f32 %v3236, %v3225
  %v3239 = vsel %vm67, %v3237, 0.0
  %v3240 = vsel %vm67, %v3238, 0.0
  %v3241 = vadd.f32 %v3239, %v3240
  %v3242 = vrot.slane %v3241, 4
  %v3243 = vadd.f32 %v3241, %v3242
  %v3244 = vrot.slane %v3243, 2
  %v3245 = vadd.f32 %v3243, %v3244
  %v3246 = vrot.slane %v3245, 1
  %v3247 = vadd.f32 %v3245, %v3246
  %v3248 = vld [vmem:[%s11] sm:$0x1]
  %v3249 = vmul.f32 %v3248, %v3247
  %vm3250 = vcmask 122880
  %v3251 = vsel %vm3250, %v3249, 0.0
  %3252 = vadd.xlane.f32.xlu0 %v3251
  %v3253 = vpop.xlane.xlu0 %3252
  %v3254 = vadd.f32 %v3253, %v55
  %v3255 = vxor.u32 %v3254, 2147483648
  %v3256 = vmul.f32 %v3255, 1.442695
  %v3257 = vpow.pop %v3256
  %v3258 = vadd.f32 %v3257, 1.0
  %v3259 = vrcp.pop %v3258
  %v3260 = vmul.f32 %v3258, %v3259
  %v3261 = vsub.f32 1.0, %v3260
  %v3262 = vmul.f32 %v3259, %v3261
  %v3263 = vadd.f32 %v3259, %v3262
  %vm3264 = vweird.f32 %v3258
  %vm3265 = vweird.f32 %v3259
  %vm3266 = vmor %vm3264, %vm3265
  %v3267 = vsel %vm3266, %v3259, %v3263
  %v3268 = vand.u32 2147483647, %v3258
  %vm3269 = vcmp.eq.f32.partialorder %v3268, 8.507059e+37
  %v3270 = vand.u32 %v3258, 2147483648
  %v3271 = vor.u32 1.1754944e-38, %v3270
  %v3272 = vsel %vm3269, %v3271, %v3267
  %v3273 = vmul.f32 1.0, %v3272
  %3274 = vst.msk [vmem:[%s12] sm:$0xff] %vm67, 0.0
  %3276 = vset.pattern.permute.xlu0 0
  %3277 = vperm.xlu0 %3276, %v3200
  %v3278 = vpop.permute.xlu0 %3277
  %3281 = vset.pattern.permute.xlu0 0
  %3282 = vperm.xlu0 %3281, %v3215
  %v3283 = vpop.permute.xlu0 %3282
  %v3285 = vmul.f32 %v3235, %v3278
  %v3286 = vmul.f32 %v3236, %v3283
  %v3287 = vsel %vm67, %v3285, 0.0
  %v3288 = vsel %vm67, %v3286, 0.0
  %v3289 = vadd.f32 %v3287, %v3288
  %v3290 = vrot.slane %v3289, 4
  %v3291 = vadd.f32 %v3289, %v3290
  %v3292 = vrot.slane %v3291, 2
  %v3293 = vadd.f32 %v3291, %v3292
  %v3294 = vrot.slane %v3293, 1
  %v3295 = vadd.f32 %v3293, %v3294
  %3296 = vst.msk [vmem:[%s12] sm:$0x1] %vm3250, %v3295
  %3298 = vrot.lane.b32.xlu0 %v3273, 125
  %v3299 = vpop.permute.xlu0 %3298
  %v3301 = vmul.f32 %v3235, %v3299
  %v3302 = vadd.f32 %v3301, 0.0
  %vm3303 = vcmask 0
  %3304 = vst.msk [vmem:[%s12 + $0x1] sm:$0x1] %vm3303, %v3302
  // Predicated region
  $region50: #{dem_localization_forward.1} parent=0 // pred_check
    _
  $region51: #{dem_localization_forward.1} parent=0 // pred_check_branch
    %3306 = sbr.rel (0) target = $region53
  $region52: #{dem_localization_forward.1} parent=0 // pred_region
    _
  $region53: #{dem_localization_forward.1} parent=0 // pred_fallthru
    _
  // Predicated region
  $region54: #{dem_localization_forward.1} parent=0 // pred_check
    _
  $region55: #{dem_localization_forward.1} parent=0 // pred_check_branch
    %3308 = sbr.rel (0) target = $region57
  $region56: #{dem_localization_forward.1} parent=0 // pred_region
    _
  $region57: #{dem_localization_forward.1} parent=0 // pred_fallthru
    _

</llo_original>
